<compile_context>
chip_gen: v6e
topology: v6e:2x2x1
jax: 0.10.0
libtpu: 0.0.40
codegen_flags: <defaults>
</compile_context>

<pallas_src>
import functools

import jax
import jax.numpy as jnp
from jax import lax
from jax.experimental import pallas as pl
from jax.experimental.pallas import tpu as pltpu

TB = 512                   # compute chunk width (lanes); keep <= 512 for vregs
MAX_TILES_PER_BLOCK = 16   # DMA block = up to 16*512 = 8192 batch rows / step
SMALL_BATCH_CUTOFF = 1024  # below this, plain fused XLA path wins
_HP = lax.Precision.HIGHEST


def fcnn_kernel(x_ref, w1_ref, b1_ref, w2_ref, b2_ref, w3_ref, b3_ref, o_ref):
    # x_ref: (TB_BLOCK, S) slab of the original (B, S) input.
    # o_ref: (1, TB_BLOCK) lane-dense output slab.
    w1 = w1_ref[...]   # (16, S)
    b1 = b1_ref[...]   # (16, 1)
    w2 = w2_ref[...]   # (32, 16)
    b2 = b2_ref[...]   # (32, 1)
    w3 = w3_ref[...]   # (1, 32)
    b3 = b3_ref[...]   # (1, 1)

    n_chunks = x_ref.shape[0] // TB  # static

    def body(j, carry):
        start = pl.multiple_of(j * TB, TB)
        xc = x_ref[pl.ds(start, TB), :]                       # (TB, S)
        # Layer 1: contract S of (16,S) with S of (TB,S) -> (16, TB); the
        # effective transpose of the (TB,S) tile happens on the XLU/MXU.
        h1 = lax.dot_general(w1, xc, (((1,), (1,)), ((), ())),
                             preferred_element_type=jnp.float32,
                             precision=_HP)
        h1 = jnp.maximum(h1 + b1, 0.0)
        # Layer 2: (32,16) @ (16,TB) -> (32, TB)
        h2 = jnp.dot(w2, h1, preferred_element_type=jnp.float32, precision=_HP)
        h2 = jnp.maximum(h2 + b2, 0.0)
        # Layer 3: (1,32) @ (32,TB) -> (1, TB); lane-dense store.
        out = jnp.dot(w3, h2, preferred_element_type=jnp.float32, precision=_HP)
        o_ref[:, pl.ds(start, TB)] = out + b3
        return carry

    lax.fori_loop(0, n_chunks, body, 0, unroll=True)


def _round_up(n, m):
    return ((n + m - 1) // m) * m


def _choose_tiles_per_block(n_tiles):
    """Largest divisor of n_tiles <= MAX_TILES_PER_BLOCK keeping grid >= 2."""
    best = 1
    for d in range(1, min(n_tiles, MAX_TILES_PER_BLOCK) + 1):
        if n_tiles % d == 0 and (n_tiles // d >= 2 or n_tiles == 1):
            best = d
    return best


def _fcnn_dense(x, p):
    """Fused plain-XLA path; also serves as the reference implementation."""
    h = jnp.maximum(jnp.dot(x, p["w1"].T, precision=_HP) + p["b1"].T, 0.0)
    h = jnp.maximum(jnp.dot(h, p["w2"].T, precision=_HP) + p["b2"].T, 0.0)
    return jnp.dot(h, p["w3"].T, precision=_HP) + p["b3"].T


@functools.partial(jax.jit, static_argnames=("force_pallas",))
def fcnn_forward(x, params, *, force_pallas=False):
    """Fused fcnn forward pass.

    x:      (B, stateSize) float32   (PyTorch convention)
    params: PyTorch-layout weights: w1 (16,S), b1 (16,1), w2 (32,16),
            b2 (32,1), w3 (1,32), b3 (1,1)
    returns (B, 1) float32
    """
    w1, b1 = params["w1"], params["b1"]
    w2, b2 = params["w2"], params["b2"]
    w3, b3 = params["w3"], params["b3"]
    B, S = x.shape

    if B < SMALL_BATCH_CUTOFF and not force_pallas:
        return _fcnn_dense(x, params)

    n_tiles = pl.cdiv(B, TB)
    Bp = n_tiles * TB
    if Bp != B:
        # Tail padding only (< TB rows).  Lives in the same jit as the
        # pallas_call; padded columns are sliced off before returning.
        x = jnp.pad(x, ((0, Bp - B), (0, 0)))

    tiles_per_block = _choose_tiles_per_block(n_tiles)
    tb_block = tiles_per_block * TB
    grid = (Bp // tb_block,)

    resident = lambda a: pl.BlockSpec(a.shape, lambda i: (0, 0))

    out = pl.pallas_call(
        fcnn_kernel,
        out_shape=jax.ShapeDtypeStruct((1, Bp), jnp.float32),
        grid=grid,
        in_specs=[
            pl.BlockSpec((tb_block, S), lambda i: (i, 0)),  # x slab: pipelined
            resident(w1), resident(b1),                     # weights/biases:
            resident(w2), resident(b2),                     # DMA once, stay
            resident(w3), resident(b3),                     # VMEM-resident
        ],
        out_specs=pl.BlockSpec((1, tb_block), lambda i: (0, i)),
        compiler_params=pltpu.CompilerParams(
            dimension_semantics=("parallel",),
            vmem_limit_bytes=32 * 1024 * 1024),
    )(x, w1, b1, w2, b2, w3, b3)

    # Drop batch padding; tiny (1,B)->(B,1) transpose (4*B bytes).
    return out[:, :B].T


def init_params(key, state_size):
    """Deterministic init mimicking nn.Linear's U(-1/sqrt(fan_in), ...).

    Weights stored in PyTorch (out_features, in_features) layout; biases (out, 1).
    """
    ks = jax.random.split(key, 6)

    def linear(kw, kb, fan_in, fan_out):
        bound = 1.0 / jnp.sqrt(jnp.float32(fan_in))
        w = jax.random.uniform(kw, (fan_out, fan_in), jnp.float32, -bound, bound)
        b = jax.random.uniform(kb, (fan_out, 1), jnp.float32, -bound, bound)
        return w, b

    w1, b1 = linear(ks[0], ks[1], state_size, 16)
    w2, b2 = linear(ks[2], ks[3], 16, 32)
    w3, b3 = linear(ks[4], ks[5], 32, 1)
    return {"w1": w1, "b1": b1, "w2": w2, "b2": b2, "w3": w3, "b3": b3}


if __name__ == "__main__":
    key = jax.random.PRNGKey(0)
    k_param, k_x = jax.random.split(key)

    state_size = 4   # stateSize for the NEURWIN fcnn
    batch = 8

    params = init_params(k_param, state_size)
    x = jax.random.normal(k_x, (batch, state_size), dtype=jnp.float32)

    # Small-shape demo, forced through the Pallas kernel (single grid step).
    out = jax.block_until_ready(fcnn_forward(x, params, force_pallas=True))
    ref = _fcnn_dense(x, params)
    assert out.shape == (batch, 1)
    assert jnp.allclose(out, ref, atol=1e-5, rtol=1e-5)

    # Same small shape through the auto path (dense fast path for B < 1024).
    out_fast = jax.block_until_ready(fcnn_forward(x, params))
    assert jnp.allclose(out_fast, ref, atol=1e-5, rtol=1e-5)

    # Larger batch: multi-step grid (2 steps) + multi-chunk inner loop (4 chunks).
    xb = jax.random.normal(jax.random.PRNGKey(1), (4096, state_size), jnp.float32)
    outb = jax.block_until_ready(fcnn_forward(xb, params))
    assert outb.shape == (4096, 1)
    assert jnp.allclose(outb, _fcnn_dense(xb, params), atol=1e-5, rtol=1e-5)

    # Non-multiple-of-512 batch: exercises tail padding + 3-step grid.
    xc = jax.random.normal(jax.random.PRNGKey(2), (1300, state_size), jnp.float32)
    outc = jax.block_until_ready(fcnn_forward(xc, params))
    assert outc.shape == (1300, 1)
    assert jnp.allclose(outc, _fcnn_dense(xc, params), atol=1e-5, rtol=1e-5)

    print("KERNEL_OK")
</pallas_src>

<mosaic_0001>
module attributes {stable_mosaic.version = 11 : i64} {
  func.func @fcnn_kernel(%arg0: i32, %arg1: memref<512x4xf32, #tpu.memory_space<vmem>>, %arg2: memref<16x4xf32, #tpu.memory_space<vmem>>, %arg3: memref<16x1xf32, #tpu.memory_space<vmem>>, %arg4: memref<32x16xf32, #tpu.memory_space<vmem>>, %arg5: memref<32x1xf32, #tpu.memory_space<vmem>>, %arg6: memref<1x32xf32, #tpu.memory_space<vmem>>, %arg7: memref<1x1xf32, #tpu.memory_space<vmem>>, %arg8: memref<1x512xf32, #tpu.memory_space<vmem>>) attributes {dimension_semantics = [#tpu.dimension_semantics<parallel>], iteration_bounds = array<i64: 1>, scalar_prefetch = 0 : i64, scratch_operands = 0 : i64, tpu.core_type = #tpu.core_type<tc>, window_params = [{transform_indices = @transform_0, window_bounds = array<i64: 512, 4>}, {pipeline_mode = #tpu.pipeline_mode<synchronous>, transform_indices = @transform_1, window_bounds = array<i64: 16, 4>}, {pipeline_mode = #tpu.pipeline_mode<synchronous>, transform_indices = @transform_2, window_bounds = array<i64: 16, 1>}, {pipeline_mode = #tpu.pipeline_mode<synchronous>, transform_indices = @transform_3, window_bounds = array<i64: 32, 16>}, {pipeline_mode = #tpu.pipeline_mode<synchronous>, transform_indices = @transform_4, window_bounds = array<i64: 32, 1>}, {pipeline_mode = #tpu.pipeline_mode<synchronous>, transform_indices = @transform_5, window_bounds = array<i64: 1, 32>}, {pipeline_mode = #tpu.pipeline_mode<synchronous>, transform_indices = @transform_6, window_bounds = array<i64: 1, 1>}, {transform_indices = @transform_7, window_bounds = array<i64: 1, 512>}]} {
    %c0 = arith.constant 0 : index
    %c0_0 = arith.constant 0 : index
    %0 = vector.load %arg2[%c0, %c0_0] : memref<16x4xf32, #tpu.memory_space<vmem>>, vector<16x4xf32>
    %c0_1 = arith.constant 0 : index
    %c0_2 = arith.constant 0 : index
    %1 = vector.load %arg3[%c0_1, %c0_2] : memref<16x1xf32, #tpu.memory_space<vmem>>, vector<16x1xf32>
    %c0_3 = arith.constant 0 : index
    %c0_4 = arith.constant 0 : index
    %2 = vector.load %arg4[%c0_3, %c0_4] : memref<32x16xf32, #tpu.memory_space<vmem>>, vector<32x16xf32>
    %c0_5 = arith.constant 0 : index
    %c0_6 = arith.constant 0 : index
    %3 = vector.load %arg5[%c0_5, %c0_6] : memref<32x1xf32, #tpu.memory_space<vmem>>, vector<32x1xf32>
    %c0_7 = arith.constant 0 : index
    %c0_8 = arith.constant 0 : index
    %4 = vector.load %arg6[%c0_7, %c0_8] : memref<1x32xf32, #tpu.memory_space<vmem>>, vector<1x32xf32>
    %c0_9 = arith.constant 0 : index
    %c0_10 = arith.constant 0 : index
    %5 = vector.load %arg7[%c0_9, %c0_10] : memref<1x1xf32, #tpu.memory_space<vmem>>, vector<1x1xf32>
    %c0_i32 = arith.constant 0 : i32
    %c512_i32 = arith.constant 512 : i32
    %6 = arith.muli %c0_i32, %c512_i32 : i32
    %7 = tpu.assume_multiple %6, 512 : i32
    %8 = arith.index_cast %7 : i32 to index
    %c0_11 = arith.constant 0 : index
    %9 = vector.load %arg1[%8, %c0_11] : memref<512x4xf32, #tpu.memory_space<vmem>>, vector<512x4xf32>
    %cst = arith.constant dense<0.000000e+00> : vector<16x512xf32>
    %10 = tpu.matmul %0, %9, %cst {dimension_numbers = #tpu.dot_dimension_numbers<[1], [1], [0], [0], [0, 0, 1, 0], [], []>, precision = #tpu.contract_precision<fp32>} : vector<16x4xf32>, vector<512x4xf32>, vector<16x512xf32> -> vector<16x512xf32>
    %11 = vector.broadcast %1 : vector<16x1xf32> to vector<16x512xf32>
    %12 = arith.addf %10, %11 : vector<16x512xf32>
    %cst_12 = arith.constant 0.000000e+00 : f32
    %13 = vector.broadcast %cst_12 : f32 to vector<16x512xf32>
    %14 = arith.maximumf %12, %13 : vector<16x512xf32>
    %cst_13 = arith.constant dense<0.000000e+00> : vector<32x512xf32>
    %15 = tpu.matmul %2, %14, %cst_13 {dimension_numbers = #tpu.dot_dimension_numbers<[1], [0], [0], [1], [0, 0, 1, 1], [], []>, precision = #tpu.contract_precision<fp32>} : vector<32x16xf32>, vector<16x512xf32>, vector<32x512xf32> -> vector<32x512xf32>
    %16 = vector.broadcast %3 : vector<32x1xf32> to vector<32x512xf32>
    %17 = arith.addf %15, %16 : vector<32x512xf32>
    %cst_14 = arith.constant 0.000000e+00 : f32
    %18 = vector.broadcast %cst_14 : f32 to vector<32x512xf32>
    %19 = arith.maximumf %17, %18 : vector<32x512xf32>
    %cst_15 = arith.constant dense<0.000000e+00> : vector<1x512xf32>
    %20 = tpu.matmul %4, %19, %cst_15 {dimension_numbers = #tpu.dot_dimension_numbers<[1], [0], [0], [1], [0, 0, 1, 1], [], []>, precision = #tpu.contract_precision<fp32>} : vector<1x32xf32>, vector<32x512xf32>, vector<1x512xf32> -> vector<1x512xf32>
    %21 = vector.broadcast %5 : vector<1x1xf32> to vector<1x512xf32>
    %22 = arith.addf %20, %21 : vector<1x512xf32>
    %c0_16 = arith.constant 0 : index
    %23 = arith.index_cast %7 : i32 to index
    %24 = vector.load %arg8[%c0_16, %23] : memref<1x512xf32, #tpu.memory_space<vmem>>, vector<1x512xf32>
    tpu.vector_store %arg8[%c0_16, %23], %22 {strides = array<i32>} : memref<1x512xf32, #tpu.memory_space<vmem>>, vector<1x512xf32>,
    %c1_i32 = arith.constant 1 : i32
    return
  }
  func.func @transform_0(%arg0: i32) -> (i32, i32) {
    %c0_i32 = arith.constant 0 : i32
    %c0_i32_0 = arith.constant 0 : i32
    return %arg0, %c0_i32 : i32, i32
  }
  func.func @transform_1(%arg0: i32) -> (i32, i32) {
    %c0_i32 = arith.constant 0 : i32
    %c0_i32_0 = arith.constant 0 : i32
    %c0_i32_1 = arith.constant 0 : i32
    return %c0_i32, %c0_i32_0 : i32, i32
  }
  func.func @transform_2(%arg0: i32) -> (i32, i32) {
    %c0_i32 = arith.constant 0 : i32
    %c0_i32_0 = arith.constant 0 : i32
    %c0_i32_1 = arith.constant 0 : i32
    return %c0_i32, %c0_i32_0 : i32, i32
  }
  func.func @transform_3(%arg0: i32) -> (i32, i32) {
    %c0_i32 = arith.constant 0 : i32
    %c0_i32_0 = arith.constant 0 : i32
    %c0_i32_1 = arith.constant 0 : i32
    return %c0_i32, %c0_i32_0 : i32, i32
  }
  func.func @transform_4(%arg0: i32) -> (i32, i32) {
    %c0_i32 = arith.constant 0 : i32
    %c0_i32_0 = arith.constant 0 : i32
    %c0_i32_1 = arith.constant 0 : i32
    return %c0_i32, %c0_i32_0 : i32, i32
  }
  func.func @transform_5(%arg0: i32) -> (i32, i32) {
    %c0_i32 = arith.constant 0 : i32
    %c0_i32_0 = arith.constant 0 : i32
    %c0_i32_1 = arith.constant 0 : i32
    return %c0_i32, %c0_i32_0 : i32, i32
  }
  func.func @transform_6(%arg0: i32) -> (i32, i32) {
    %c0_i32 = arith.constant 0 : i32
    %c0_i32_0 = arith.constant 0 : i32
    %c0_i32_1 = arith.constant 0 : i32
    return %c0_i32, %c0_i32_0 : i32, i32
  }
  func.func @transform_7(%arg0: i32) -> (i32, i32) {
    %c0_i32 = arith.constant 0 : i32
    %c0_i32_0 = arith.constant 0 : i32
    return %c0_i32, %arg0 : i32, i32
  }
}

</mosaic_0001>

<llo_original>
// kernel: fcnn_forward.1
$region0: #{fcnn_forward.1}
  #allocation0 [shape = 'u32[]', space=smem, size = 0x4, offset = 0x4, fixed_abs, tag = 'smem constant byte address 0x4 - core index']
  #allocation1 [shape = 'u32[144,128]{1,0:T(1,128)}', space=vmem, size = 0x12000, scoped, tag = 'internal scratch']
  #allocation2 [shape = 'f32[1,1]{1,0:T(1,128)S(1)}', space=vmem, size = 0x200, scoped, tag = 'scoped memory for fcnn_forward.1']
  %s0 = inlined_call_operand.vmem [shape: f32[512,4], index: 0, kind: input, shape index: {}]
  %s1 = inlined_call_operand.vmem [shape: f32[16,4], index: 1, kind: input, shape index: {}]
  %s2 = inlined_call_operand.vmem [shape: f32[16,1], index: 2, kind: input, shape index: {}]
  %s3 = inlined_call_operand.vmem [shape: f32[32,16], index: 3, kind: input, shape index: {}]
  %s4 = inlined_call_operand.vmem [shape: f32[32,1], index: 4, kind: input, shape index: {}]
  %s5 = inlined_call_operand.vmem [shape: f32[1,32], index: 5, kind: input, shape index: {}]
  %s6 = inlined_call_operand.<no memory space> [shape: f32[1,1], index: 6, kind: input, shape index: {}]
  %s7 = inlined_call_operand.vmem [shape: f32[1,512], index: 7, kind: output, shape index: {}]
  %s8 = sld [smem:[#allocation0]]
  $region38: #{fcnn_forward.1} parent=0
    _
  %s10 = ssub.s32 1, %s8
  %s11 = scalar_select 0, %s10, %s8
  %v12 = vstv %s6
  %13 = vst [vmem:[#allocation2] sm:$0x1] %v12
  // Predicated region
  $region2: #{fcnn_forward.1} parent=0 // pred_check
    _
  $region3: #{fcnn_forward.1} parent=0 // pred_check_branch
    %15 = sbr.rel (0) target = $region5
  $region4: #{fcnn_forward.1} parent=0 // pred_region
    _
  $region5: #{fcnn_forward.1} parent=0 // pred_fallthru
    _
  // Predicated region
  $region6: #{fcnn_forward.1} parent=0 // pred_check
    _
  $region7: #{fcnn_forward.1} parent=0 // pred_check_branch
    %17 = sbr.rel (0) target = $region9
  $region8: #{fcnn_forward.1} parent=0 // pred_region
    _
  $region9: #{fcnn_forward.1} parent=0 // pred_fallthru
    _
  // Predicated region
  $region10: #{fcnn_forward.1} parent=0 // pred_check
    _
  $region11: #{fcnn_forward.1} parent=0 // pred_check_branch
    %19 = sbr.rel (0) target = $region13
  $region12: #{fcnn_forward.1} parent=0 // pred_region
    _
  $region13: #{fcnn_forward.1} parent=0 // pred_fallthru
    _
  // Predicated region
  $region14: #{fcnn_forward.1} parent=0 // pred_check
    _
  $region15: #{fcnn_forward.1} parent=0 // pred_check_branch
    %21 = sbr.rel (0) target = $region17
  $region16: #{fcnn_forward.1} parent=0 // pred_region
    _
  $region17: #{fcnn_forward.1} parent=0 // pred_fallthru
    _
  // Predicated region
  $region18: #{fcnn_forward.1} parent=0 // pred_check
    _
  $region19: #{fcnn_forward.1} parent=0 // pred_check_branch
    %23 = sbr.rel (0) target = $region21
  $region20: #{fcnn_forward.1} parent=0 // pred_region
    _
  $region21: #{fcnn_forward.1} parent=0 // pred_fallthru
    _
  // Predicated region
  $region22: #{fcnn_forward.1} parent=0 // pred_check
    _
  $region23: #{fcnn_forward.1} parent=0 // pred_check_branch
    %25 = sbr.rel (0) target = $region25
  $region24: #{fcnn_forward.1} parent=0 // pred_region
    _
  $region25: #{fcnn_forward.1} parent=0 // pred_fallthru
    _
  // Predicated region
  $region26: #{fcnn_forward.1} parent=0 // pred_check
    _
  $region27: #{fcnn_forward.1} parent=0 // pred_check_branch
    %27 = sbr.rel (0) target = $region29
  $region28: #{fcnn_forward.1} parent=0 // pred_region
    _
  $region29: #{fcnn_forward.1} parent=0 // pred_fallthru
    _
  %v28 = vld [vmem:[%s1] sm:$0xff]
  %v29 = vld [vmem:[%s1 + $0x8] sm:$0xff]
  %v30 = vld [vmem:[%s2] sm:$0xff]
  %v31 = vld [vmem:[%s2 + $0x8] sm:$0xff]
  %v32 = vld [vmem:[%s3] sm:$0xff]
  %v33 = vld [vmem:[%s3 + $0x8] sm:$0xff]
  %v34 = vld [vmem:[%s3 + $0x10] sm:$0xff]
  %v35 = vld [vmem:[%s3 + $0x18] sm:$0xff]
  %v36 = vld [vmem:[%s4] sm:$0xff]
  %v37 = vld [vmem:[%s4 + $0x8] sm:$0xff]
  %v38 = vld [vmem:[%s4 + $0x10] sm:$0xff]
  %v39 = vld [vmem:[%s4 + $0x18] sm:$0xff]
  %v40 = vld [vmem:[%s5] sm:$0x1]
  %v41 = vld [vmem:[#allocation2] sm:$0x1]
  %v42 = vld [vmem:[%s0] sm:$0xff]
  %v43 = vld [vmem:[%s0 + $0x8] sm:$0xff]
  %v44 = vld [vmem:[%s0 + $0x10] sm:$0xff]
  %v45 = vld [vmem:[%s0 + $0x18] sm:$0xff]
  %v46 = vld [vmem:[%s0 + $0x20] sm:$0xff]
  %v47 = vld [vmem:[%s0 + $0x28] sm:$0xff]
  %v48 = vld [vmem:[%s0 + $0x30] sm:$0xff]
  %v49 = vld [vmem:[%s0 + $0x38] sm:$0xff]
  %v50 = vld [vmem:[%s0 + $0x40] sm:$0xff]
  %v51 = vld [vmem:[%s0 + $0x48] sm:$0xff]
  %v52 = vld [vmem:[%s0 + $0x50] sm:$0xff]
  %v53 = vld [vmem:[%s0 + $0x58] sm:$0xff]
  %v54 = vld [vmem:[%s0 + $0x60] sm:$0xff]
  %v55 = vld [vmem:[%s0 + $0x68] sm:$0xff]
  %v56 = vld [vmem:[%s0 + $0x70] sm:$0xff]
  %v57 = vld [vmem:[%s0 + $0x78] sm:$0xff]
  %v58 = vld [vmem:[%s0 + $0x80] sm:$0xff]
  %v59 = vld [vmem:[%s0 + $0x88] sm:$0xff]
  %v60 = vld [vmem:[%s0 + $0x90] sm:$0xff]
  %v61 = vld [vmem:[%s0 + $0x98] sm:$0xff]
  %v62 = vld [vmem:[%s0 + $0xa0] sm:$0xff]
  %v63 = vld [vmem:[%s0 + $0xa8] sm:$0xff]
  %v64 = vld [vmem:[%s0 + $0xb0] sm:$0xff]
  %v65 = vld [vmem:[%s0 + $0xb8] sm:$0xff]
  %v66 = vld [vmem:[%s0 + $0xc0] sm:$0xff]
  %v67 = vld [vmem:[%s0 + $0xc8] sm:$0xff]
  %v68 = vld [vmem:[%s0 + $0xd0] sm:$0xff]
  %v69 = vld [vmem:[%s0 + $0xd8] sm:$0xff]
  %v70 = vld [vmem:[%s0 + $0xe0] sm:$0xff]
  %v71 = vld [vmem:[%s0 + $0xe8] sm:$0xff]
  %v72 = vld [vmem:[%s0 + $0xf0] sm:$0xff]
  %v73 = vld [vmem:[%s0 + $0xf8] sm:$0xff]
  %v74 = vld [vmem:[%s0 + $0x100] sm:$0xff]
  %v75 = vld [vmem:[%s0 + $0x108] sm:$0xff]
  %v76 = vld [vmem:[%s0 + $0x110] sm:$0xff]
  %v77 = vld [vmem:[%s0 + $0x118] sm:$0xff]
  %v78 = vld [vmem:[%s0 + $0x120] sm:$0xff]
  %v79 = vld [vmem:[%s0 + $0x128] sm:$0xff]
  %v80 = vld [vmem:[%s0 + $0x130] sm:$0xff]
  %v81 = vld [vmem:[%s0 + $0x138] sm:$0xff]
  %v82 = vld [vmem:[%s0 + $0x140] sm:$0xff]
  %v83 = vld [vmem:[%s0 + $0x148] sm:$0xff]
  %v84 = vld [vmem:[%s0 + $0x150] sm:$0xff]
  %v85 = vld [vmem:[%s0 + $0x158] sm:$0xff]
  %v86 = vld [vmem:[%s0 + $0x160] sm:$0xff]
  %v87 = vld [vmem:[%s0 + $0x168] sm:$0xff]
  %v88 = vld [vmem:[%s0 + $0x170] sm:$0xff]
  %v89 = vld [vmem:[%s0 + $0x178] sm:$0xff]
  %v90 = vld [vmem:[%s0 + $0x180] sm:$0xff]
  %v91 = vld [vmem:[%s0 + $0x188] sm:$0xff]
  %v92 = vld [vmem:[%s0 + $0x190] sm:$0xff]
  %v93 = vld [vmem:[%s0 + $0x198] sm:$0xff]
  %v94 = vld [vmem:[%s0 + $0x1a0] sm:$0xff]
  %v95 = vld [vmem:[%s0 + $0x1a8] sm:$0xff]
  %v96 = vld [vmem:[%s0 + $0x1b0] sm:$0xff]
  %v97 = vld [vmem:[%s0 + $0x1b8] sm:$0xff]
  %v98 = vld [vmem:[%s0 + $0x1c0] sm:$0xff]
  %v99 = vld [vmem:[%s0 + $0x1c8] sm:$0xff]
  %v100 = vld [vmem:[%s0 + $0x1d0] sm:$0xff]
  %v101 = vld [vmem:[%s0 + $0x1d8] sm:$0xff]
  %v102 = vld [vmem:[%s0 + $0x1e0] sm:$0xff]
  %v103 = vld [vmem:[%s0 + $0x1e8] sm:$0xff]
  %v104 = vld [vmem:[%s0 + $0x1f0] sm:$0xff]
  %v105 = vld [vmem:[%s0 + $0x1f8] sm:$0xff]
  %107 = vset.pattern.permute.xlu0 0
  %108 = vperm.xlu0 %107, %v30
  %v109 = vpop.permute.xlu0 %108
  %112 = vset.pattern.permute.xlu0 0
  %113 = vperm.xlu0 %112, %v31
  %v114 = vpop.permute.xlu0 %113
  %vm116 = vcmask 31744
  %v118 = vsel %vm116, %v28, 0
  %v121 = vsel %vm116, %v29, 0
  %v124 = vsel %vm116, %v42, 0
  %v127 = vsel %vm116, %v43, 0
  %v130 = vsel %vm116, %v44, 0
  %v133 = vsel %vm116, %v45, 0
  %v136 = vsel %vm116, %v46, 0
  %v139 = vsel %vm116, %v47, 0
  %v142 = vsel %vm116, %v48, 0
  %v145 = vsel %vm116, %v49, 0
  %v148 = vsel %vm116, %v50, 0
  %v151 = vsel %vm116, %v51, 0
  %v154 = vsel %vm116, %v52, 0
  %v157 = vsel %vm116, %v53, 0
  %v160 = vsel %vm116, %v54, 0
  %v163 = vsel %vm116, %v55, 0
  %v166 = vsel %vm116, %v56, 0
  %v169 = vsel %vm116, %v57, 0
  %v172 = vsel %vm116, %v58, 0
  %v175 = vsel %vm116, %v59, 0
  %v178 = vsel %vm116, %v60, 0
  %v181 = vsel %vm116, %v61, 0
  %v184 = vsel %vm116, %v62, 0
  %v187 = vsel %vm116, %v63, 0
  %v190 = vsel %vm116, %v64, 0
  %v193 = vsel %vm116, %v65, 0
  %v196 = vsel %vm116, %v66, 0
  %v199 = vsel %vm116, %v67, 0
  %v202 = vsel %vm116, %v68, 0
  %v205 = vsel %vm116, %v69, 0
  %v208 = vsel %vm116, %v70, 0
  %v211 = vsel %vm116, %v71, 0
  %v214 = vsel %vm116, %v72, 0
  %v217 = vsel %vm116, %v73, 0
  %v220 = vsel %vm116, %v74, 0
  %v223 = vsel %vm116, %v75, 0
  %v226 = vsel %vm116, %v76, 0
  %v229 = vsel %vm116, %v77, 0
  %v232 = vsel %vm116, %v78, 0
  %v235 = vsel %vm116, %v79, 0
  %v238 = vsel %vm116, %v80, 0
  %v241 = vsel %vm116, %v81, 0
  %v244 = vsel %vm116, %v82, 0
  %v247 = vsel %vm116, %v83, 0
  %v250 = vsel %vm116, %v84, 0
  %v253 = vsel %vm116, %v85, 0
  %v256 = vsel %vm116, %v86, 0
  %v259 = vsel %vm116, %v87, 0
  %v262 = vsel %vm116, %v88, 0
  %v265 = vsel %vm116, %v89, 0
  %v268 = vsel %vm116, %v90, 0
  %v271 = vsel %vm116, %v91, 0
  %v274 = vsel %vm116, %v92, 0
  %v277 = vsel %vm116, %v93, 0
  %v280 = vsel %vm116, %v94, 0
  %v283 = vsel %vm116, %v95, 0
  %v286 = vsel %vm116, %v96, 0
  %v289 = vsel %vm116, %v97, 0
  %v292 = vsel %vm116, %v98, 0
  %v295 = vsel %vm116, %v99, 0
  %v298 = vsel %vm116, %v100, 0
  %v301 = vsel %vm116, %v101, 0
  %v304 = vsel %vm116, %v102, 0
  %v307 = vsel %vm116, %v103, 0
  %v310 = vsel %vm116, %v104, 0
  %v313 = vsel %vm116, %v105, 0
  %315 = vmatprep.subr.mxu0 0.0
  %v316 = vand.u32 %v169, 4294901760
  %317 = vmatpush1.xpose.msra.mxu0 %v316
  %318 = vmatprep.subr.mxu0 0.0
  %v319 = vand.u32 %v166, 4294901760
  %320 = vmatpush1.xpose.msra.mxu0 %v319
  %321 = vmatprep.subr.mxu0 0.0
  %v322 = vand.u32 %v163, 4294901760
  %323 = vmatpush1.xpose.msra.mxu0 %v322
  %324 = vmatprep.subr.mxu0 0.0
  %v325 = vand.u32 %v160, 4294901760
  %326 = vmatpush1.xpose.msra.mxu0 %v325
  %327 = vmatprep.subr.mxu0 0.0
  %v328 = vand.u32 %v157, 4294901760
  %329 = vmatpush1.xpose.msra.mxu0 %v328
  %330 = vmatprep.subr.mxu0 0.0
  %v331 = vand.u32 %v154, 4294901760
  %332 = vmatpush1.xpose.msra.mxu0 %v331
  %333 = vmatprep.subr.mxu0 0.0
  %v334 = vand.u32 %v151, 4294901760
  %335 = vmatpush1.xpose.msra.mxu0 %v334
  %336 = vmatprep.subr.mxu0 0.0
  %v337 = vand.u32 %v148, 4294901760
  %338 = vmatpush1.xpose.msra.mxu0 %v337
  %339 = vmatprep.subr.mxu0 0.0
  %v340 = vand.u32 %v145, 4294901760
  %341 = vmatpush1.xpose.msra.mxu0 %v340
  %342 = vmatprep.subr.mxu0 0.0
  %v343 = vand.u32 %v142, 4294901760
  %344 = vmatpush1.xpose.msra.mxu0 %v343
  %345 = vmatprep.subr.mxu0 0.0
  %v346 = vand.u32 %v139, 4294901760
  %347 = vmatpush1.xpose.msra.mxu0 %v346
  %348 = vmatprep.subr.mxu0 0.0
  %v349 = vand.u32 %v136, 4294901760
  %350 = vmatpush1.xpose.msra.mxu0 %v349
  %351 = vmatprep.subr.mxu0 0.0
  %v352 = vand.u32 %v133, 4294901760
  %353 = vmatpush1.xpose.msra.mxu0 %v352
  %354 = vmatprep.subr.mxu0 0.0
  %v355 = vand.u32 %v130, 4294901760
  %356 = vmatpush1.xpose.msra.mxu0 %v355
  %357 = vmatprep.subr.mxu0 0.0
  %v358 = vand.u32 %v127, 4294901760
  %359 = vmatpush1.xpose.msra.mxu0 %v358
  %360 = vmatprep.subr.mxu0 0.0
  %v361 = vand.u32 %v124, 4294901760
  %362 = vmatpush1.xpose.msra.mxu0 %v361
  %363 = vmatprep.subr.mxu0 0.0
  %v364 = vand.u32 %v217, 4294901760
  %365 = vmatpush2.xpose.msra.mxu0 %v364
  %366 = vmatprep.subr.mxu0 0.0
  %v367 = vand.u32 %v214, 4294901760
  %368 = vmatpush2.xpose.msra.mxu0 %v367
  %369 = vmatprep.subr.mxu0 0.0
  %v370 = vand.u32 %v211, 4294901760
  %371 = vmatpush2.xpose.msra.mxu0 %v370
  %372 = vmatprep.subr.mxu0 0.0
  %v373 = vand.u32 %v208, 4294901760
  %374 = vmatpush2.xpose.msra.mxu0 %v373
  %375 = vmatprep.subr.mxu0 0.0
  %v376 = vand.u32 %v205, 4294901760
  %377 = vmatpush2.xpose.msra.mxu0 %v376
  %378 = vmatprep.subr.mxu0 0.0
  %v379 = vand.u32 %v202, 4294901760
  %380 = vmatpush2.xpose.msra.mxu0 %v379
  %381 = vmatprep.subr.mxu0 0.0
  %v382 = vand.u32 %v199, 4294901760
  %383 = vmatpush2.xpose.msra.mxu0 %v382
  %384 = vmatprep.subr.mxu0 0.0
  %v385 = vand.u32 %v196, 4294901760
  %386 = vmatpush2.xpose.msra.mxu0 %v385
  %387 = vmatprep.subr.mxu0 0.0
  %v388 = vand.u32 %v193, 4294901760
  %389 = vmatpush2.xpose.msra.mxu0 %v388
  %390 = vmatprep.subr.mxu0 0.0
  %v391 = vand.u32 %v190, 4294901760
  %392 = vmatpush2.xpose.msra.mxu0 %v391
  %393 = vmatprep.subr.mxu0 0.0
  %v394 = vand.u32 %v187, 4294901760
  %395 = vmatpush2.xpose.msra.mxu0 %v394
  %396 = vmatprep.subr.mxu0 0.0
  %v397 = vand.u32 %v184, 4294901760
  %398 = vmatpush2.xpose.msra.mxu0 %v397
  %399 = vmatprep.subr.mxu0 0.0
  %v400 = vand.u32 %v181, 4294901760
  %401 = vmatpush2.xpose.msra.mxu0 %v400
  %402 = vmatprep.subr.mxu0 0.0
  %v403 = vand.u32 %v178, 4294901760
  %404 = vmatpush2.xpose.msra.mxu0 %v403
  %405 = vmatprep.subr.mxu0 0.0
  %v406 = vand.u32 %v175, 4294901760
  %407 = vmatpush2.xpose.msra.mxu0 %v406
  %408 = vmatprep.subr.mxu0 0.0
  %v409 = vand.u32 %v172, 4294901760
  %410 = vmatpush2.xpose.msra.mxu0 %v409
  %411 = vmatprep.mubr.f32.mxu0 0.0
  %v412 = vand.u32 %v118, 4294901760
  %v413 = vsub.f32 %v118, %v412
  %v414 = vand.u32 %v413, 4294901760
  %v415 = vsub.f32 %v413, %v414
  %v416 = vand.u32 %v415, 4294901760
  %417 = vmatmul.mubr.f32.gmra.mxu0 %v416
  %v418 = vpop.f32.mrf.mxu0
  %v419 = vadd.f32 %v109, %v418
  %v420 = vpop.f32.mrf.mxu0
  %v421 = vadd.f32 %v109, %v420
  %422 = vmatprep.mubr.f32.mxu0 0.0
  %v423 = vand.u32 %v121, 4294901760
  %v424 = vsub.f32 %v121, %v423
  %v425 = vand.u32 %v424, 4294901760
  %v426 = vsub.f32 %v424, %v425
  %v427 = vand.u32 %v426, 4294901760
  %428 = vmatmul.mubr.f32.gmra.mxu0 %v427
  %v429 = vpop.f32.mrf.mxu0
  %v430 = vadd.f32 %v114, %v429
  %v431 = vpop.f32.mrf.mxu0
  %v432 = vadd.f32 %v114, %v431
  %433 = vdwg.mxu0
  %434 = vmatprep.subr.mxu0 0.0
  %v435 = vand.u32 %v169, 4294901760
  %v436 = vsub.f32 %v169, %v435
  %v437 = vand.u32 %v436, 4294901760
  %v438 = vsub.f32 %v436, %v437
  %v439 = vand.u32 %v438, 4294901760
  %440 = vmatpush1.xpose.msra.mxu0 %v439
  %441 = vmatprep.subr.mxu0 0.0
  %v442 = vand.u32 %v166, 4294901760
  %v443 = vsub.f32 %v166, %v442
  %v444 = vand.u32 %v443, 4294901760
  %v445 = vsub.f32 %v443, %v444
  %v446 = vand.u32 %v445, 4294901760
  %447 = vmatpush1.xpose.msra.mxu0 %v446
  %448 = vmatprep.subr.mxu0 0.0
  %v449 = vand.u32 %v163, 4294901760
  %v450 = vsub.f32 %v163, %v449
  %v451 = vand.u32 %v450, 4294901760
  %v452 = vsub.f32 %v450, %v451
  %v453 = vand.u32 %v452, 4294901760
  %454 = vmatpush1.xpose.msra.mxu0 %v453
  %455 = vmatprep.subr.mxu0 0.0
  %v456 = vand.u32 %v160, 4294901760
  %v457 = vsub.f32 %v160, %v456
  %v458 = vand.u32 %v457, 4294901760
  %v459 = vsub.f32 %v457, %v458
  %v460 = vand.u32 %v459, 4294901760
  %461 = vmatpush1.xpose.msra.mxu0 %v460
  %462 = vmatprep.subr.mxu0 0.0
  %v463 = vand.u32 %v157, 4294901760
  %v464 = vsub.f32 %v157, %v463
  %v465 = vand.u32 %v464, 4294901760
  %v466 = vsub.f32 %v464, %v465
  %v467 = vand.u32 %v466, 4294901760
  %468 = vmatpush1.xpose.msra.mxu0 %v467
  %469 = vmatprep.subr.mxu0 0.0
  %v470 = vand.u32 %v154, 4294901760
  %v471 = vsub.f32 %v154, %v470
  %v472 = vand.u32 %v471, 4294901760
  %v473 = vsub.f32 %v471, %v472
  %v474 = vand.u32 %v473, 4294901760
  %475 = vmatpush1.xpose.msra.mxu0 %v474
  %476 = vmatprep.subr.mxu0 0.0
  %v477 = vand.u32 %v151, 4294901760
  %v478 = vsub.f32 %v151, %v477
  %v479 = vand.u32 %v478, 4294901760
  %v480 = vsub.f32 %v478, %v479
  %v481 = vand.u32 %v480, 4294901760
  %482 = vmatpush1.xpose.msra.mxu0 %v481
  %483 = vmatprep.subr.mxu0 0.0
  %v484 = vand.u32 %v148, 4294901760
  %v485 = vsub.f32 %v148, %v484
  %v486 = vand.u32 %v485, 4294901760
  %v487 = vsub.f32 %v485, %v486
  %v488 = vand.u32 %v487, 4294901760
  %489 = vmatpush1.xpose.msra.mxu0 %v488
  %490 = vmatprep.subr.mxu0 0.0
  %v491 = vand.u32 %v145, 4294901760
  %v492 = vsub.f32 %v145, %v491
  %v493 = vand.u32 %v492, 4294901760
  %v494 = vsub.f32 %v492, %v493
  %v495 = vand.u32 %v494, 4294901760
  %496 = vmatpush1.xpose.msra.mxu0 %v495
  %497 = vmatprep.subr.mxu0 0.0
  %v498 = vand.u32 %v142, 4294901760
  %v499 = vsub.f32 %v142, %v498
  %v500 = vand.u32 %v499, 4294901760
  %v501 = vsub.f32 %v499, %v500
  %v502 = vand.u32 %v501, 4294901760
  %503 = vmatpush1.xpose.msra.mxu0 %v502
  %504 = vmatprep.subr.mxu0 0.0
  %v505 = vand.u32 %v139, 4294901760
  %v506 = vsub.f32 %v139, %v505
  %v507 = vand.u32 %v506, 4294901760
  %v508 = vsub.f32 %v506, %v507
  %v509 = vand.u32 %v508, 4294901760
  %510 = vmatpush1.xpose.msra.mxu0 %v509
  %511 = vmatprep.subr.mxu0 0.0
  %v512 = vand.u32 %v136, 4294901760
  %v513 = vsub.f32 %v136, %v512
  %v514 = vand.u32 %v513, 4294901760
  %v515 = vsub.f32 %v513, %v514
  %v516 = vand.u32 %v515, 4294901760
  %517 = vmatpush1.xpose.msra.mxu0 %v516
  %518 = vmatprep.subr.mxu0 0.0
  %v519 = vand.u32 %v133, 4294901760
  %v520 = vsub.f32 %v133, %v519
  %v521 = vand.u32 %v520, 4294901760
  %v522 = vsub.f32 %v520, %v521
  %v523 = vand.u32 %v522, 4294901760
  %524 = vmatpush1.xpose.msra.mxu0 %v523
  %525 = vmatprep.subr.mxu0 0.0
  %v526 = vand.u32 %v130, 4294901760
  %v527 = vsub.f32 %v130, %v526
  %v528 = vand.u32 %v527, 4294901760
  %v529 = vsub.f32 %v527, %v528
  %v530 = vand.u32 %v529, 4294901760
  %531 = vmatpush1.xpose.msra.mxu0 %v530
  %532 = vmatprep.subr.mxu0 0.0
  %v533 = vand.u32 %v127, 4294901760
  %v534 = vsub.f32 %v127, %v533
  %v535 = vand.u32 %v534, 4294901760
  %v536 = vsub.f32 %v534, %v535
  %v537 = vand.u32 %v536, 4294901760
  %538 = vmatpush1.xpose.msra.mxu0 %v537
  %539 = vmatprep.subr.mxu0 0.0
  %v540 = vand.u32 %v124, 4294901760
  %v541 = vsub.f32 %v124, %v540
  %v542 = vand.u32 %v541, 4294901760
  %v543 = vsub.f32 %v541, %v542
  %v544 = vand.u32 %v543, 4294901760
  %545 = vmatpush1.xpose.msra.mxu0 %v544
  %546 = vmatprep.subr.mxu0 0.0
  %v547 = vand.u32 %v217, 4294901760
  %v548 = vsub.f32 %v217, %v547
  %v549 = vand.u32 %v548, 4294901760
  %v550 = vsub.f32 %v548, %v549
  %v551 = vand.u32 %v550, 4294901760
  %552 = vmatpush2.xpose.msra.mxu0 %v551
  %553 = vmatprep.subr.mxu0 0.0
  %v554 = vand.u32 %v214, 4294901760
  %v555 = vsub.f32 %v214, %v554
  %v556 = vand.u32 %v555, 4294901760
  %v557 = vsub.f32 %v555, %v556
  %v558 = vand.u32 %v557, 4294901760
  %559 = vmatpush2.xpose.msra.mxu0 %v558
  %560 = vmatprep.subr.mxu0 0.0
  %v561 = vand.u32 %v211, 4294901760
  %v562 = vsub.f32 %v211, %v561
  %v563 = vand.u32 %v562, 4294901760
  %v564 = vsub.f32 %v562, %v563
  %v565 = vand.u32 %v564, 4294901760
  %566 = vmatpush2.xpose.msra.mxu0 %v565
  %567 = vmatprep.subr.mxu0 0.0
  %v568 = vand.u32 %v208, 4294901760
  %v569 = vsub.f32 %v208, %v568
  %v570 = vand.u32 %v569, 4294901760
  %v571 = vsub.f32 %v569, %v570
  %v572 = vand.u32 %v571, 4294901760
  %573 = vmatpush2.xpose.msra.mxu0 %v572
  %574 = vmatprep.subr.mxu0 0.0
  %v575 = vand.u32 %v205, 4294901760
  %v576 = vsub.f32 %v205, %v575
  %v577 = vand.u32 %v576, 4294901760
  %v578 = vsub.f32 %v576, %v577
  %v579 = vand.u32 %v578, 4294901760
  %580 = vmatpush2.xpose.msra.mxu0 %v579
  %581 = vmatprep.subr.mxu0 0.0
  %v582 = vand.u32 %v202, 4294901760
  %v583 = vsub.f32 %v202, %v582
  %v584 = vand.u32 %v583, 4294901760
  %v585 = vsub.f32 %v583, %v584
  %v586 = vand.u32 %v585, 4294901760
  %587 = vmatpush2.xpose.msra.mxu0 %v586
  %588 = vmatprep.subr.mxu0 0.0
  %v589 = vand.u32 %v199, 4294901760
  %v590 = vsub.f32 %v199, %v589
  %v591 = vand.u32 %v590, 4294901760
  %v592 = vsub.f32 %v590, %v591
  %v593 = vand.u32 %v592, 4294901760
  %594 = vmatpush2.xpose.msra.mxu0 %v593
  %595 = vmatprep.subr.mxu0 0.0
  %v596 = vand.u32 %v196, 4294901760
  %v597 = vsub.f32 %v196, %v596
  %v598 = vand.u32 %v597, 4294901760
  %v599 = vsub.f32 %v597, %v598
  %v600 = vand.u32 %v599, 4294901760
  %601 = vmatpush2.xpose.msra.mxu0 %v600
  %602 = vmatprep.subr.mxu0 0.0
  %v603 = vand.u32 %v193, 4294901760
  %v604 = vsub.f32 %v193, %v603
  %v605 = vand.u32 %v604, 4294901760
  %v606 = vsub.f32 %v604, %v605
  %v607 = vand.u32 %v606, 4294901760
  %608 = vmatpush2.xpose.msra.mxu0 %v607
  %609 = vmatprep.subr.mxu0 0.0
  %v610 = vand.u32 %v190, 4294901760
  %v611 = vsub.f32 %v190, %v610
  %v612 = vand.u32 %v611, 4294901760
  %v613 = vsub.f32 %v611, %v612
  %v614 = vand.u32 %v613, 4294901760
  %615 = vmatpush2.xpose.msra.mxu0 %v614
  %616 = vmatprep.subr.mxu0 0.0
  %v617 = vand.u32 %v187, 4294901760
  %v618 = vsub.f32 %v187, %v617
  %v619 = vand.u32 %v618, 4294901760
  %v620 = vsub.f32 %v618, %v619
  %v621 = vand.u32 %v620, 4294901760
  %622 = vmatpush2.xpose.msra.mxu0 %v621
  %623 = vmatprep.subr.mxu0 0.0
  %v624 = vand.u32 %v184, 4294901760
  %v625 = vsub.f32 %v184, %v624
  %v626 = vand.u32 %v625, 4294901760
  %v627 = vsub.f32 %v625, %v626
  %v628 = vand.u32 %v627, 4294901760
  %629 = vmatpush2.xpose.msra.mxu0 %v628
  %630 = vmatprep.subr.mxu0 0.0
  %v631 = vand.u32 %v181, 4294901760
  %v632 = vsub.f32 %v181, %v631
  %v633 = vand.u32 %v632, 4294901760
  %v634 = vsub.f32 %v632, %v633
  %v635 = vand.u32 %v634, 4294901760
  %636 = vmatpush2.xpose.msra.mxu0 %v635
  %637 = vmatprep.subr.mxu0 0.0
  %v638 = vand.u32 %v178, 4294901760
  %v639 = vsub.f32 %v178, %v638
  %v640 = vand.u32 %v639, 4294901760
  %v641 = vsub.f32 %v639, %v640
  %v642 = vand.u32 %v641, 4294901760
  %643 = vmatpush2.xpose.msra.mxu0 %v642
  %644 = vmatprep.subr.mxu0 0.0
  %v645 = vand.u32 %v175, 4294901760
  %v646 = vsub.f32 %v175, %v645
  %v647 = vand.u32 %v646, 4294901760
  %v648 = vsub.f32 %v646, %v647
  %v649 = vand.u32 %v648, 4294901760
  %650 = vmatpush2.xpose.msra.mxu0 %v649
  %651 = vmatprep.subr.mxu0 0.0
  %v652 = vand.u32 %v172, 4294901760
  %v653 = vsub.f32 %v172, %v652
  %v654 = vand.u32 %v653, 4294901760
  %v655 = vsub.f32 %v653, %v654
  %v656 = vand.u32 %v655, 4294901760
  %657 = vmatpush2.xpose.msra.mxu0 %v656
  %658 = vmatprep.mubr.f32.mxu0 0.0
  %v659 = vand.u32 %v118, 4294901760
  %660 = vmatmul.mubr.f32.gmra.mxu0 %v659
  %v661 = vpop.f32.mrf.mxu0
  %v662 = vadd.f32 %v419, %v661
  %v663 = vpop.f32.mrf.mxu0
  %v664 = vadd.f32 %v421, %v663
  %665 = vmatprep.mubr.f32.mxu0 0.0
  %v666 = vand.u32 %v121, 4294901760
  %667 = vmatmul.mubr.f32.gmra.mxu0 %v666
  %v668 = vpop.f32.mrf.mxu0
  %v669 = vadd.f32 %v430, %v668
  %v670 = vpop.f32.mrf.mxu0
  %v671 = vadd.f32 %v432, %v670
  %672 = vdwg.mxu0
  %673 = vmatprep.subr.mxu0 0.0
  %v674 = vand.u32 %v169, 4294901760
  %v675 = vsub.f32 %v169, %v674
  %676 = vmatpush1.xpose.msra.mxu0 %v675
  %677 = vmatprep.subr.mxu0 0.0
  %v678 = vand.u32 %v166, 4294901760
  %v679 = vsub.f32 %v166, %v678
  %680 = vmatpush1.xpose.msra.mxu0 %v679
  %681 = vmatprep.subr.mxu0 0.0
  %v682 = vand.u32 %v163, 4294901760
  %v683 = vsub.f32 %v163, %v682
  %684 = vmatpush1.xpose.msra.mxu0 %v683
  %685 = vmatprep.subr.mxu0 0.0
  %v686 = vand.u32 %v160, 4294901760
  %v687 = vsub.f32 %v160, %v686
  %688 = vmatpush1.xpose.msra.mxu0 %v687
  %689 = vmatprep.subr.mxu0 0.0
  %v690 = vand.u32 %v157, 4294901760
  %v691 = vsub.f32 %v157, %v690
  %692 = vmatpush1.xpose.msra.mxu0 %v691
  %693 = vmatprep.subr.mxu0 0.0
  %v694 = vand.u32 %v154, 4294901760
  %v695 = vsub.f32 %v154, %v694
  %696 = vmatpush1.xpose.msra.mxu0 %v695
  %697 = vmatprep.subr.mxu0 0.0
  %v698 = vand.u32 %v151, 4294901760
  %v699 = vsub.f32 %v151, %v698
  %700 = vmatpush1.xpose.msra.mxu0 %v699
  %701 = vmatprep.subr.mxu0 0.0
  %v702 = vand.u32 %v148, 4294901760
  %v703 = vsub.f32 %v148, %v702
  %704 = vmatpush1.xpose.msra.mxu0 %v703
  %705 = vmatprep.subr.mxu0 0.0
  %v706 = vand.u32 %v145, 4294901760
  %v707 = vsub.f32 %v145, %v706
  %708 = vmatpush1.xpose.msra.mxu0 %v707
  %709 = vmatprep.subr.mxu0 0.0
  %v710 = vand.u32 %v142, 4294901760
  %v711 = vsub.f32 %v142, %v710
  %712 = vmatpush1.xpose.msra.mxu0 %v711
  %713 = vmatprep.subr.mxu0 0.0
  %v714 = vand.u32 %v139, 4294901760
  %v715 = vsub.f32 %v139, %v714
  %716 = vmatpush1.xpose.msra.mxu0 %v715
  %717 = vmatprep.subr.mxu0 0.0
  %v718 = vand.u32 %v136, 4294901760
  %v719 = vsub.f32 %v136, %v718
  %720 = vmatpush1.xpose.msra.mxu0 %v719
  %721 = vmatprep.subr.mxu0 0.0
  %v722 = vand.u32 %v133, 4294901760
  %v723 = vsub.f32 %v133, %v722
  %724 = vmatpush1.xpose.msra.mxu0 %v723
  %725 = vmatprep.subr.mxu0 0.0
  %v726 = vand.u32 %v130, 4294901760
  %v727 = vsub.f32 %v130, %v726
  %728 = vmatpush1.xpose.msra.mxu0 %v727
  %729 = vmatprep.subr.mxu0 0.0
  %v730 = vand.u32 %v127, 4294901760
  %v731 = vsub.f32 %v127, %v730
  %732 = vmatpush1.xpose.msra.mxu0 %v731
  %733 = vmatprep.subr.mxu0 0.0
  %v734 = vand.u32 %v124, 4294901760
  %v735 = vsub.f32 %v124, %v734
  %736 = vmatpush1.xpose.msra.mxu0 %v735
  %737 = vmatprep.subr.mxu0 0.0
  %v738 = vand.u32 %v217, 4294901760
  %v739 = vsub.f32 %v217, %v738
  %740 = vmatpush2.xpose.msra.mxu0 %v739
  %741 = vmatprep.subr.mxu0 0.0
  %v742 = vand.u32 %v214, 4294901760
  %v743 = vsub.f32 %v214, %v742
  %744 = vmatpush2.xpose.msra.mxu0 %v743
  %745 = vmatprep.subr.mxu0 0.0
  %v746 = vand.u32 %v211, 4294901760
  %v747 = vsub.f32 %v211, %v746
  %748 = vmatpush2.xpose.msra.mxu0 %v747
  %749 = vmatprep.subr.mxu0 0.0
  %v750 = vand.u32 %v208, 4294901760
  %v751 = vsub.f32 %v208, %v750
  %752 = vmatpush2.xpose.msra.mxu0 %v751
  %753 = vmatprep.subr.mxu0 0.0
  %v754 = vand.u32 %v205, 4294901760
  %v755 = vsub.f32 %v205, %v754
  %756 = vmatpush2.xpose.msra.mxu0 %v755
  %757 = vmatprep.subr.mxu0 0.0
  %v758 = vand.u32 %v202, 4294901760
  %v759 = vsub.f32 %v202, %v758
  %760 = vmatpush2.xpose.msra.mxu0 %v759
  %761 = vmatprep.subr.mxu0 0.0
  %v762 = vand.u32 %v199, 4294901760
  %v763 = vsub.f32 %v199, %v762
  %764 = vmatpush2.xpose.msra.mxu0 %v763
  %765 = vmatprep.subr.mxu0 0.0
  %v766 = vand.u32 %v196, 4294901760
  %v767 = vsub.f32 %v196, %v766
  %768 = vmatpush2.xpose.msra.mxu0 %v767
  %769 = vmatprep.subr.mxu0 0.0
  %v770 = vand.u32 %v193, 4294901760
  %v771 = vsub.f32 %v193, %v770
  %772 = vmatpush2.xpose.msra.mxu0 %v771
  %773 = vmatprep.subr.mxu0 0.0
  %v774 = vand.u32 %v190, 4294901760
  %v775 = vsub.f32 %v190, %v774
  %776 = vmatpush2.xpose.msra.mxu0 %v775
  %777 = vmatprep.subr.mxu0 0.0
  %v778 = vand.u32 %v187, 4294901760
  %v779 = vsub.f32 %v187, %v778
  %780 = vmatpush2.xpose.msra.mxu0 %v779
  %781 = vmatprep.subr.mxu0 0.0
  %v782 = vand.u32 %v184, 4294901760
  %v783 = vsub.f32 %v184, %v782
  %784 = vmatpush2.xpose.msra.mxu0 %v783
  %785 = vmatprep.subr.mxu0 0.0
  %v786 = vand.u32 %v181, 4294901760
  %v787 = vsub.f32 %v181, %v786
  %788 = vmatpush2.xpose.msra.mxu0 %v787
  %789 = vmatprep.subr.mxu0 0.0
  %v790 = vand.u32 %v178, 4294901760
  %v791 = vsub.f32 %v178, %v790
  %792 = vmatpush2.xpose.msra.mxu0 %v791
  %793 = vmatprep.subr.mxu0 0.0
  %v794 = vand.u32 %v175, 4294901760
  %v795 = vsub.f32 %v175, %v794
  %796 = vmatpush2.xpose.msra.mxu0 %v795
  %797 = vmatprep.subr.mxu0 0.0
  %v798 = vand.u32 %v172, 4294901760
  %v799 = vsub.f32 %v172, %v798
  %800 = vmatpush2.xpose.msra.mxu0 %v799
  %801 = vmatprep.mubr.f32.mxu0 0.0
  %v802 = vand.u32 %v118, 4294901760
  %v803 = vsub.f32 %v118, %v802
  %804 = vmatmul.mubr.f32.gmra.mxu0 %v803
  %v805 = vpop.f32.mrf.mxu0
  %v806 = vadd.f32 %v662, %v805
  %v807 = vpop.f32.mrf.mxu0
  %v808 = vadd.f32 %v664, %v807
  %809 = vmatprep.mubr.f32.mxu0 0.0
  %v810 = vand.u32 %v121, 4294901760
  %v811 = vsub.f32 %v121, %v810
  %812 = vmatmul.mubr.f32.gmra.mxu0 %v811
  %v813 = vpop.f32.mrf.mxu0
  %v814 = vadd.f32 %v669, %v813
  %v815 = vpop.f32.mrf.mxu0
  %v816 = vadd.f32 %v671, %v815
  %817 = vdwg.mxu0
  %818 = vmatprep.subr.mxu0 0.0
  %v819 = vand.u32 %v169, 4294901760
  %820 = vmatpush1.xpose.msra.mxu0 %v819
  %821 = vmatprep.subr.mxu0 0.0
  %v822 = vand.u32 %v166, 4294901760
  %823 = vmatpush1.xpose.msra.mxu0 %v822
  %824 = vmatprep.subr.mxu0 0.0
  %v825 = vand.u32 %v163, 4294901760
  %826 = vmatpush1.xpose.msra.mxu0 %v825
  %827 = vmatprep.subr.mxu0 0.0
  %v828 = vand.u32 %v160, 4294901760
  %829 = vmatpush1.xpose.msra.mxu0 %v828
  %830 = vmatprep.subr.mxu0 0.0
  %v831 = vand.u32 %v157, 4294901760
  %832 = vmatpush1.xpose.msra.mxu0 %v831
  %833 = vmatprep.subr.mxu0 0.0
  %v834 = vand.u32 %v154, 4294901760
  %835 = vmatpush1.xpose.msra.mxu0 %v834
  %836 = vmatprep.subr.mxu0 0.0
  %v837 = vand.u32 %v151, 4294901760
  %838 = vmatpush1.xpose.msra.mxu0 %v837
  %839 = vmatprep.subr.mxu0 0.0
  %v840 = vand.u32 %v148, 4294901760
  %841 = vmatpush1.xpose.msra.mxu0 %v840
  %842 = vmatprep.subr.mxu0 0.0
  %v843 = vand.u32 %v145, 4294901760
  %844 = vmatpush1.xpose.msra.mxu0 %v843
  %845 = vmatprep.subr.mxu0 0.0
  %v846 = vand.u32 %v142, 4294901760
  %847 = vmatpush1.xpose.msra.mxu0 %v846
  %848 = vmatprep.subr.mxu0 0.0
  %v849 = vand.u32 %v139, 4294901760
  %850 = vmatpush1.xpose.msra.mxu0 %v849
  %851 = vmatprep.subr.mxu0 0.0
  %v852 = vand.u32 %v136, 4294901760
  %853 = vmatpush1.xpose.msra.mxu0 %v852
  %854 = vmatprep.subr.mxu0 0.0
  %v855 = vand.u32 %v133, 4294901760
  %856 = vmatpush1.xpose.msra.mxu0 %v855
  %857 = vmatprep.subr.mxu0 0.0
  %v858 = vand.u32 %v130, 4294901760
  %859 = vmatpush1.xpose.msra.mxu0 %v858
  %860 = vmatprep.subr.mxu0 0.0
  %v861 = vand.u32 %v127, 4294901760
  %862 = vmatpush1.xpose.msra.mxu0 %v861
  %863 = vmatprep.subr.mxu0 0.0
  %v864 = vand.u32 %v124, 4294901760
  %865 = vmatpush1.xpose.msra.mxu0 %v864
  %866 = vmatprep.subr.mxu0 0.0
  %v867 = vand.u32 %v217, 4294901760
  %868 = vmatpush2.xpose.msra.mxu0 %v867
  %869 = vmatprep.subr.mxu0 0.0
  %v870 = vand.u32 %v214, 4294901760
  %871 = vmatpush2.xpose.msra.mxu0 %v870
  %872 = vmatprep.subr.mxu0 0.0
  %v873 = vand.u32 %v211, 4294901760
  %874 = vmatpush2.xpose.msra.mxu0 %v873
  %875 = vmatprep.subr.mxu0 0.0
  %v876 = vand.u32 %v208, 4294901760
  %877 = vmatpush2.xpose.msra.mxu0 %v876
  %878 = vmatprep.subr.mxu0 0.0
  %v879 = vand.u32 %v205, 4294901760
  %880 = vmatpush2.xpose.msra.mxu0 %v879
  %881 = vmatprep.subr.mxu0 0.0
  %v882 = vand.u32 %v202, 4294901760
  %883 = vmatpush2.xpose.msra.mxu0 %v882
  %884 = vmatprep.subr.mxu0 0.0
  %v885 = vand.u32 %v199, 4294901760
  %886 = vmatpush2.xpose.msra.mxu0 %v885
  %887 = vmatprep.subr.mxu0 0.0
  %v888 = vand.u32 %v196, 4294901760
  %889 = vmatpush2.xpose.msra.mxu0 %v888
  %890 = vmatprep.subr.mxu0 0.0
  %v891 = vand.u32 %v193, 4294901760
  %892 = vmatpush2.xpose.msra.mxu0 %v891
  %893 = vmatprep.subr.mxu0 0.0
  %v894 = vand.u32 %v190, 4294901760
  %895 = vmatpush2.xpose.msra.mxu0 %v894
  %896 = vmatprep.subr.mxu0 0.0
  %v897 = vand.u32 %v187, 4294901760
  %898 = vmatpush2.xpose.msra.mxu0 %v897
  %899 = vmatprep.subr.mxu0 0.0
  %v900 = vand.u32 %v184, 4294901760
  %901 = vmatpush2.xpose.msra.mxu0 %v900
  %902 = vmatprep.subr.mxu0 0.0
  %v903 = vand.u32 %v181, 4294901760
  %904 = vmatpush2.xpose.msra.mxu0 %v903
  %905 = vmatprep.subr.mxu0 0.0
  %v906 = vand.u32 %v178, 4294901760
  %907 = vmatpush2.xpose.msra.mxu0 %v906
  %908 = vmatprep.subr.mxu0 0.0
  %v909 = vand.u32 %v175, 4294901760
  %910 = vmatpush2.xpose.msra.mxu0 %v909
  %911 = vmatprep.subr.mxu0 0.0
  %v912 = vand.u32 %v172, 4294901760
  %913 = vmatpush2.xpose.msra.mxu0 %v912
  %914 = vmatprep.mubr.f32.mxu0 0.0
  %v915 = vand.u32 %v118, 4294901760
  %v916 = vsub.f32 %v118, %v915
  %v917 = vand.u32 %v916, 4294901760
  %918 = vmatmul.mubr.f32.gmra.mxu0 %v917
  %v919 = vpop.f32.mrf.mxu0
  %v920 = vadd.f32 %v806, %v919
  %v921 = vpop.f32.mrf.mxu0
  %v922 = vadd.f32 %v808, %v921
  %923 = vmatprep.mubr.f32.mxu0 0.0
  %v924 = vand.u32 %v121, 4294901760
  %v925 = vsub.f32 %v121, %v924
  %v926 = vand.u32 %v925, 4294901760
  %927 = vmatmul.mubr.f32.gmra.mxu0 %v926
  %v928 = vpop.f32.mrf.mxu0
  %v929 = vadd.f32 %v814, %v928
  %v930 = vpop.f32.mrf.mxu0
  %v931 = vadd.f32 %v816, %v930
  %932 = vdwg.mxu0
  %933 = vmatprep.subr.mxu0 0.0
  %v934 = vand.u32 %v169, 4294901760
  %v935 = vsub.f32 %v169, %v934
  %v936 = vand.u32 %v935, 4294901760
  %937 = vmatpush1.xpose.msra.mxu0 %v936
  %938 = vmatprep.subr.mxu0 0.0
  %v939 = vand.u32 %v166, 4294901760
  %v940 = vsub.f32 %v166, %v939
  %v941 = vand.u32 %v940, 4294901760
  %942 = vmatpush1.xpose.msra.mxu0 %v941
  %943 = vmatprep.subr.mxu0 0.0
  %v944 = vand.u32 %v163, 4294901760
  %v945 = vsub.f32 %v163, %v944
  %v946 = vand.u32 %v945, 4294901760
  %947 = vmatpush1.xpose.msra.mxu0 %v946
  %948 = vmatprep.subr.mxu0 0.0
  %v949 = vand.u32 %v160, 4294901760
  %v950 = vsub.f32 %v160, %v949
  %v951 = vand.u32 %v950, 4294901760
  %952 = vmatpush1.xpose.msra.mxu0 %v951
  %953 = vmatprep.subr.mxu0 0.0
  %v954 = vand.u32 %v157, 4294901760
  %v955 = vsub.f32 %v157, %v954
  %v956 = vand.u32 %v955, 4294901760
  %957 = vmatpush1.xpose.msra.mxu0 %v956
  %958 = vmatprep.subr.mxu0 0.0
  %v959 = vand.u32 %v154, 4294901760
  %v960 = vsub.f32 %v154, %v959
  %v961 = vand.u32 %v960, 4294901760
  %962 = vmatpush1.xpose.msra.mxu0 %v961
  %963 = vmatprep.subr.mxu0 0.0
  %v964 = vand.u32 %v151, 4294901760
  %v965 = vsub.f32 %v151, %v964
  %v966 = vand.u32 %v965, 4294901760
  %967 = vmatpush1.xpose.msra.mxu0 %v966
  %968 = vmatprep.subr.mxu0 0.0
  %v969 = vand.u32 %v148, 4294901760
  %v970 = vsub.f32 %v148, %v969
  %v971 = vand.u32 %v970, 4294901760
  %972 = vmatpush1.xpose.msra.mxu0 %v971
  %973 = vmatprep.subr.mxu0 0.0
  %v974 = vand.u32 %v145, 4294901760
  %v975 = vsub.f32 %v145, %v974
  %v976 = vand.u32 %v975, 4294901760
  %977 = vmatpush1.xpose.msra.mxu0 %v976
  %978 = vmatprep.subr.mxu0 0.0
  %v979 = vand.u32 %v142, 4294901760
  %v980 = vsub.f32 %v142, %v979
  %v981 = vand.u32 %v980, 4294901760
  %982 = vmatpush1.xpose.msra.mxu0 %v981
  %983 = vmatprep.subr.mxu0 0.0
  %v984 = vand.u32 %v139, 4294901760
  %v985 = vsub.f32 %v139, %v984
  %v986 = vand.u32 %v985, 4294901760
  %987 = vmatpush1.xpose.msra.mxu0 %v986
  %988 = vmatprep.subr.mxu0 0.0
  %v989 = vand.u32 %v136, 4294901760
  %v990 = vsub.f32 %v136, %v989
  %v991 = vand.u32 %v990, 4294901760
  %992 = vmatpush1.xpose.msra.mxu0 %v991
  %993 = vmatprep.subr.mxu0 0.0
  %v994 = vand.u32 %v133, 4294901760
  %v995 = vsub.f32 %v133, %v994
  %v996 = vand.u32 %v995, 4294901760
  %997 = vmatpush1.xpose.msra.mxu0 %v996
  %998 = vmatprep.subr.mxu0 0.0
  %v999 = vand.u32 %v130, 4294901760
  %v1000 = vsub.f32 %v130, %v999
  %v1001 = vand.u32 %v1000, 4294901760
  %1002 = vmatpush1.xpose.msra.mxu0 %v1001
  %1003 = vmatprep.subr.mxu0 0.0
  %v1004 = vand.u32 %v127, 4294901760
  %v1005 = vsub.f32 %v127, %v1004
  %v1006 = vand.u32 %v1005, 4294901760
  %1007 = vmatpush1.xpose.msra.mxu0 %v1006
  %1008 = vmatprep.subr.mxu0 0.0
  %v1009 = vand.u32 %v124, 4294901760
  %v1010 = vsub.f32 %v124, %v1009
  %v1011 = vand.u32 %v1010, 4294901760
  %1012 = vmatpush1.xpose.msra.mxu0 %v1011
  %1013 = vmatprep.subr.mxu0 0.0
  %v1014 = vand.u32 %v217, 4294901760
  %v1015 = vsub.f32 %v217, %v1014
  %v1016 = vand.u32 %v1015, 4294901760
  %1017 = vmatpush2.xpose.msra.mxu0 %v1016
  %1018 = vmatprep.subr.mxu0 0.0
  %v1019 = vand.u32 %v214, 4294901760
  %v1020 = vsub.f32 %v214, %v1019
  %v1021 = vand.u32 %v1020, 4294901760
  %1022 = vmatpush2.xpose.msra.mxu0 %v1021
  %1023 = vmatprep.subr.mxu0 0.0
  %v1024 = vand.u32 %v211, 4294901760
  %v1025 = vsub.f32 %v211, %v1024
  %v1026 = vand.u32 %v1025, 4294901760
  %1027 = vmatpush2.xpose.msra.mxu0 %v1026
  %1028 = vmatprep.subr.mxu0 0.0
  %v1029 = vand.u32 %v208, 4294901760
  %v1030 = vsub.f32 %v208, %v1029
  %v1031 = vand.u32 %v1030, 4294901760
  %1032 = vmatpush2.xpose.msra.mxu0 %v1031
  %1033 = vmatprep.subr.mxu0 0.0
  %v1034 = vand.u32 %v205, 4294901760
  %v1035 = vsub.f32 %v205, %v1034
  %v1036 = vand.u32 %v1035, 4294901760
  %1037 = vmatpush2.xpose.msra.mxu0 %v1036
  %1038 = vmatprep.subr.mxu0 0.0
  %v1039 = vand.u32 %v202, 4294901760
  %v1040 = vsub.f32 %v202, %v1039
  %v1041 = vand.u32 %v1040, 4294901760
  %1042 = vmatpush2.xpose.msra.mxu0 %v1041
  %1043 = vmatprep.subr.mxu0 0.0
  %v1044 = vand.u32 %v199, 4294901760
  %v1045 = vsub.f32 %v199, %v1044
  %v1046 = vand.u32 %v1045, 4294901760
  %1047 = vmatpush2.xpose.msra.mxu0 %v1046
  %1048 = vmatprep.subr.mxu0 0.0
  %v1049 = vand.u32 %v196, 4294901760
  %v1050 = vsub.f32 %v196, %v1049
  %v1051 = vand.u32 %v1050, 4294901760
  %1052 = vmatpush2.xpose.msra.mxu0 %v1051
  %1053 = vmatprep.subr.mxu0 0.0
  %v1054 = vand.u32 %v193, 4294901760
  %v1055 = vsub.f32 %v193, %v1054
  %v1056 = vand.u32 %v1055, 4294901760
  %1057 = vmatpush2.xpose.msra.mxu0 %v1056
  %1058 = vmatprep.subr.mxu0 0.0
  %v1059 = vand.u32 %v190, 4294901760
  %v1060 = vsub.f32 %v190, %v1059
  %v1061 = vand.u32 %v1060, 4294901760
  %1062 = vmatpush2.xpose.msra.mxu0 %v1061
  %1063 = vmatprep.subr.mxu0 0.0
  %v1064 = vand.u32 %v187, 4294901760
  %v1065 = vsub.f32 %v187, %v1064
  %v1066 = vand.u32 %v1065, 4294901760
  %1067 = vmatpush2.xpose.msra.mxu0 %v1066
  %1068 = vmatprep.subr.mxu0 0.0
  %v1069 = vand.u32 %v184, 4294901760
  %v1070 = vsub.f32 %v184, %v1069
  %v1071 = vand.u32 %v1070, 4294901760
  %1072 = vmatpush2.xpose.msra.mxu0 %v1071
  %1073 = vmatprep.subr.mxu0 0.0
  %v1074 = vand.u32 %v181, 4294901760
  %v1075 = vsub.f32 %v181, %v1074
  %v1076 = vand.u32 %v1075, 4294901760
  %1077 = vmatpush2.xpose.msra.mxu0 %v1076
  %1078 = vmatprep.subr.mxu0 0.0
  %v1079 = vand.u32 %v178, 4294901760
  %v1080 = vsub.f32 %v178, %v1079
  %v1081 = vand.u32 %v1080, 4294901760
  %1082 = vmatpush2.xpose.msra.mxu0 %v1081
  %1083 = vmatprep.subr.mxu0 0.0
  %v1084 = vand.u32 %v175, 4294901760
  %v1085 = vsub.f32 %v175, %v1084
  %v1086 = vand.u32 %v1085, 4294901760
  %1087 = vmatpush2.xpose.msra.mxu0 %v1086
  %1088 = vmatprep.subr.mxu0 0.0
  %v1089 = vand.u32 %v172, 4294901760
  %v1090 = vsub.f32 %v172, %v1089
  %v1091 = vand.u32 %v1090, 4294901760
  %1092 = vmatpush2.xpose.msra.mxu0 %v1091
  %1093 = vmatprep.mubr.f32.mxu0 0.0
  %v1094 = vand.u32 %v118, 4294901760
  %1095 = vmatmul.mubr.f32.gmra.mxu0 %v1094
  %v1096 = vpop.f32.mrf.mxu0
  %v1097 = vadd.f32 %v920, %v1096
  %v1098 = vpop.f32.mrf.mxu0
  %v1099 = vadd.f32 %v922, %v1098
  %1100 = vmatprep.mubr.f32.mxu0 0.0
  %v1101 = vand.u32 %v121, 4294901760
  %1102 = vmatmul.mubr.f32.gmra.mxu0 %v1101
  %v1103 = vpop.f32.mrf.mxu0
  %v1104 = vadd.f32 %v929, %v1103
  %v1105 = vpop.f32.mrf.mxu0
  %v1106 = vadd.f32 %v931, %v1105
  %1107 = vdwg.mxu0
  %1108 = vmatprep.subr.mxu0 0.0
  %v1109 = vand.u32 %v169, 4294901760
  %1110 = vmatpush1.xpose.msra.mxu0 %v1109
  %1111 = vmatprep.subr.mxu0 0.0
  %v1112 = vand.u32 %v166, 4294901760
  %1113 = vmatpush1.xpose.msra.mxu0 %v1112
  %1114 = vmatprep.subr.mxu0 0.0
  %v1115 = vand.u32 %v163, 4294901760
  %1116 = vmatpush1.xpose.msra.mxu0 %v1115
  %1117 = vmatprep.subr.mxu0 0.0
  %v1118 = vand.u32 %v160, 4294901760
  %1119 = vmatpush1.xpose.msra.mxu0 %v1118
  %1120 = vmatprep.subr.mxu0 0.0
  %v1121 = vand.u32 %v157, 4294901760
  %1122 = vmatpush1.xpose.msra.mxu0 %v1121
  %1123 = vmatprep.subr.mxu0 0.0
  %v1124 = vand.u32 %v154, 4294901760
  %1125 = vmatpush1.xpose.msra.mxu0 %v1124
  %1126 = vmatprep.subr.mxu0 0.0
  %v1127 = vand.u32 %v151, 4294901760
  %1128 = vmatpush1.xpose.msra.mxu0 %v1127
  %1129 = vmatprep.subr.mxu0 0.0
  %v1130 = vand.u32 %v148, 4294901760
  %1131 = vmatpush1.xpose.msra.mxu0 %v1130
  %1132 = vmatprep.subr.mxu0 0.0
  %v1133 = vand.u32 %v145, 4294901760
  %1134 = vmatpush1.xpose.msra.mxu0 %v1133
  %1135 = vmatprep.subr.mxu0 0.0
  %v1136 = vand.u32 %v142, 4294901760
  %1137 = vmatpush1.xpose.msra.mxu0 %v1136
  %1138 = vmatprep.subr.mxu0 0.0
  %v1139 = vand.u32 %v139, 4294901760
  %1140 = vmatpush1.xpose.msra.mxu0 %v1139
  %1141 = vmatprep.subr.mxu0 0.0
  %v1142 = vand.u32 %v136, 4294901760
  %1143 = vmatpush1.xpose.msra.mxu0 %v1142
  %1144 = vmatprep.subr.mxu0 0.0
  %v1145 = vand.u32 %v133, 4294901760
  %1146 = vmatpush1.xpose.msra.mxu0 %v1145
  %1147 = vmatprep.subr.mxu0 0.0
  %v1148 = vand.u32 %v130, 4294901760
  %1149 = vmatpush1.xpose.msra.mxu0 %v1148
  %1150 = vmatprep.subr.mxu0 0.0
  %v1151 = vand.u32 %v127, 4294901760
  %1152 = vmatpush1.xpose.msra.mxu0 %v1151
  %1153 = vmatprep.subr.mxu0 0.0
  %v1154 = vand.u32 %v124, 4294901760
  %1155 = vmatpush1.xpose.msra.mxu0 %v1154
  %1156 = vmatprep.subr.mxu0 0.0
  %v1157 = vand.u32 %v217, 4294901760
  %1158 = vmatpush2.xpose.msra.mxu0 %v1157
  %1159 = vmatprep.subr.mxu0 0.0
  %v1160 = vand.u32 %v214, 4294901760
  %1161 = vmatpush2.xpose.msra.mxu0 %v1160
  %1162 = vmatprep.subr.mxu0 0.0
  %v1163 = vand.u32 %v211, 4294901760
  %1164 = vmatpush2.xpose.msra.mxu0 %v1163
  %1165 = vmatprep.subr.mxu0 0.0
  %v1166 = vand.u32 %v208, 4294901760
  %1167 = vmatpush2.xpose.msra.mxu0 %v1166
  %1168 = vmatprep.subr.mxu0 0.0
  %v1169 = vand.u32 %v205, 4294901760
  %1170 = vmatpush2.xpose.msra.mxu0 %v1169
  %1171 = vmatprep.subr.mxu0 0.0
  %v1172 = vand.u32 %v202, 4294901760
  %1173 = vmatpush2.xpose.msra.mxu0 %v1172
  %1174 = vmatprep.subr.mxu0 0.0
  %v1175 = vand.u32 %v199, 4294901760
  %1176 = vmatpush2.xpose.msra.mxu0 %v1175
  %1177 = vmatprep.subr.mxu0 0.0
  %v1178 = vand.u32 %v196, 4294901760
  %1179 = vmatpush2.xpose.msra.mxu0 %v1178
  %1180 = vmatprep.subr.mxu0 0.0
  %v1181 = vand.u32 %v193, 4294901760
  %1182 = vmatpush2.xpose.msra.mxu0 %v1181
  %1183 = vmatprep.subr.mxu0 0.0
  %v1184 = vand.u32 %v190, 4294901760
  %1185 = vmatpush2.xpose.msra.mxu0 %v1184
  %1186 = vmatprep.subr.mxu0 0.0
  %v1187 = vand.u32 %v187, 4294901760
  %1188 = vmatpush2.xpose.msra.mxu0 %v1187
  %1189 = vmatprep.subr.mxu0 0.0
  %v1190 = vand.u32 %v184, 4294901760
  %1191 = vmatpush2.xpose.msra.mxu0 %v1190
  %1192 = vmatprep.subr.mxu0 0.0
  %v1193 = vand.u32 %v181, 4294901760
  %1194 = vmatpush2.xpose.msra.mxu0 %v1193
  %1195 = vmatprep.subr.mxu0 0.0
  %v1196 = vand.u32 %v178, 4294901760
  %1197 = vmatpush2.xpose.msra.mxu0 %v1196
  %1198 = vmatprep.subr.mxu0 0.0
  %v1199 = vand.u32 %v175, 4294901760
  %1200 = vmatpush2.xpose.msra.mxu0 %v1199
  %1201 = vmatprep.subr.mxu0 0.0
  %v1202 = vand.u32 %v172, 4294901760
  %1203 = vmatpush2.xpose.msra.mxu0 %v1202
  %1204 = vmatprep.mubr.f32.mxu0 0.0
  %v1205 = vand.u32 %v118, 4294901760
  %1206 = vmatmul.mubr.f32.gmra.mxu0 %v1205
  %v1207 = vpop.f32.mrf.mxu0
  %v1208 = vadd.f32 %v1097, %v1207
  %v1209 = vpop.f32.mrf.mxu0
  %v1210 = vadd.f32 %v1099, %v1209
  %1211 = vmatprep.mubr.f32.mxu0 0.0
  %v1212 = vand.u32 %v121, 4294901760
  %1213 = vmatmul.mubr.f32.gmra.mxu0 %v1212
  %v1214 = vpop.f32.mrf.mxu0
  %v1215 = vadd.f32 %v1104, %v1214
  %v1216 = vpop.f32.mrf.mxu0
  %v1217 = vadd.f32 %v1106, %v1216
  %1218 = vdwg.mxu0
  %1219 = vmatprep.subr.mxu0 0.0
  %v1220 = vand.u32 %v265, 4294901760
  %1221 = vmatpush1.xpose.msra.mxu0 %v1220
  %1222 = vmatprep.subr.mxu0 0.0
  %v1223 = vand.u32 %v262, 4294901760
  %1224 = vmatpush1.xpose.msra.mxu0 %v1223
  %1225 = vmatprep.subr.mxu0 0.0
  %v1226 = vand.u32 %v259, 4294901760
  %1227 = vmatpush1.xpose.msra.mxu0 %v1226
  %1228 = vmatprep.subr.mxu0 0.0
  %v1229 = vand.u32 %v256, 4294901760
  %1230 = vmatpush1.xpose.msra.mxu0 %v1229
  %1231 = vmatprep.subr.mxu0 0.0
  %v1232 = vand.u32 %v253, 4294901760
  %1233 = vmatpush1.xpose.msra.mxu0 %v1232
  %1234 = vmatprep.subr.mxu0 0.0
  %v1235 = vand.u32 %v250, 4294901760
  %1236 = vmatpush1.xpose.msra.mxu0 %v1235
  %1237 = vmatprep.subr.mxu0 0.0
  %v1238 = vand.u32 %v247, 4294901760
  %1239 = vmatpush1.xpose.msra.mxu0 %v1238
  %1240 = vmatprep.subr.mxu0 0.0
  %v1241 = vand.u32 %v244, 4294901760
  %1242 = vmatpush1.xpose.msra.mxu0 %v1241
  %1243 = vmatprep.subr.mxu0 0.0
  %v1244 = vand.u32 %v241, 4294901760
  %1245 = vmatpush1.xpose.msra.mxu0 %v1244
  %1246 = vmatprep.subr.mxu0 0.0
  %v1247 = vand.u32 %v238, 4294901760
  %1248 = vmatpush1.xpose.msra.mxu0 %v1247
  %1249 = vmatprep.subr.mxu0 0.0
  %v1250 = vand.u32 %v235, 4294901760
  %1251 = vmatpush1.xpose.msra.mxu0 %v1250
  %1252 = vmatprep.subr.mxu0 0.0
  %v1253 = vand.u32 %v232, 4294901760
  %1254 = vmatpush1.xpose.msra.mxu0 %v1253
  %1255 = vmatprep.subr.mxu0 0.0
  %v1256 = vand.u32 %v229, 4294901760
  %1257 = vmatpush1.xpose.msra.mxu0 %v1256
  %1258 = vmatprep.subr.mxu0 0.0
  %v1259 = vand.u32 %v226, 4294901760
  %1260 = vmatpush1.xpose.msra.mxu0 %v1259
  %1261 = vmatprep.subr.mxu0 0.0
  %v1262 = vand.u32 %v223, 4294901760
  %1263 = vmatpush1.xpose.msra.mxu0 %v1262
  %1264 = vmatprep.subr.mxu0 0.0
  %v1265 = vand.u32 %v220, 4294901760
  %1266 = vmatpush1.xpose.msra.mxu0 %v1265
  %1267 = vmatprep.subr.mxu0 0.0
  %v1268 = vand.u32 %v313, 4294901760
  %1269 = vmatpush2.xpose.msra.mxu0 %v1268
  %1270 = vmatprep.subr.mxu0 0.0
  %v1271 = vand.u32 %v310, 4294901760
  %1272 = vmatpush2.xpose.msra.mxu0 %v1271
  %1273 = vmatprep.subr.mxu0 0.0
  %v1274 = vand.u32 %v307, 4294901760
  %1275 = vmatpush2.xpose.msra.mxu0 %v1274
  %1276 = vmatprep.subr.mxu0 0.0
  %v1277 = vand.u32 %v304, 4294901760
  %1278 = vmatpush2.xpose.msra.mxu0 %v1277
  %1279 = vmatprep.subr.mxu0 0.0
  %v1280 = vand.u32 %v301, 4294901760
  %1281 = vmatpush2.xpose.msra.mxu0 %v1280
  %1282 = vmatprep.subr.mxu0 0.0
  %v1283 = vand.u32 %v298, 4294901760
  %1284 = vmatpush2.xpose.msra.mxu0 %v1283
  %1285 = vmatprep.subr.mxu0 0.0
  %v1286 = vand.u32 %v295, 4294901760
  %1287 = vmatpush2.xpose.msra.mxu0 %v1286
  %1288 = vmatprep.subr.mxu0 0.0
  %v1289 = vand.u32 %v292, 4294901760
  %1290 = vmatpush2.xpose.msra.mxu0 %v1289
  %1291 = vmatprep.subr.mxu0 0.0
  %v1292 = vand.u32 %v289, 4294901760
  %1293 = vmatpush2.xpose.msra.mxu0 %v1292
  %1294 = vmatprep.subr.mxu0 0.0
  %v1295 = vand.u32 %v286, 4294901760
  %1296 = vmatpush2.xpose.msra.mxu0 %v1295
  %1297 = vmatprep.subr.mxu0 0.0
  %v1298 = vand.u32 %v283, 4294901760
  %1299 = vmatpush2.xpose.msra.mxu0 %v1298
  %1300 = vmatprep.subr.mxu0 0.0
  %v1301 = vand.u32 %v280, 4294901760
  %1302 = vmatpush2.xpose.msra.mxu0 %v1301
  %1303 = vmatprep.subr.mxu0 0.0
  %v1304 = vand.u32 %v277, 4294901760
  %1305 = vmatpush2.xpose.msra.mxu0 %v1304
  %1306 = vmatprep.subr.mxu0 0.0
  %v1307 = vand.u32 %v274, 4294901760
  %1308 = vmatpush2.xpose.msra.mxu0 %v1307
  %1309 = vmatprep.subr.mxu0 0.0
  %v1310 = vand.u32 %v271, 4294901760
  %1311 = vmatpush2.xpose.msra.mxu0 %v1310
  %1312 = vmatprep.subr.mxu0 0.0
  %v1313 = vand.u32 %v268, 4294901760
  %1314 = vmatpush2.xpose.msra.mxu0 %v1313
  %1315 = vmatprep.mubr.f32.mxu0 0.0
  %v1316 = vand.u32 %v118, 4294901760
  %v1317 = vsub.f32 %v118, %v1316
  %v1318 = vand.u32 %v1317, 4294901760
  %v1319 = vsub.f32 %v1317, %v1318
  %v1320 = vand.u32 %v1319, 4294901760
  %1321 = vmatmul.mubr.f32.gmra.mxu0 %v1320
  %v1322 = vpop.f32.mrf.mxu0
  %v1323 = vadd.f32 %v109, %v1322
  %v1324 = vpop.f32.mrf.mxu0
  %v1325 = vadd.f32 %v109, %v1324
  %1326 = vmatprep.mubr.f32.mxu0 0.0
  %v1327 = vand.u32 %v121, 4294901760
  %v1328 = vsub.f32 %v121, %v1327
  %v1329 = vand.u32 %v1328, 4294901760
  %v1330 = vsub.f32 %v1328, %v1329
  %v1331 = vand.u32 %v1330, 4294901760
  %1332 = vmatmul.mubr.f32.gmra.mxu0 %v1331
  %v1333 = vpop.f32.mrf.mxu0
  %v1334 = vadd.f32 %v114, %v1333
  %v1335 = vpop.f32.mrf.mxu0
  %v1336 = vadd.f32 %v114, %v1335
  %1337 = vdwg.mxu0
  %1338 = vmatprep.subr.mxu0 0.0
  %v1339 = vand.u32 %v265, 4294901760
  %v1340 = vsub.f32 %v265, %v1339
  %v1341 = vand.u32 %v1340, 4294901760
  %v1342 = vsub.f32 %v1340, %v1341
  %v1343 = vand.u32 %v1342, 4294901760
  %1344 = vmatpush1.xpose.msra.mxu0 %v1343
  %1345 = vmatprep.subr.mxu0 0.0
  %v1346 = vand.u32 %v262, 4294901760
  %v1347 = vsub.f32 %v262, %v1346
  %v1348 = vand.u32 %v1347, 4294901760
  %v1349 = vsub.f32 %v1347, %v1348
  %v1350 = vand.u32 %v1349, 4294901760
  %1351 = vmatpush1.xpose.msra.mxu0 %v1350
  %1352 = vmatprep.subr.mxu0 0.0
  %v1353 = vand.u32 %v259, 4294901760
  %v1354 = vsub.f32 %v259, %v1353
  %v1355 = vand.u32 %v1354, 4294901760
  %v1356 = vsub.f32 %v1354, %v1355
  %v1357 = vand.u32 %v1356, 4294901760
  %1358 = vmatpush1.xpose.msra.mxu0 %v1357
  %1359 = vmatprep.subr.mxu0 0.0
  %v1360 = vand.u32 %v256, 4294901760
  %v1361 = vsub.f32 %v256, %v1360
  %v1362 = vand.u32 %v1361, 4294901760
  %v1363 = vsub.f32 %v1361, %v1362
  %v1364 = vand.u32 %v1363, 4294901760
  %1365 = vmatpush1.xpose.msra.mxu0 %v1364
  %1366 = vmatprep.subr.mxu0 0.0
  %v1367 = vand.u32 %v253, 4294901760
  %v1368 = vsub.f32 %v253, %v1367
  %v1369 = vand.u32 %v1368, 4294901760
  %v1370 = vsub.f32 %v1368, %v1369
  %v1371 = vand.u32 %v1370, 4294901760
  %1372 = vmatpush1.xpose.msra.mxu0 %v1371
  %1373 = vmatprep.subr.mxu0 0.0
  %v1374 = vand.u32 %v250, 4294901760
  %v1375 = vsub.f32 %v250, %v1374
  %v1376 = vand.u32 %v1375, 4294901760
  %v1377 = vsub.f32 %v1375, %v1376
  %v1378 = vand.u32 %v1377, 4294901760
  %1379 = vmatpush1.xpose.msra.mxu0 %v1378
  %1380 = vmatprep.subr.mxu0 0.0
  %v1381 = vand.u32 %v247, 4294901760
  %v1382 = vsub.f32 %v247, %v1381
  %v1383 = vand.u32 %v1382, 4294901760
  %v1384 = vsub.f32 %v1382, %v1383
  %v1385 = vand.u32 %v1384, 4294901760
  %1386 = vmatpush1.xpose.msra.mxu0 %v1385
  %1387 = vmatprep.subr.mxu0 0.0
  %v1388 = vand.u32 %v244, 4294901760
  %v1389 = vsub.f32 %v244, %v1388
  %v1390 = vand.u32 %v1389, 4294901760
  %v1391 = vsub.f32 %v1389, %v1390
  %v1392 = vand.u32 %v1391, 4294901760
  %1393 = vmatpush1.xpose.msra.mxu0 %v1392
  %1394 = vmatprep.subr.mxu0 0.0
  %v1395 = vand.u32 %v241, 4294901760
  %v1396 = vsub.f32 %v241, %v1395
  %v1397 = vand.u32 %v1396, 4294901760
  %v1398 = vsub.f32 %v1396, %v1397
  %v1399 = vand.u32 %v1398, 4294901760
  %1400 = vmatpush1.xpose.msra.mxu0 %v1399
  %1401 = vmatprep.subr.mxu0 0.0
  %v1402 = vand.u32 %v238, 4294901760
  %v1403 = vsub.f32 %v238, %v1402
  %v1404 = vand.u32 %v1403, 4294901760
  %v1405 = vsub.f32 %v1403, %v1404
  %v1406 = vand.u32 %v1405, 4294901760
  %1407 = vmatpush1.xpose.msra.mxu0 %v1406
  %1408 = vmatprep.subr.mxu0 0.0
  %v1409 = vand.u32 %v235, 4294901760
  %v1410 = vsub.f32 %v235, %v1409
  %v1411 = vand.u32 %v1410, 4294901760
  %v1412 = vsub.f32 %v1410, %v1411
  %v1413 = vand.u32 %v1412, 4294901760
  %1414 = vmatpush1.xpose.msra.mxu0 %v1413
  %1415 = vmatprep.subr.mxu0 0.0
  %v1416 = vand.u32 %v232, 4294901760
  %v1417 = vsub.f32 %v232, %v1416
  %v1418 = vand.u32 %v1417, 4294901760
  %v1419 = vsub.f32 %v1417, %v1418
  %v1420 = vand.u32 %v1419, 4294901760
  %1421 = vmatpush1.xpose.msra.mxu0 %v1420
  %1422 = vmatprep.subr.mxu0 0.0
  %v1423 = vand.u32 %v229, 4294901760
  %v1424 = vsub.f32 %v229, %v1423
  %v1425 = vand.u32 %v1424, 4294901760
  %v1426 = vsub.f32 %v1424, %v1425
  %v1427 = vand.u32 %v1426, 4294901760
  %1428 = vmatpush1.xpose.msra.mxu0 %v1427
  %1429 = vmatprep.subr.mxu0 0.0
  %v1430 = vand.u32 %v226, 4294901760
  %v1431 = vsub.f32 %v226, %v1430
  %v1432 = vand.u32 %v1431, 4294901760
  %v1433 = vsub.f32 %v1431, %v1432
  %v1434 = vand.u32 %v1433, 4294901760
  %1435 = vmatpush1.xpose.msra.mxu0 %v1434
  %1436 = vmatprep.subr.mxu0 0.0
  %v1437 = vand.u32 %v223, 4294901760
  %v1438 = vsub.f32 %v223, %v1437
  %v1439 = vand.u32 %v1438, 4294901760
  %v1440 = vsub.f32 %v1438, %v1439
  %v1441 = vand.u32 %v1440, 4294901760
  %1442 = vmatpush1.xpose.msra.mxu0 %v1441
  %1443 = vmatprep.subr.mxu0 0.0
  %v1444 = vand.u32 %v220, 4294901760
  %v1445 = vsub.f32 %v220, %v1444
  %v1446 = vand.u32 %v1445, 4294901760
  %v1447 = vsub.f32 %v1445, %v1446
  %v1448 = vand.u32 %v1447, 4294901760
  %1449 = vmatpush1.xpose.msra.mxu0 %v1448
  %1450 = vmatprep.subr.mxu0 0.0
  %v1451 = vand.u32 %v313, 4294901760
  %v1452 = vsub.f32 %v313, %v1451
  %v1453 = vand.u32 %v1452, 4294901760
  %v1454 = vsub.f32 %v1452, %v1453
  %v1455 = vand.u32 %v1454, 4294901760
  %1456 = vmatpush2.xpose.msra.mxu0 %v1455
  %1457 = vmatprep.subr.mxu0 0.0
  %v1458 = vand.u32 %v310, 4294901760
  %v1459 = vsub.f32 %v310, %v1458
  %v1460 = vand.u32 %v1459, 4294901760
  %v1461 = vsub.f32 %v1459, %v1460
  %v1462 = vand.u32 %v1461, 4294901760
  %1463 = vmatpush2.xpose.msra.mxu0 %v1462
  %1464 = vmatprep.subr.mxu0 0.0
  %v1465 = vand.u32 %v307, 4294901760
  %v1466 = vsub.f32 %v307, %v1465
  %v1467 = vand.u32 %v1466, 4294901760
  %v1468 = vsub.f32 %v1466, %v1467
  %v1469 = vand.u32 %v1468, 4294901760
  %1470 = vmatpush2.xpose.msra.mxu0 %v1469
  %1471 = vmatprep.subr.mxu0 0.0
  %v1472 = vand.u32 %v304, 4294901760
  %v1473 = vsub.f32 %v304, %v1472
  %v1474 = vand.u32 %v1473, 4294901760
  %v1475 = vsub.f32 %v1473, %v1474
  %v1476 = vand.u32 %v1475, 4294901760
  %1477 = vmatpush2.xpose.msra.mxu0 %v1476
  %1478 = vmatprep.subr.mxu0 0.0
  %v1479 = vand.u32 %v301, 4294901760
  %v1480 = vsub.f32 %v301, %v1479
  %v1481 = vand.u32 %v1480, 4294901760
  %v1482 = vsub.f32 %v1480, %v1481
  %v1483 = vand.u32 %v1482, 4294901760
  %1484 = vmatpush2.xpose.msra.mxu0 %v1483
  %1485 = vmatprep.subr.mxu0 0.0
  %v1486 = vand.u32 %v298, 4294901760
  %v1487 = vsub.f32 %v298, %v1486
  %v1488 = vand.u32 %v1487, 4294901760
  %v1489 = vsub.f32 %v1487, %v1488
  %v1490 = vand.u32 %v1489, 4294901760
  %1491 = vmatpush2.xpose.msra.mxu0 %v1490
  %1492 = vmatprep.subr.mxu0 0.0
  %v1493 = vand.u32 %v295, 4294901760
  %v1494 = vsub.f32 %v295, %v1493
  %v1495 = vand.u32 %v1494, 4294901760
  %v1496 = vsub.f32 %v1494, %v1495
  %v1497 = vand.u32 %v1496, 4294901760
  %1498 = vmatpush2.xpose.msra.mxu0 %v1497
  %1499 = vmatprep.subr.mxu0 0.0
  %v1500 = vand.u32 %v292, 4294901760
  %v1501 = vsub.f32 %v292, %v1500
  %v1502 = vand.u32 %v1501, 4294901760
  %v1503 = vsub.f32 %v1501, %v1502
  %v1504 = vand.u32 %v1503, 4294901760
  %1505 = vmatpush2.xpose.msra.mxu0 %v1504
  %1506 = vmatprep.subr.mxu0 0.0
  %v1507 = vand.u32 %v289, 4294901760
  %v1508 = vsub.f32 %v289, %v1507
  %v1509 = vand.u32 %v1508, 4294901760
  %v1510 = vsub.f32 %v1508, %v1509
  %v1511 = vand.u32 %v1510, 4294901760
  %1512 = vmatpush2.xpose.msra.mxu0 %v1511
  %1513 = vmatprep.subr.mxu0 0.0
  %v1514 = vand.u32 %v286, 4294901760
  %v1515 = vsub.f32 %v286, %v1514
  %v1516 = vand.u32 %v1515, 4294901760
  %v1517 = vsub.f32 %v1515, %v1516
  %v1518 = vand.u32 %v1517, 4294901760
  %1519 = vmatpush2.xpose.msra.mxu0 %v1518
  %1520 = vmatprep.subr.mxu0 0.0
  %v1521 = vand.u32 %v283, 4294901760
  %v1522 = vsub.f32 %v283, %v1521
  %v1523 = vand.u32 %v1522, 4294901760
  %v1524 = vsub.f32 %v1522, %v1523
  %v1525 = vand.u32 %v1524, 4294901760
  %1526 = vmatpush2.xpose.msra.mxu0 %v1525
  %1527 = vmatprep.subr.mxu0 0.0
  %v1528 = vand.u32 %v280, 4294901760
  %v1529 = vsub.f32 %v280, %v1528
  %v1530 = vand.u32 %v1529, 4294901760
  %v1531 = vsub.f32 %v1529, %v1530
  %v1532 = vand.u32 %v1531, 4294901760
  %1533 = vmatpush2.xpose.msra.mxu0 %v1532
  %1534 = vmatprep.subr.mxu0 0.0
  %v1535 = vand.u32 %v277, 4294901760
  %v1536 = vsub.f32 %v277, %v1535
  %v1537 = vand.u32 %v1536, 4294901760
  %v1538 = vsub.f32 %v1536, %v1537
  %v1539 = vand.u32 %v1538, 4294901760
  %1540 = vmatpush2.xpose.msra.mxu0 %v1539
  %1541 = vmatprep.subr.mxu0 0.0
  %v1542 = vand.u32 %v274, 4294901760
  %v1543 = vsub.f32 %v274, %v1542
  %v1544 = vand.u32 %v1543, 4294901760
  %v1545 = vsub.f32 %v1543, %v1544
  %v1546 = vand.u32 %v1545, 4294901760
  %1547 = vmatpush2.xpose.msra.mxu0 %v1546
  %1548 = vmatprep.subr.mxu0 0.0
  %v1549 = vand.u32 %v271, 4294901760
  %v1550 = vsub.f32 %v271, %v1549
  %v1551 = vand.u32 %v1550, 4294901760
  %v1552 = vsub.f32 %v1550, %v1551
  %v1553 = vand.u32 %v1552, 4294901760
  %1554 = vmatpush2.xpose.msra.mxu0 %v1553
  %1555 = vmatprep.subr.mxu0 0.0
  %v1556 = vand.u32 %v268, 4294901760
  %v1557 = vsub.f32 %v268, %v1556
  %v1558 = vand.u32 %v1557, 4294901760
  %v1559 = vsub.f32 %v1557, %v1558
  %v1560 = vand.u32 %v1559, 4294901760
  %1561 = vmatpush2.xpose.msra.mxu0 %v1560
  %1562 = vmatprep.mubr.f32.mxu0 0.0
  %v1563 = vand.u32 %v118, 4294901760
  %1564 = vmatmul.mubr.f32.gmra.mxu0 %v1563
  %v1565 = vpop.f32.mrf.mxu0
  %v1566 = vadd.f32 %v1323, %v1565
  %v1567 = vpop.f32.mrf.mxu0
  %v1568 = vadd.f32 %v1325, %v1567
  %1569 = vmatprep.mubr.f32.mxu0 0.0
  %v1570 = vand.u32 %v121, 4294901760
  %1571 = vmatmul.mubr.f32.gmra.mxu0 %v1570
  %v1572 = vpop.f32.mrf.mxu0
  %v1573 = vadd.f32 %v1334, %v1572
  %v1574 = vpop.f32.mrf.mxu0
  %v1575 = vadd.f32 %v1336, %v1574
  %1576 = vdwg.mxu0
  %1577 = vmatprep.subr.mxu0 0.0
  %v1578 = vand.u32 %v265, 4294901760
  %v1579 = vsub.f32 %v265, %v1578
  %1580 = vmatpush1.xpose.msra.mxu0 %v1579
  %1581 = vmatprep.subr.mxu0 0.0
  %v1582 = vand.u32 %v262, 4294901760
  %v1583 = vsub.f32 %v262, %v1582
  %1584 = vmatpush1.xpose.msra.mxu0 %v1583
  %1585 = vmatprep.subr.mxu0 0.0
  %v1586 = vand.u32 %v259, 4294901760
  %v1587 = vsub.f32 %v259, %v1586
  %1588 = vmatpush1.xpose.msra.mxu0 %v1587
  %1589 = vmatprep.subr.mxu0 0.0
  %v1590 = vand.u32 %v256, 4294901760
  %v1591 = vsub.f32 %v256, %v1590
  %1592 = vmatpush1.xpose.msra.mxu0 %v1591
  %1593 = vmatprep.subr.mxu0 0.0
  %v1594 = vand.u32 %v253, 4294901760
  %v1595 = vsub.f32 %v253, %v1594
  %1596 = vmatpush1.xpose.msra.mxu0 %v1595
  %1597 = vmatprep.subr.mxu0 0.0
  %v1598 = vand.u32 %v250, 4294901760
  %v1599 = vsub.f32 %v250, %v1598
  %1600 = vmatpush1.xpose.msra.mxu0 %v1599
  %1601 = vmatprep.subr.mxu0 0.0
  %v1602 = vand.u32 %v247, 4294901760
  %v1603 = vsub.f32 %v247, %v1602
  %1604 = vmatpush1.xpose.msra.mxu0 %v1603
  %1605 = vmatprep.subr.mxu0 0.0
  %v1606 = vand.u32 %v244, 4294901760
  %v1607 = vsub.f32 %v244, %v1606
  %1608 = vmatpush1.xpose.msra.mxu0 %v1607
  %1609 = vmatprep.subr.mxu0 0.0
  %v1610 = vand.u32 %v241, 4294901760
  %v1611 = vsub.f32 %v241, %v1610
  %1612 = vmatpush1.xpose.msra.mxu0 %v1611
  %1613 = vmatprep.subr.mxu0 0.0
  %v1614 = vand.u32 %v238, 4294901760
  %v1615 = vsub.f32 %v238, %v1614
  %1616 = vmatpush1.xpose.msra.mxu0 %v1615
  %1617 = vmatprep.subr.mxu0 0.0
  %v1618 = vand.u32 %v235, 4294901760
  %v1619 = vsub.f32 %v235, %v1618
  %1620 = vmatpush1.xpose.msra.mxu0 %v1619
  %1621 = vmatprep.subr.mxu0 0.0
  %v1622 = vand.u32 %v232, 4294901760
  %v1623 = vsub.f32 %v232, %v1622
  %1624 = vmatpush1.xpose.msra.mxu0 %v1623
  %1625 = vmatprep.subr.mxu0 0.0
  %v1626 = vand.u32 %v229, 4294901760
  %v1627 = vsub.f32 %v229, %v1626
  %1628 = vmatpush1.xpose.msra.mxu0 %v1627
  %1629 = vmatprep.subr.mxu0 0.0
  %v1630 = vand.u32 %v226, 4294901760
  %v1631 = vsub.f32 %v226, %v1630
  %1632 = vmatpush1.xpose.msra.mxu0 %v1631
  %1633 = vmatprep.subr.mxu0 0.0
  %v1634 = vand.u32 %v223, 4294901760
  %v1635 = vsub.f32 %v223, %v1634
  %1636 = vmatpush1.xpose.msra.mxu0 %v1635
  %1637 = vmatprep.subr.mxu0 0.0
  %v1638 = vand.u32 %v220, 4294901760
  %v1639 = vsub.f32 %v220, %v1638
  %1640 = vmatpush1.xpose.msra.mxu0 %v1639
  %1641 = vmatprep.subr.mxu0 0.0
  %v1642 = vand.u32 %v313, 4294901760
  %v1643 = vsub.f32 %v313, %v1642
  %1644 = vmatpush2.xpose.msra.mxu0 %v1643
  %1645 = vmatprep.subr.mxu0 0.0
  %v1646 = vand.u32 %v310, 4294901760
  %v1647 = vsub.f32 %v310, %v1646
  %1648 = vmatpush2.xpose.msra.mxu0 %v1647
  %1649 = vmatprep.subr.mxu0 0.0
  %v1650 = vand.u32 %v307, 4294901760
  %v1651 = vsub.f32 %v307, %v1650
  %1652 = vmatpush2.xpose.msra.mxu0 %v1651
  %1653 = vmatprep.subr.mxu0 0.0
  %v1654 = vand.u32 %v304, 4294901760
  %v1655 = vsub.f32 %v304, %v1654
  %1656 = vmatpush2.xpose.msra.mxu0 %v1655
  %1657 = vmatprep.subr.mxu0 0.0
  %v1658 = vand.u32 %v301, 4294901760
  %v1659 = vsub.f32 %v301, %v1658
  %1660 = vmatpush2.xpose.msra.mxu0 %v1659
  %1661 = vmatprep.subr.mxu0 0.0
  %v1662 = vand.u32 %v298, 4294901760
  %v1663 = vsub.f32 %v298, %v1662
  %1664 = vmatpush2.xpose.msra.mxu0 %v1663
  %1665 = vmatprep.subr.mxu0 0.0
  %v1666 = vand.u32 %v295, 4294901760
  %v1667 = vsub.f32 %v295, %v1666
  %1668 = vmatpush2.xpose.msra.mxu0 %v1667
  %1669 = vmatprep.subr.mxu0 0.0
  %v1670 = vand.u32 %v292, 4294901760
  %v1671 = vsub.f32 %v292, %v1670
  %1672 = vmatpush2.xpose.msra.mxu0 %v1671
  %1673 = vmatprep.subr.mxu0 0.0
  %v1674 = vand.u32 %v289, 4294901760
  %v1675 = vsub.f32 %v289, %v1674
  %1676 = vmatpush2.xpose.msra.mxu0 %v1675
  %1677 = vmatprep.subr.mxu0 0.0
  %v1678 = vand.u32 %v286, 4294901760
  %v1679 = vsub.f32 %v286, %v1678
  %1680 = vmatpush2.xpose.msra.mxu0 %v1679
  %1681 = vmatprep.subr.mxu0 0.0
  %v1682 = vand.u32 %v283, 4294901760
  %v1683 = vsub.f32 %v283, %v1682
  %1684 = vmatpush2.xpose.msra.mxu0 %v1683
  %1685 = vmatprep.subr.mxu0 0.0
  %v1686 = vand.u32 %v280, 4294901760
  %v1687 = vsub.f32 %v280, %v1686
  %1688 = vmatpush2.xpose.msra.mxu0 %v1687
  %1689 = vmatprep.subr.mxu0 0.0
  %v1690 = vand.u32 %v277, 4294901760
  %v1691 = vsub.f32 %v277, %v1690
  %1692 = vmatpush2.xpose.msra.mxu0 %v1691
  %1693 = vmatprep.subr.mxu0 0.0
  %v1694 = vand.u32 %v274, 4294901760
  %v1695 = vsub.f32 %v274, %v1694
  %1696 = vmatpush2.xpose.msra.mxu0 %v1695
  %1697 = vmatprep.subr.mxu0 0.0
  %v1698 = vand.u32 %v271, 4294901760
  %v1699 = vsub.f32 %v271, %v1698
  %1700 = vmatpush2.xpose.msra.mxu0 %v1699
  %1701 = vmatprep.subr.mxu0 0.0
  %v1702 = vand.u32 %v268, 4294901760
  %v1703 = vsub.f32 %v268, %v1702
  %1704 = vmatpush2.xpose.msra.mxu0 %v1703
  %1705 = vmatprep.mubr.f32.mxu0 0.0
  %v1706 = vand.u32 %v118, 4294901760
  %v1707 = vsub.f32 %v118, %v1706
  %1708 = vmatmul.mubr.f32.gmra.mxu0 %v1707
  %v1709 = vpop.f32.mrf.mxu0
  %v1710 = vadd.f32 %v1566, %v1709
  %v1711 = vpop.f32.mrf.mxu0
  %v1712 = vadd.f32 %v1568, %v1711
  %1713 = vmatprep.mubr.f32.mxu0 0.0
  %v1714 = vand.u32 %v121, 4294901760
  %v1715 = vsub.f32 %v121, %v1714
  %1716 = vmatmul.mubr.f32.gmra.mxu0 %v1715
  %v1717 = vpop.f32.mrf.mxu0
  %v1718 = vadd.f32 %v1573, %v1717
  %v1719 = vpop.f32.mrf.mxu0
  %v1720 = vadd.f32 %v1575, %v1719
  %1721 = vdwg.mxu0
  %1722 = vmatprep.subr.mxu0 0.0
  %v1723 = vand.u32 %v265, 4294901760
  %1724 = vmatpush1.xpose.msra.mxu0 %v1723
  %1725 = vmatprep.subr.mxu0 0.0
  %v1726 = vand.u32 %v262, 4294901760
  %1727 = vmatpush1.xpose.msra.mxu0 %v1726
  %1728 = vmatprep.subr.mxu0 0.0
  %v1729 = vand.u32 %v259, 4294901760
  %1730 = vmatpush1.xpose.msra.mxu0 %v1729
  %1731 = vmatprep.subr.mxu0 0.0
  %v1732 = vand.u32 %v256, 4294901760
  %1733 = vmatpush1.xpose.msra.mxu0 %v1732
  %1734 = vmatprep.subr.mxu0 0.0
  %v1735 = vand.u32 %v253, 4294901760
  %1736 = vmatpush1.xpose.msra.mxu0 %v1735
  %1737 = vmatprep.subr.mxu0 0.0
  %v1738 = vand.u32 %v250, 4294901760
  %1739 = vmatpush1.xpose.msra.mxu0 %v1738
  %1740 = vmatprep.subr.mxu0 0.0
  %v1741 = vand.u32 %v247, 4294901760
  %1742 = vmatpush1.xpose.msra.mxu0 %v1741
  %1743 = vmatprep.subr.mxu0 0.0
  %v1744 = vand.u32 %v244, 4294901760
  %1745 = vmatpush1.xpose.msra.mxu0 %v1744
  %1746 = vmatprep.subr.mxu0 0.0
  %v1747 = vand.u32 %v241, 4294901760
  %1748 = vmatpush1.xpose.msra.mxu0 %v1747
  %1749 = vmatprep.subr.mxu0 0.0
  %v1750 = vand.u32 %v238, 4294901760
  %1751 = vmatpush1.xpose.msra.mxu0 %v1750
  %1752 = vmatprep.subr.mxu0 0.0
  %v1753 = vand.u32 %v235, 4294901760
  %1754 = vmatpush1.xpose.msra.mxu0 %v1753
  %1755 = vmatprep.subr.mxu0 0.0
  %v1756 = vand.u32 %v232, 4294901760
  %1757 = vmatpush1.xpose.msra.mxu0 %v1756
  %1758 = vmatprep.subr.mxu0 0.0
  %v1759 = vand.u32 %v229, 4294901760
  %1760 = vmatpush1.xpose.msra.mxu0 %v1759
  %1761 = vmatprep.subr.mxu0 0.0
  %v1762 = vand.u32 %v226, 4294901760
  %1763 = vmatpush1.xpose.msra.mxu0 %v1762
  %1764 = vmatprep.subr.mxu0 0.0
  %v1765 = vand.u32 %v223, 4294901760
  %1766 = vmatpush1.xpose.msra.mxu0 %v1765
  %1767 = vmatprep.subr.mxu0 0.0
  %v1768 = vand.u32 %v220, 4294901760
  %1769 = vmatpush1.xpose.msra.mxu0 %v1768
  %1770 = vmatprep.subr.mxu0 0.0
  %v1771 = vand.u32 %v313, 4294901760
  %1772 = vmatpush2.xpose.msra.mxu0 %v1771
  %1773 = vmatprep.subr.mxu0 0.0
  %v1774 = vand.u32 %v310, 4294901760
  %1775 = vmatpush2.xpose.msra.mxu0 %v1774
  %1776 = vmatprep.subr.mxu0 0.0
  %v1777 = vand.u32 %v307, 4294901760
  %1778 = vmatpush2.xpose.msra.mxu0 %v1777
  %1779 = vmatprep.subr.mxu0 0.0
  %v1780 = vand.u32 %v304, 4294901760
  %1781 = vmatpush2.xpose.msra.mxu0 %v1780
  %1782 = vmatprep.subr.mxu0 0.0
  %v1783 = vand.u32 %v301, 4294901760
  %1784 = vmatpush2.xpose.msra.mxu0 %v1783
  %1785 = vmatprep.subr.mxu0 0.0
  %v1786 = vand.u32 %v298, 4294901760
  %1787 = vmatpush2.xpose.msra.mxu0 %v1786
  %1788 = vmatprep.subr.mxu0 0.0
  %v1789 = vand.u32 %v295, 4294901760
  %1790 = vmatpush2.xpose.msra.mxu0 %v1789
  %1791 = vmatprep.subr.mxu0 0.0
  %v1792 = vand.u32 %v292, 4294901760
  %1793 = vmatpush2.xpose.msra.mxu0 %v1792
  %1794 = vmatprep.subr.mxu0 0.0
  %v1795 = vand.u32 %v289, 4294901760
  %1796 = vmatpush2.xpose.msra.mxu0 %v1795
  %1797 = vmatprep.subr.mxu0 0.0
  %v1798 = vand.u32 %v286, 4294901760
  %1799 = vmatpush2.xpose.msra.mxu0 %v1798
  %1800 = vmatprep.subr.mxu0 0.0
  %v1801 = vand.u32 %v283, 4294901760
  %1802 = vmatpush2.xpose.msra.mxu0 %v1801
  %1803 = vmatprep.subr.mxu0 0.0
  %v1804 = vand.u32 %v280, 4294901760
  %1805 = vmatpush2.xpose.msra.mxu0 %v1804
  %1806 = vmatprep.subr.mxu0 0.0
  %v1807 = vand.u32 %v277, 4294901760
  %1808 = vmatpush2.xpose.msra.mxu0 %v1807
  %1809 = vmatprep.subr.mxu0 0.0
  %v1810 = vand.u32 %v274, 4294901760
  %1811 = vmatpush2.xpose.msra.mxu0 %v1810
  %1812 = vmatprep.subr.mxu0 0.0
  %v1813 = vand.u32 %v271, 4294901760
  %1814 = vmatpush2.xpose.msra.mxu0 %v1813
  %1815 = vmatprep.subr.mxu0 0.0
  %v1816 = vand.u32 %v268, 4294901760
  %1817 = vmatpush2.xpose.msra.mxu0 %v1816
  %1818 = vmatprep.mubr.f32.mxu0 0.0
  %v1819 = vand.u32 %v118, 4294901760
  %v1820 = vsub.f32 %v118, %v1819
  %v1821 = vand.u32 %v1820, 4294901760
  %1822 = vmatmul.mubr.f32.gmra.mxu0 %v1821
  %v1823 = vpop.f32.mrf.mxu0
  %v1824 = vadd.f32 %v1710, %v1823
  %v1825 = vpop.f32.mrf.mxu0
  %v1826 = vadd.f32 %v1712, %v1825
  %1827 = vmatprep.mubr.f32.mxu0 0.0
  %v1828 = vand.u32 %v121, 4294901760
  %v1829 = vsub.f32 %v121, %v1828
  %v1830 = vand.u32 %v1829, 4294901760
  %1831 = vmatmul.mubr.f32.gmra.mxu0 %v1830
  %v1832 = vpop.f32.mrf.mxu0
  %v1833 = vadd.f32 %v1718, %v1832
  %v1834 = vpop.f32.mrf.mxu0
  %v1835 = vadd.f32 %v1720, %v1834
  %1836 = vdwg.mxu0
  %1837 = vmatprep.subr.mxu0 0.0
  %v1838 = vand.u32 %v265, 4294901760
  %v1839 = vsub.f32 %v265, %v1838
  %v1840 = vand.u32 %v1839, 4294901760
  %1841 = vmatpush1.xpose.msra.mxu0 %v1840
  %1842 = vmatprep.subr.mxu0 0.0
  %v1843 = vand.u32 %v262, 4294901760
  %v1844 = vsub.f32 %v262, %v1843
  %v1845 = vand.u32 %v1844, 4294901760
  %1846 = vmatpush1.xpose.msra.mxu0 %v1845
  %1847 = vmatprep.subr.mxu0 0.0
  %v1848 = vand.u32 %v259, 4294901760
  %v1849 = vsub.f32 %v259, %v1848
  %v1850 = vand.u32 %v1849, 4294901760
  %1851 = vmatpush1.xpose.msra.mxu0 %v1850
  %1852 = vmatprep.subr.mxu0 0.0
  %v1853 = vand.u32 %v256, 4294901760
  %v1854 = vsub.f32 %v256, %v1853
  %v1855 = vand.u32 %v1854, 4294901760
  %1856 = vmatpush1.xpose.msra.mxu0 %v1855
  %1857 = vmatprep.subr.mxu0 0.0
  %v1858 = vand.u32 %v253, 4294901760
  %v1859 = vsub.f32 %v253, %v1858
  %v1860 = vand.u32 %v1859, 4294901760
  %1861 = vmatpush1.xpose.msra.mxu0 %v1860
  %1862 = vmatprep.subr.mxu0 0.0
  %v1863 = vand.u32 %v250, 4294901760
  %v1864 = vsub.f32 %v250, %v1863
  %v1865 = vand.u32 %v1864, 4294901760
  %1866 = vmatpush1.xpose.msra.mxu0 %v1865
  %1867 = vmatprep.subr.mxu0 0.0
  %v1868 = vand.u32 %v247, 4294901760
  %v1869 = vsub.f32 %v247, %v1868
  %v1870 = vand.u32 %v1869, 4294901760
  %1871 = vmatpush1.xpose.msra.mxu0 %v1870
  %1872 = vmatprep.subr.mxu0 0.0
  %v1873 = vand.u32 %v244, 4294901760
  %v1874 = vsub.f32 %v244, %v1873
  %v1875 = vand.u32 %v1874, 4294901760
  %1876 = vmatpush1.xpose.msra.mxu0 %v1875
  %1877 = vmatprep.subr.mxu0 0.0
  %v1878 = vand.u32 %v241, 4294901760
  %v1879 = vsub.f32 %v241, %v1878
  %v1880 = vand.u32 %v1879, 4294901760
  %1881 = vmatpush1.xpose.msra.mxu0 %v1880
  %1882 = vmatprep.subr.mxu0 0.0
  %v1883 = vand.u32 %v238, 4294901760
  %v1884 = vsub.f32 %v238, %v1883
  %v1885 = vand.u32 %v1884, 4294901760
  %1886 = vmatpush1.xpose.msra.mxu0 %v1885
  %1887 = vmatprep.subr.mxu0 0.0
  %v1888 = vand.u32 %v235, 4294901760
  %v1889 = vsub.f32 %v235, %v1888
  %v1890 = vand.u32 %v1889, 4294901760
  %1891 = vmatpush1.xpose.msra.mxu0 %v1890
  %1892 = vmatprep.subr.mxu0 0.0
  %v1893 = vand.u32 %v232, 4294901760
  %v1894 = vsub.f32 %v232, %v1893
  %v1895 = vand.u32 %v1894, 4294901760
  %1896 = vmatpush1.xpose.msra.mxu0 %v1895
  %1897 = vmatprep.subr.mxu0 0.0
  %v1898 = vand.u32 %v229, 4294901760
  %v1899 = vsub.f32 %v229, %v1898
  %v1900 = vand.u32 %v1899, 4294901760
  %1901 = vmatpush1.xpose.msra.mxu0 %v1900
  %1902 = vmatprep.subr.mxu0 0.0
  %v1903 = vand.u32 %v226, 4294901760
  %v1904 = vsub.f32 %v226, %v1903
  %v1905 = vand.u32 %v1904, 4294901760
  %1906 = vmatpush1.xpose.msra.mxu0 %v1905
  %1907 = vmatprep.subr.mxu0 0.0
  %v1908 = vand.u32 %v223, 4294901760
  %v1909 = vsub.f32 %v223, %v1908
  %v1910 = vand.u32 %v1909, 4294901760
  %1911 = vmatpush1.xpose.msra.mxu0 %v1910
  %1912 = vmatprep.subr.mxu0 0.0
  %v1913 = vand.u32 %v220, 4294901760
  %v1914 = vsub.f32 %v220, %v1913
  %v1915 = vand.u32 %v1914, 4294901760
  %1916 = vmatpush1.xpose.msra.mxu0 %v1915
  %1917 = vmatprep.subr.mxu0 0.0
  %v1918 = vand.u32 %v313, 4294901760
  %v1919 = vsub.f32 %v313, %v1918
  %v1920 = vand.u32 %v1919, 4294901760
  %1921 = vmatpush2.xpose.msra.mxu0 %v1920
  %1922 = vmatprep.subr.mxu0 0.0
  %v1923 = vand.u32 %v310, 4294901760
  %v1924 = vsub.f32 %v310, %v1923
  %v1925 = vand.u32 %v1924, 4294901760
  %1926 = vmatpush2.xpose.msra.mxu0 %v1925
  %1927 = vmatprep.subr.mxu0 0.0
  %v1928 = vand.u32 %v307, 4294901760
  %v1929 = vsub.f32 %v307, %v1928
  %v1930 = vand.u32 %v1929, 4294901760
  %1931 = vmatpush2.xpose.msra.mxu0 %v1930
  %1932 = vmatprep.subr.mxu0 0.0
  %v1933 = vand.u32 %v304, 4294901760
  %v1934 = vsub.f32 %v304, %v1933
  %v1935 = vand.u32 %v1934, 4294901760
  %1936 = vmatpush2.xpose.msra.mxu0 %v1935
  %1937 = vmatprep.subr.mxu0 0.0
  %v1938 = vand.u32 %v301, 4294901760
  %v1939 = vsub.f32 %v301, %v1938
  %v1940 = vand.u32 %v1939, 4294901760
  %1941 = vmatpush2.xpose.msra.mxu0 %v1940
  %1942 = vmatprep.subr.mxu0 0.0
  %v1943 = vand.u32 %v298, 4294901760
  %v1944 = vsub.f32 %v298, %v1943
  %v1945 = vand.u32 %v1944, 4294901760
  %1946 = vmatpush2.xpose.msra.mxu0 %v1945
  %1947 = vmatprep.subr.mxu0 0.0
  %v1948 = vand.u32 %v295, 4294901760
  %v1949 = vsub.f32 %v295, %v1948
  %v1950 = vand.u32 %v1949, 4294901760
  %1951 = vmatpush2.xpose.msra.mxu0 %v1950
  %1952 = vmatprep.subr.mxu0 0.0
  %v1953 = vand.u32 %v292, 4294901760
  %v1954 = vsub.f32 %v292, %v1953
  %v1955 = vand.u32 %v1954, 4294901760
  %1956 = vmatpush2.xpose.msra.mxu0 %v1955
  %1957 = vmatprep.subr.mxu0 0.0
  %v1958 = vand.u32 %v289, 4294901760
  %v1959 = vsub.f32 %v289, %v1958
  %v1960 = vand.u32 %v1959, 4294901760
  %1961 = vmatpush2.xpose.msra.mxu0 %v1960
  %1962 = vmatprep.subr.mxu0 0.0
  %v1963 = vand.u32 %v286, 4294901760
  %v1964 = vsub.f32 %v286, %v1963
  %v1965 = vand.u32 %v1964, 4294901760
  %1966 = vmatpush2.xpose.msra.mxu0 %v1965
  %1967 = vmatprep.subr.mxu0 0.0
  %v1968 = vand.u32 %v283, 4294901760
  %v1969 = vsub.f32 %v283, %v1968
  %v1970 = vand.u32 %v1969, 4294901760
  %1971 = vmatpush2.xpose.msra.mxu0 %v1970
  %1972 = vmatprep.subr.mxu0 0.0
  %v1973 = vand.u32 %v280, 4294901760
  %v1974 = vsub.f32 %v280, %v1973
  %v1975 = vand.u32 %v1974, 4294901760
  %1976 = vmatpush2.xpose.msra.mxu0 %v1975
  %1977 = vmatprep.subr.mxu0 0.0
  %v1978 = vand.u32 %v277, 4294901760
  %v1979 = vsub.f32 %v277, %v1978
  %v1980 = vand.u32 %v1979, 4294901760
  %1981 = vmatpush2.xpose.msra.mxu0 %v1980
  %1982 = vmatprep.subr.mxu0 0.0
  %v1983 = vand.u32 %v274, 4294901760
  %v1984 = vsub.f32 %v274, %v1983
  %v1985 = vand.u32 %v1984, 4294901760
  %1986 = vmatpush2.xpose.msra.mxu0 %v1985
  %1987 = vmatprep.subr.mxu0 0.0
  %v1988 = vand.u32 %v271, 4294901760
  %v1989 = vsub.f32 %v271, %v1988
  %v1990 = vand.u32 %v1989, 4294901760
  %1991 = vmatpush2.xpose.msra.mxu0 %v1990
  %1992 = vmatprep.subr.mxu0 0.0
  %v1993 = vand.u32 %v268, 4294901760
  %v1994 = vsub.f32 %v268, %v1993
  %v1995 = vand.u32 %v1994, 4294901760
  %1996 = vmatpush2.xpose.msra.mxu0 %v1995
  %1997 = vmatprep.mubr.f32.mxu0 0.0
  %v1998 = vand.u32 %v118, 4294901760
  %1999 = vmatmul.mubr.f32.gmra.mxu0 %v1998
  %v2000 = vpop.f32.mrf.mxu0
  %v2001 = vadd.f32 %v1824, %v2000
  %v2002 = vpop.f32.mrf.mxu0
  %v2003 = vadd.f32 %v1826, %v2002
  %2004 = vmatprep.mubr.f32.mxu0 0.0
  %v2005 = vand.u32 %v121, 4294901760
  %2006 = vmatmul.mubr.f32.gmra.mxu0 %v2005
  %v2007 = vpop.f32.mrf.mxu0
  %v2008 = vadd.f32 %v1833, %v2007
  %v2009 = vpop.f32.mrf.mxu0
  %v2010 = vadd.f32 %v1835, %v2009
  %2011 = vdwg.mxu0
  %2012 = vmatprep.subr.mxu0 0.0
  %v2013 = vand.u32 %v265, 4294901760
  %2014 = vmatpush1.xpose.msra.mxu0 %v2013
  %2015 = vmatprep.subr.mxu0 0.0
  %v2016 = vand.u32 %v262, 4294901760
  %2017 = vmatpush1.xpose.msra.mxu0 %v2016
  %2018 = vmatprep.subr.mxu0 0.0
  %v2019 = vand.u32 %v259, 4294901760
  %2020 = vmatpush1.xpose.msra.mxu0 %v2019
  %2021 = vmatprep.subr.mxu0 0.0
  %v2022 = vand.u32 %v256, 4294901760
  %2023 = vmatpush1.xpose.msra.mxu0 %v2022
  %2024 = vmatprep.subr.mxu0 0.0
  %v2025 = vand.u32 %v253, 4294901760
  %2026 = vmatpush1.xpose.msra.mxu0 %v2025
  %2027 = vmatprep.subr.mxu0 0.0
  %v2028 = vand.u32 %v250, 4294901760
  %2029 = vmatpush1.xpose.msra.mxu0 %v2028
  %2030 = vmatprep.subr.mxu0 0.0
  %v2031 = vand.u32 %v247, 4294901760
  %2032 = vmatpush1.xpose.msra.mxu0 %v2031
  %2033 = vmatprep.subr.mxu0 0.0
  %v2034 = vand.u32 %v244, 4294901760
  %2035 = vmatpush1.xpose.msra.mxu0 %v2034
  %2036 = vmatprep.subr.mxu0 0.0
  %v2037 = vand.u32 %v241, 4294901760
  %2038 = vmatpush1.xpose.msra.mxu0 %v2037
  %2039 = vmatprep.subr.mxu0 0.0
  %v2040 = vand.u32 %v238, 4294901760
  %2041 = vmatpush1.xpose.msra.mxu0 %v2040
  %2042 = vmatprep.subr.mxu0 0.0
  %v2043 = vand.u32 %v235, 4294901760
  %2044 = vmatpush1.xpose.msra.mxu0 %v2043
  %2045 = vmatprep.subr.mxu0 0.0
  %v2046 = vand.u32 %v232, 4294901760
  %2047 = vmatpush1.xpose.msra.mxu0 %v2046
  %2048 = vmatprep.subr.mxu0 0.0
  %v2049 = vand.u32 %v229, 4294901760
  %2050 = vmatpush1.xpose.msra.mxu0 %v2049
  %2051 = vmatprep.subr.mxu0 0.0
  %v2052 = vand.u32 %v226, 4294901760
  %2053 = vmatpush1.xpose.msra.mxu0 %v2052
  %2054 = vmatprep.subr.mxu0 0.0
  %v2055 = vand.u32 %v223, 4294901760
  %2056 = vmatpush1.xpose.msra.mxu0 %v2055
  %2057 = vmatprep.subr.mxu0 0.0
  %v2058 = vand.u32 %v220, 4294901760
  %2059 = vmatpush1.xpose.msra.mxu0 %v2058
  %2060 = vmatprep.subr.mxu0 0.0
  %v2061 = vand.u32 %v313, 4294901760
  %2062 = vmatpush2.xpose.msra.mxu0 %v2061
  %2063 = vmatprep.subr.mxu0 0.0
  %v2064 = vand.u32 %v310, 4294901760
  %2065 = vmatpush2.xpose.msra.mxu0 %v2064
  %2066 = vmatprep.subr.mxu0 0.0
  %v2067 = vand.u32 %v307, 4294901760
  %2068 = vmatpush2.xpose.msra.mxu0 %v2067
  %2069 = vmatprep.subr.mxu0 0.0
  %v2070 = vand.u32 %v304, 4294901760
  %2071 = vmatpush2.xpose.msra.mxu0 %v2070
  %2072 = vmatprep.subr.mxu0 0.0
  %v2073 = vand.u32 %v301, 4294901760
  %2074 = vmatpush2.xpose.msra.mxu0 %v2073
  %2075 = vmatprep.subr.mxu0 0.0
  %v2076 = vand.u32 %v298, 4294901760
  %2077 = vmatpush2.xpose.msra.mxu0 %v2076
  %2078 = vmatprep.subr.mxu0 0.0
  %v2079 = vand.u32 %v295, 4294901760
  %2080 = vmatpush2.xpose.msra.mxu0 %v2079
  %2081 = vmatprep.subr.mxu0 0.0
  %v2082 = vand.u32 %v292, 4294901760
  %2083 = vmatpush2.xpose.msra.mxu0 %v2082
  %2084 = vmatprep.subr.mxu0 0.0
  %v2085 = vand.u32 %v289, 4294901760
  %2086 = vmatpush2.xpose.msra.mxu0 %v2085
  %2087 = vmatprep.subr.mxu0 0.0
  %v2088 = vand.u32 %v286, 4294901760
  %2089 = vmatpush2.xpose.msra.mxu0 %v2088
  %2090 = vmatprep.subr.mxu0 0.0
  %v2091 = vand.u32 %v283, 4294901760
  %2092 = vmatpush2.xpose.msra.mxu0 %v2091
  %2093 = vmatprep.subr.mxu0 0.0
  %v2094 = vand.u32 %v280, 4294901760
  %2095 = vmatpush2.xpose.msra.mxu0 %v2094
  %2096 = vmatprep.subr.mxu0 0.0
  %v2097 = vand.u32 %v277, 4294901760
  %2098 = vmatpush2.xpose.msra.mxu0 %v2097
  %2099 = vmatprep.subr.mxu0 0.0
  %v2100 = vand.u32 %v274, 4294901760
  %2101 = vmatpush2.xpose.msra.mxu0 %v2100
  %2102 = vmatprep.subr.mxu0 0.0
  %v2103 = vand.u32 %v271, 4294901760
  %2104 = vmatpush2.xpose.msra.mxu0 %v2103
  %2105 = vmatprep.subr.mxu0 0.0
  %v2106 = vand.u32 %v268, 4294901760
  %2107 = vmatpush2.xpose.msra.mxu0 %v2106
  %2108 = vmatprep.mubr.f32.mxu0 0.0
  %v2109 = vand.u32 %v118, 4294901760
  %2110 = vmatmul.mubr.f32.gmra.mxu0 %v2109
  %v2111 = vpop.f32.mrf.mxu0
  %v2112 = vadd.f32 %v2001, %v2111
  %v2113 = vpop.f32.mrf.mxu0
  %v2114 = vadd.f32 %v2003, %v2113
  %2115 = vmatprep.mubr.f32.mxu0 0.0
  %v2116 = vand.u32 %v121, 4294901760
  %2117 = vmatmul.mubr.f32.gmra.mxu0 %v2116
  %v2118 = vpop.f32.mrf.mxu0
  %v2119 = vadd.f32 %v2008, %v2118
  %v2120 = vpop.f32.mrf.mxu0
  %v2121 = vadd.f32 %v2010, %v2120
  %2122 = vdwg.mxu0
  %v2123 = vmax.f32 %v1208, 0.0
  %v2124 = vmax.f32 %v1210, 0.0
  %v2125 = vmax.f32 %v2112, 0.0
  %v2126 = vmax.f32 %v2114, 0.0
  %v2127 = vmax.f32 %v1215, 0.0
  %v2128 = vmax.f32 %v1217, 0.0
  %v2129 = vmax.f32 %v2119, 0.0
  %v2130 = vmax.f32 %v2121, 0.0
  %2132 = vset.pattern.permute.xlu0 0
  %2133 = vperm.xlu0 %2132, %v36
  %v2134 = vpop.permute.xlu0 %2133
  %2137 = vset.pattern.permute.xlu0 0
  %2138 = vperm.xlu0 %2137, %v37
  %v2139 = vpop.permute.xlu0 %2138
  %2142 = vset.pattern.permute.xlu0 0
  %2143 = vperm.xlu0 %2142, %v38
  %v2144 = vpop.permute.xlu0 %2143
  %2147 = vset.pattern.permute.xlu0 0
  %2148 = vperm.xlu0 %2147, %v39
  %v2149 = vpop.permute.xlu0 %2148
  %vm2151 = vcmask 130048
  %v2153 = vsel %vm2151, %v32, 0
  %v2156 = vsel %vm2151, %v33, 0
  %v2159 = vsel %vm2151, %v34, 0
  %v2162 = vsel %vm2151, %v35, 0
  %2164 = vmatprep.subr.mxu0 0.0
  %2165 = vmatpush1.msra.mxu0 0.0
  %2166 = vmatprep.subr.mxu0 0.0
  %2167 = vmatpush1.msra.mxu0 0.0
  %2168 = vmatprep.subr.mxu0 0.0
  %2169 = vmatpush1.msra.mxu0 0.0
  %2170 = vmatprep.subr.mxu0 0.0
  %2171 = vmatpush1.msra.mxu0 0.0
  %2172 = vmatprep.subr.mxu0 0.0
  %2173 = vmatpush1.msra.mxu0 0.0
  %2174 = vmatprep.subr.mxu0 0.0
  %2175 = vmatpush1.msra.mxu0 0.0
  %2176 = vmatprep.subr.mxu0 0.0
  %2177 = vmatpush1.msra.mxu0 0.0
  %2178 = vmatprep.subr.mxu0 0.0
  %2179 = vmatpush1.msra.mxu0 0.0
  %2180 = vmatprep.subr.mxu0 0.0
  %2181 = vmatpush1.msra.mxu0 0.0
  %2182 = vmatprep.subr.mxu0 0.0
  %2183 = vmatpush1.msra.mxu0 0.0
  %2184 = vmatprep.subr.mxu0 0.0
  %2185 = vmatpush1.msra.mxu0 0.0
  %2186 = vmatprep.subr.mxu0 0.0
  %2187 = vmatpush1.msra.mxu0 0.0
  %2188 = vmatprep.subr.mxu0 0.0
  %2189 = vmatpush1.msra.mxu0 0.0
  %2190 = vmatprep.subr.mxu0 0.0
  %2191 = vmatpush1.msra.mxu0 0.0
  %v2192 = vand.u32 %v2128, 4294901760
  %2193 = vmatprep.subr.mxu0 %v2192
  %v2194 = vand.u32 %v2127, 4294901760
  %2195 = vmatpush1.msra.mxu0 %v2194
  %v2196 = vand.u32 %v2124, 4294901760
  %2197 = vmatprep.subr.mxu0 %v2196
  %v2198 = vand.u32 %v2123, 4294901760
  %2199 = vmatpush1.msra.mxu0 %v2198
  %2200 = vmatprep.subr.mxu0 0.0
  %2201 = vmatpush2.msra.mxu0 0.0
  %2202 = vmatprep.subr.mxu0 0.0
  %2203 = vmatpush2.msra.mxu0 0.0
  %2204 = vmatprep.subr.mxu0 0.0
  %2205 = vmatpush2.msra.mxu0 0.0
  %2206 = vmatprep.subr.mxu0 0.0
  %2207 = vmatpush2.msra.mxu0 0.0
  %2208 = vmatprep.subr.mxu0 0.0
  %2209 = vmatpush2.msra.mxu0 0.0
  %2210 = vmatprep.subr.mxu0 0.0
  %2211 = vmatpush2.msra.mxu0 0.0
  %2212 = vmatprep.subr.mxu0 0.0
  %2213 = vmatpush2.msra.mxu0 0.0
  %2214 = vmatprep.subr.mxu0 0.0
  %2215 = vmatpush2.msra.mxu0 0.0
  %2216 = vmatprep.subr.mxu0 0.0
  %2217 = vmatpush2.msra.mxu0 0.0
  %2218 = vmatprep.subr.mxu0 0.0
  %2219 = vmatpush2.msra.mxu0 0.0
  %2220 = vmatprep.subr.mxu0 0.0
  %2221 = vmatpush2.msra.mxu0 0.0
  %2222 = vmatprep.subr.mxu0 0.0
  %2223 = vmatpush2.msra.mxu0 0.0
  %2224 = vmatprep.subr.mxu0 0.0
  %2225 = vmatpush2.msra.mxu0 0.0
  %2226 = vmatprep.subr.mxu0 0.0
  %2227 = vmatpush2.msra.mxu0 0.0
  %2228 = vmatprep.subr.mxu0 0.0
  %2229 = vmatpush2.msra.mxu0 0.0
  %2230 = vmatprep.subr.mxu0 0.0
  %2231 = vmatpush2.msra.mxu0 0.0
  %2232 = vmatprep.mubr.f32.mxu0 0.0
  %v2233 = vand.u32 %v2153, 4294901760
  %v2234 = vsub.f32 %v2153, %v2233
  %v2235 = vand.u32 %v2234, 4294901760
  %v2236 = vsub.f32 %v2234, %v2235
  %v2237 = vand.u32 %v2236, 4294901760
  %2238 = vmatmul.mubr.f32.gmra.mxu0 %v2237
  %v2239 = vpop.f32.mrf.mxu0
  %v2240 = vadd.f32 %v2134, %v2239
  %v2241 = vpop.f32.mrf.mxu0
  %v2242 = vadd.f32 %v2134, %v2241
  %2243 = vmatprep.mubr.f32.mxu0 0.0
  %v2244 = vand.u32 %v2156, 4294901760
  %v2245 = vsub.f32 %v2156, %v2244
  %v2246 = vand.u32 %v2245, 4294901760
  %v2247 = vsub.f32 %v2245, %v2246
  %v2248 = vand.u32 %v2247, 4294901760
  %2249 = vmatmul.mubr.f32.gmra.mxu0 %v2248
  %v2250 = vpop.f32.mrf.mxu0
  %v2251 = vadd.f32 %v2139, %v2250
  %v2252 = vpop.f32.mrf.mxu0
  %v2253 = vadd.f32 %v2139, %v2252
  %2254 = vmatprep.mubr.f32.mxu0 0.0
  %v2255 = vand.u32 %v2159, 4294901760
  %v2256 = vsub.f32 %v2159, %v2255
  %v2257 = vand.u32 %v2256, 4294901760
  %v2258 = vsub.f32 %v2256, %v2257
  %v2259 = vand.u32 %v2258, 4294901760
  %2260 = vmatmul.mubr.f32.gmra.mxu0 %v2259
  %v2261 = vpop.f32.mrf.mxu0
  %v2262 = vadd.f32 %v2144, %v2261
  %v2263 = vpop.f32.mrf.mxu0
  %v2264 = vadd.f32 %v2144, %v2263
  %2265 = vmatprep.mubr.f32.mxu0 0.0
  %v2266 = vand.u32 %v2162, 4294901760
  %v2267 = vsub.f32 %v2162, %v2266
  %v2268 = vand.u32 %v2267, 4294901760
  %v2269 = vsub.f32 %v2267, %v2268
  %v2270 = vand.u32 %v2269, 4294901760
  %2271 = vmatmul.mubr.f32.gmra.mxu0 %v2270
  %v2272 = vpop.f32.mrf.mxu0
  %v2273 = vadd.f32 %v2149, %v2272
  %v2274 = vpop.f32.mrf.mxu0
  %v2275 = vadd.f32 %v2149, %v2274
  %2276 = vdwg.mxu0
  %2277 = vmatprep.subr.mxu0 0.0
  %2278 = vmatpush1.msra.mxu0 0.0
  %2279 = vmatprep.subr.mxu0 0.0
  %2280 = vmatpush1.msra.mxu0 0.0
  %2281 = vmatprep.subr.mxu0 0.0
  %2282 = vmatpush1.msra.mxu0 0.0
  %2283 = vmatprep.subr.mxu0 0.0
  %2284 = vmatpush1.msra.mxu0 0.0
  %2285 = vmatprep.subr.mxu0 0.0
  %2286 = vmatpush1.msra.mxu0 0.0
  %2287 = vmatprep.subr.mxu0 0.0
  %2288 = vmatpush1.msra.mxu0 0.0
  %2289 = vmatprep.subr.mxu0 0.0
  %2290 = vmatpush1.msra.mxu0 0.0
  %2291 = vmatprep.subr.mxu0 0.0
  %2292 = vmatpush1.msra.mxu0 0.0
  %2293 = vmatprep.subr.mxu0 0.0
  %2294 = vmatpush1.msra.mxu0 0.0
  %2295 = vmatprep.subr.mxu0 0.0
  %2296 = vmatpush1.msra.mxu0 0.0
  %2297 = vmatprep.subr.mxu0 0.0
  %2298 = vmatpush1.msra.mxu0 0.0
  %2299 = vmatprep.subr.mxu0 0.0
  %2300 = vmatpush1.msra.mxu0 0.0
  %2301 = vmatprep.subr.mxu0 0.0
  %2302 = vmatpush1.msra.mxu0 0.0
  %2303 = vmatprep.subr.mxu0 0.0
  %2304 = vmatpush1.msra.mxu0 0.0
  %v2305 = vand.u32 %v2128, 4294901760
  %v2306 = vsub.f32 %v2128, %v2305
  %v2307 = vand.u32 %v2306, 4294901760
  %v2308 = vsub.f32 %v2306, %v2307
  %v2309 = vand.u32 %v2308, 4294901760
  %2310 = vmatprep.subr.mxu0 %v2309
  %v2311 = vand.u32 %v2127, 4294901760
  %v2312 = vsub.f32 %v2127, %v2311
  %v2313 = vand.u32 %v2312, 4294901760
  %v2314 = vsub.f32 %v2312, %v2313
  %v2315 = vand.u32 %v2314, 4294901760
  %2316 = vmatpush1.msra.mxu0 %v2315
  %v2317 = vand.u32 %v2124, 4294901760
  %v2318 = vsub.f32 %v2124, %v2317
  %v2319 = vand.u32 %v2318, 4294901760
  %v2320 = vsub.f32 %v2318, %v2319
  %v2321 = vand.u32 %v2320, 4294901760
  %2322 = vmatprep.subr.mxu0 %v2321
  %v2323 = vand.u32 %v2123, 4294901760
  %v2324 = vsub.f32 %v2123, %v2323
  %v2325 = vand.u32 %v2324, 4294901760
  %v2326 = vsub.f32 %v2324, %v2325
  %v2327 = vand.u32 %v2326, 4294901760
  %2328 = vmatpush1.msra.mxu0 %v2327
  %2329 = vmatprep.subr.mxu0 0.0
  %2330 = vmatpush2.msra.mxu0 0.0
  %2331 = vmatprep.subr.mxu0 0.0
  %2332 = vmatpush2.msra.mxu0 0.0
  %2333 = vmatprep.subr.mxu0 0.0
  %2334 = vmatpush2.msra.mxu0 0.0
  %2335 = vmatprep.subr.mxu0 0.0
  %2336 = vmatpush2.msra.mxu0 0.0
  %2337 = vmatprep.subr.mxu0 0.0
  %2338 = vmatpush2.msra.mxu0 0.0
  %2339 = vmatprep.subr.mxu0 0.0
  %2340 = vmatpush2.msra.mxu0 0.0
  %2341 = vmatprep.subr.mxu0 0.0
  %2342 = vmatpush2.msra.mxu0 0.0
  %2343 = vmatprep.subr.mxu0 0.0
  %2344 = vmatpush2.msra.mxu0 0.0
  %2345 = vmatprep.subr.mxu0 0.0
  %2346 = vmatpush2.msra.mxu0 0.0
  %2347 = vmatprep.subr.mxu0 0.0
  %2348 = vmatpush2.msra.mxu0 0.0
  %2349 = vmatprep.subr.mxu0 0.0
  %2350 = vmatpush2.msra.mxu0 0.0
  %2351 = vmatprep.subr.mxu0 0.0
  %2352 = vmatpush2.msra.mxu0 0.0
  %2353 = vmatprep.subr.mxu0 0.0
  %2354 = vmatpush2.msra.mxu0 0.0
  %2355 = vmatprep.subr.mxu0 0.0
  %2356 = vmatpush2.msra.mxu0 0.0
  %2357 = vmatprep.subr.mxu0 0.0
  %2358 = vmatpush2.msra.mxu0 0.0
  %2359 = vmatprep.subr.mxu0 0.0
  %2360 = vmatpush2.msra.mxu0 0.0
  %2361 = vmatprep.mubr.f32.mxu0 0.0
  %v2362 = vand.u32 %v2153, 4294901760
  %2363 = vmatmul.mubr.f32.gmra.mxu0 %v2362
  %v2364 = vpop.f32.mrf.mxu0
  %v2365 = vadd.f32 %v2240, %v2364
  %v2366 = vpop.f32.mrf.mxu0
  %v2367 = vadd.f32 %v2242, %v2366
  %2368 = vmatprep.mubr.f32.mxu0 0.0
  %v2369 = vand.u32 %v2156, 4294901760
  %2370 = vmatmul.mubr.f32.gmra.mxu0 %v2369
  %v2371 = vpop.f32.mrf.mxu0
  %v2372 = vadd.f32 %v2251, %v2371
  %v2373 = vpop.f32.mrf.mxu0
  %v2374 = vadd.f32 %v2253, %v2373
  %2375 = vmatprep.mubr.f32.mxu0 0.0
  %v2376 = vand.u32 %v2159, 4294901760
  %2377 = vmatmul.mubr.f32.gmra.mxu0 %v2376
  %v2378 = vpop.f32.mrf.mxu0
  %v2379 = vadd.f32 %v2262, %v2378
  %v2380 = vpop.f32.mrf.mxu0
  %v2381 = vadd.f32 %v2264, %v2380
  %2382 = vmatprep.mubr.f32.mxu0 0.0
  %v2383 = vand.u32 %v2162, 4294901760
  %2384 = vmatmul.mubr.f32.gmra.mxu0 %v2383
  %v2385 = vpop.f32.mrf.mxu0
  %v2386 = vadd.f32 %v2273, %v2385
  %v2387 = vpop.f32.mrf.mxu0
  %v2388 = vadd.f32 %v2275, %v2387
  %2389 = vdwg.mxu0
  %2390 = vmatprep.subr.mxu0 0.0
  %2391 = vmatpush1.msra.mxu0 0.0
  %2392 = vmatprep.subr.mxu0 0.0
  %2393 = vmatpush1.msra.mxu0 0.0
  %2394 = vmatprep.subr.mxu0 0.0
  %2395 = vmatpush1.msra.mxu0 0.0
  %2396 = vmatprep.subr.mxu0 0.0
  %2397 = vmatpush1.msra.mxu0 0.0
  %2398 = vmatprep.subr.mxu0 0.0
  %2399 = vmatpush1.msra.mxu0 0.0
  %2400 = vmatprep.subr.mxu0 0.0
  %2401 = vmatpush1.msra.mxu0 0.0
  %2402 = vmatprep.subr.mxu0 0.0
  %2403 = vmatpush1.msra.mxu0 0.0
  %2404 = vmatprep.subr.mxu0 0.0
  %2405 = vmatpush1.msra.mxu0 0.0
  %2406 = vmatprep.subr.mxu0 0.0
  %2407 = vmatpush1.msra.mxu0 0.0
  %2408 = vmatprep.subr.mxu0 0.0
  %2409 = vmatpush1.msra.mxu0 0.0
  %2410 = vmatprep.subr.mxu0 0.0
  %2411 = vmatpush1.msra.mxu0 0.0
  %2412 = vmatprep.subr.mxu0 0.0
  %2413 = vmatpush1.msra.mxu0 0.0
  %2414 = vmatprep.subr.mxu0 0.0
  %2415 = vmatpush1.msra.mxu0 0.0
  %2416 = vmatprep.subr.mxu0 0.0
  %2417 = vmatpush1.msra.mxu0 0.0
  %v2418 = vand.u32 %v2128, 4294901760
  %v2419 = vsub.f32 %v2128, %v2418
  %2420 = vmatprep.subr.mxu0 %v2419
  %v2421 = vand.u32 %v2127, 4294901760
  %v2422 = vsub.f32 %v2127, %v2421
  %2423 = vmatpush1.msra.mxu0 %v2422
  %v2424 = vand.u32 %v2124, 4294901760
  %v2425 = vsub.f32 %v2124, %v2424
  %2426 = vmatprep.subr.mxu0 %v2425
  %v2427 = vand.u32 %v2123, 4294901760
  %v2428 = vsub.f32 %v2123, %v2427
  %2429 = vmatpush1.msra.mxu0 %v2428
  %2430 = vmatprep.subr.mxu0 0.0
  %2431 = vmatpush2.msra.mxu0 0.0
  %2432 = vmatprep.subr.mxu0 0.0
  %2433 = vmatpush2.msra.mxu0 0.0
  %2434 = vmatprep.subr.mxu0 0.0
  %2435 = vmatpush2.msra.mxu0 0.0
  %2436 = vmatprep.subr.mxu0 0.0
  %2437 = vmatpush2.msra.mxu0 0.0
  %2438 = vmatprep.subr.mxu0 0.0
  %2439 = vmatpush2.msra.mxu0 0.0
  %2440 = vmatprep.subr.mxu0 0.0
  %2441 = vmatpush2.msra.mxu0 0.0
  %2442 = vmatprep.subr.mxu0 0.0
  %2443 = vmatpush2.msra.mxu0 0.0
  %2444 = vmatprep.subr.mxu0 0.0
  %2445 = vmatpush2.msra.mxu0 0.0
  %2446 = vmatprep.subr.mxu0 0.0
  %2447 = vmatpush2.msra.mxu0 0.0
  %2448 = vmatprep.subr.mxu0 0.0
  %2449 = vmatpush2.msra.mxu0 0.0
  %2450 = vmatprep.subr.mxu0 0.0
  %2451 = vmatpush2.msra.mxu0 0.0
  %2452 = vmatprep.subr.mxu0 0.0
  %2453 = vmatpush2.msra.mxu0 0.0
  %2454 = vmatprep.subr.mxu0 0.0
  %2455 = vmatpush2.msra.mxu0 0.0
  %2456 = vmatprep.subr.mxu0 0.0
  %2457 = vmatpush2.msra.mxu0 0.0
  %2458 = vmatprep.subr.mxu0 0.0
  %2459 = vmatpush2.msra.mxu0 0.0
  %2460 = vmatprep.subr.mxu0 0.0
  %2461 = vmatpush2.msra.mxu0 0.0
  %2462 = vmatprep.mubr.f32.mxu0 0.0
  %v2463 = vand.u32 %v2153, 4294901760
  %v2464 = vsub.f32 %v2153, %v2463
  %2465 = vmatmul.mubr.f32.gmra.mxu0 %v2464
  %v2466 = vpop.f32.mrf.mxu0
  %v2467 = vadd.f32 %v2365, %v2466
  %v2468 = vpop.f32.mrf.mxu0
  %v2469 = vadd.f32 %v2367, %v2468
  %2470 = vmatprep.mubr.f32.mxu0 0.0
  %v2471 = vand.u32 %v2156, 4294901760
  %v2472 = vsub.f32 %v2156, %v2471
  %2473 = vmatmul.mubr.f32.gmra.mxu0 %v2472
  %v2474 = vpop.f32.mrf.mxu0
  %v2475 = vadd.f32 %v2372, %v2474
  %v2476 = vpop.f32.mrf.mxu0
  %v2477 = vadd.f32 %v2374, %v2476
  %2478 = vmatprep.mubr.f32.mxu0 0.0
  %v2479 = vand.u32 %v2159, 4294901760
  %v2480 = vsub.f32 %v2159, %v2479
  %2481 = vmatmul.mubr.f32.gmra.mxu0 %v2480
  %v2482 = vpop.f32.mrf.mxu0
  %v2483 = vadd.f32 %v2379, %v2482
  %v2484 = vpop.f32.mrf.mxu0
  %v2485 = vadd.f32 %v2381, %v2484
  %2486 = vmatprep.mubr.f32.mxu0 0.0
  %v2487 = vand.u32 %v2162, 4294901760
  %v2488 = vsub.f32 %v2162, %v2487
  %2489 = vmatmul.mubr.f32.gmra.mxu0 %v2488
  %v2490 = vpop.f32.mrf.mxu0
  %v2491 = vadd.f32 %v2386, %v2490
  %v2492 = vpop.f32.mrf.mxu0
  %v2493 = vadd.f32 %v2388, %v2492
  %2494 = vdwg.mxu0
  %2495 = vmatprep.subr.mxu0 0.0
  %2496 = vmatpush1.msra.mxu0 0.0
  %2497 = vmatprep.subr.mxu0 0.0
  %2498 = vmatpush1.msra.mxu0 0.0
  %2499 = vmatprep.subr.mxu0 0.0
  %2500 = vmatpush1.msra.mxu0 0.0
  %2501 = vmatprep.subr.mxu0 0.0
  %2502 = vmatpush1.msra.mxu0 0.0
  %2503 = vmatprep.subr.mxu0 0.0
  %2504 = vmatpush1.msra.mxu0 0.0
  %2505 = vmatprep.subr.mxu0 0.0
  %2506 = vmatpush1.msra.mxu0 0.0
  %2507 = vmatprep.subr.mxu0 0.0
  %2508 = vmatpush1.msra.mxu0 0.0
  %2509 = vmatprep.subr.mxu0 0.0
  %2510 = vmatpush1.msra.mxu0 0.0
  %2511 = vmatprep.subr.mxu0 0.0
  %2512 = vmatpush1.msra.mxu0 0.0
  %2513 = vmatprep.subr.mxu0 0.0
  %2514 = vmatpush1.msra.mxu0 0.0
  %2515 = vmatprep.subr.mxu0 0.0
  %2516 = vmatpush1.msra.mxu0 0.0
  %2517 = vmatprep.subr.mxu0 0.0
  %2518 = vmatpush1.msra.mxu0 0.0
  %2519 = vmatprep.subr.mxu0 0.0
  %2520 = vmatpush1.msra.mxu0 0.0
  %2521 = vmatprep.subr.mxu0 0.0
  %2522 = vmatpush1.msra.mxu0 0.0
  %v2523 = vand.u32 %v2128, 4294901760
  %2524 = vmatprep.subr.mxu0 %v2523
  %v2525 = vand.u32 %v2127, 4294901760
  %2526 = vmatpush1.msra.mxu0 %v2525
  %v2527 = vand.u32 %v2124, 4294901760
  %2528 = vmatprep.subr.mxu0 %v2527
  %v2529 = vand.u32 %v2123, 4294901760
  %2530 = vmatpush1.msra.mxu0 %v2529
  %2531 = vmatprep.subr.mxu0 0.0
  %2532 = vmatpush2.msra.mxu0 0.0
  %2533 = vmatprep.subr.mxu0 0.0
  %2534 = vmatpush2.msra.mxu0 0.0
  %2535 = vmatprep.subr.mxu0 0.0
  %2536 = vmatpush2.msra.mxu0 0.0
  %2537 = vmatprep.subr.mxu0 0.0
  %2538 = vmatpush2.msra.mxu0 0.0
  %2539 = vmatprep.subr.mxu0 0.0
  %2540 = vmatpush2.msra.mxu0 0.0
  %2541 = vmatprep.subr.mxu0 0.0
  %2542 = vmatpush2.msra.mxu0 0.0
  %2543 = vmatprep.subr.mxu0 0.0
  %2544 = vmatpush2.msra.mxu0 0.0
  %2545 = vmatprep.subr.mxu0 0.0
  %2546 = vmatpush2.msra.mxu0 0.0
  %2547 = vmatprep.subr.mxu0 0.0
  %2548 = vmatpush2.msra.mxu0 0.0
  %2549 = vmatprep.subr.mxu0 0.0
  %2550 = vmatpush2.msra.mxu0 0.0
  %2551 = vmatprep.subr.mxu0 0.0
  %2552 = vmatpush2.msra.mxu0 0.0
  %2553 = vmatprep.subr.mxu0 0.0
  %2554 = vmatpush2.msra.mxu0 0.0
  %2555 = vmatprep.subr.mxu0 0.0
  %2556 = vmatpush2.msra.mxu0 0.0
  %2557 = vmatprep.subr.mxu0 0.0
  %2558 = vmatpush2.msra.mxu0 0.0
  %2559 = vmatprep.subr.mxu0 0.0
  %2560 = vmatpush2.msra.mxu0 0.0
  %2561 = vmatprep.subr.mxu0 0.0
  %2562 = vmatpush2.msra.mxu0 0.0
  %2563 = vmatprep.mubr.f32.mxu0 0.0
  %v2564 = vand.u32 %v2153, 4294901760
  %v2565 = vsub.f32 %v2153, %v2564
  %v2566 = vand.u32 %v2565, 4294901760
  %2567 = vmatmul.mubr.f32.gmra.mxu0 %v2566
  %v2568 = vpop.f32.mrf.mxu0
  %v2569 = vadd.f32 %v2467, %v2568
  %v2570 = vpop.f32.mrf.mxu0
  %v2571 = vadd.f32 %v2469, %v2570
  %2572 = vmatprep.mubr.f32.mxu0 0.0
  %v2573 = vand.u32 %v2156, 4294901760
  %v2574 = vsub.f32 %v2156, %v2573
  %v2575 = vand.u32 %v2574, 4294901760
  %2576 = vmatmul.mubr.f32.gmra.mxu0 %v2575
  %v2577 = vpop.f32.mrf.mxu0
  %v2578 = vadd.f32 %v2475, %v2577
  %v2579 = vpop.f32.mrf.mxu0
  %v2580 = vadd.f32 %v2477, %v2579
  %2581 = vmatprep.mubr.f32.mxu0 0.0
  %v2582 = vand.u32 %v2159, 4294901760
  %v2583 = vsub.f32 %v2159, %v2582
  %v2584 = vand.u32 %v2583, 4294901760
  %2585 = vmatmul.mubr.f32.gmra.mxu0 %v2584
  %v2586 = vpop.f32.mrf.mxu0
  %v2587 = vadd.f32 %v2483, %v2586
  %v2588 = vpop.f32.mrf.mxu0
  %v2589 = vadd.f32 %v2485, %v2588
  %2590 = vmatprep.mubr.f32.mxu0 0.0
  %v2591 = vand.u32 %v2162, 4294901760
  %v2592 = vsub.f32 %v2162, %v2591
  %v2593 = vand.u32 %v2592, 4294901760
  %2594 = vmatmul.mubr.f32.gmra.mxu0 %v2593
  %v2595 = vpop.f32.mrf.mxu0
  %v2596 = vadd.f32 %v2491, %v2595
  %v2597 = vpop.f32.mrf.mxu0
  %v2598 = vadd.f32 %v2493, %v2597
  %2599 = vdwg.mxu0
  %2600 = vmatprep.subr.mxu0 0.0
  %2601 = vmatpush1.msra.mxu0 0.0
  %2602 = vmatprep.subr.mxu0 0.0
  %2603 = vmatpush1.msra.mxu0 0.0
  %2604 = vmatprep.subr.mxu0 0.0
  %2605 = vmatpush1.msra.mxu0 0.0
  %2606 = vmatprep.subr.mxu0 0.0
  %2607 = vmatpush1.msra.mxu0 0.0
  %2608 = vmatprep.subr.mxu0 0.0
  %2609 = vmatpush1.msra.mxu0 0.0
  %2610 = vmatprep.subr.mxu0 0.0
  %2611 = vmatpush1.msra.mxu0 0.0
  %2612 = vmatprep.subr.mxu0 0.0
  %2613 = vmatpush1.msra.mxu0 0.0
  %2614 = vmatprep.subr.mxu0 0.0
  %2615 = vmatpush1.msra.mxu0 0.0
  %2616 = vmatprep.subr.mxu0 0.0
  %2617 = vmatpush1.msra.mxu0 0.0
  %2618 = vmatprep.subr.mxu0 0.0
  %2619 = vmatpush1.msra.mxu0 0.0
  %2620 = vmatprep.subr.mxu0 0.0
  %2621 = vmatpush1.msra.mxu0 0.0
  %2622 = vmatprep.subr.mxu0 0.0
  %2623 = vmatpush1.msra.mxu0 0.0
  %2624 = vmatprep.subr.mxu0 0.0
  %2625 = vmatpush1.msra.mxu0 0.0
  %2626 = vmatprep.subr.mxu0 0.0
  %2627 = vmatpush1.msra.mxu0 0.0
  %v2628 = vand.u32 %v2128, 4294901760
  %v2629 = vsub.f32 %v2128, %v2628
  %v2630 = vand.u32 %v2629, 4294901760
  %2631 = vmatprep.subr.mxu0 %v2630
  %v2632 = vand.u32 %v2127, 4294901760
  %v2633 = vsub.f32 %v2127, %v2632
  %v2634 = vand.u32 %v2633, 4294901760
  %2635 = vmatpush1.msra.mxu0 %v2634
  %v2636 = vand.u32 %v2124, 4294901760
  %v2637 = vsub.f32 %v2124, %v2636
  %v2638 = vand.u32 %v2637, 4294901760
  %2639 = vmatprep.subr.mxu0 %v2638
  %v2640 = vand.u32 %v2123, 4294901760
  %v2641 = vsub.f32 %v2123, %v2640
  %v2642 = vand.u32 %v2641, 4294901760
  %2643 = vmatpush1.msra.mxu0 %v2642
  %2644 = vmatprep.subr.mxu0 0.0
  %2645 = vmatpush2.msra.mxu0 0.0
  %2646 = vmatprep.subr.mxu0 0.0
  %2647 = vmatpush2.msra.mxu0 0.0
  %2648 = vmatprep.subr.mxu0 0.0
  %2649 = vmatpush2.msra.mxu0 0.0
  %2650 = vmatprep.subr.mxu0 0.0
  %2651 = vmatpush2.msra.mxu0 0.0
  %2652 = vmatprep.subr.mxu0 0.0
  %2653 = vmatpush2.msra.mxu0 0.0
  %2654 = vmatprep.subr.mxu0 0.0
  %2655 = vmatpush2.msra.mxu0 0.0
  %2656 = vmatprep.subr.mxu0 0.0
  %2657 = vmatpush2.msra.mxu0 0.0
  %2658 = vmatprep.subr.mxu0 0.0
  %2659 = vmatpush2.msra.mxu0 0.0
  %2660 = vmatprep.subr.mxu0 0.0
  %2661 = vmatpush2.msra.mxu0 0.0
  %2662 = vmatprep.subr.mxu0 0.0
  %2663 = vmatpush2.msra.mxu0 0.0
  %2664 = vmatprep.subr.mxu0 0.0
  %2665 = vmatpush2.msra.mxu0 0.0
  %2666 = vmatprep.subr.mxu0 0.0
  %2667 = vmatpush2.msra.mxu0 0.0
  %2668 = vmatprep.subr.mxu0 0.0
  %2669 = vmatpush2.msra.mxu0 0.0
  %2670 = vmatprep.subr.mxu0 0.0
  %2671 = vmatpush2.msra.mxu0 0.0
  %2672 = vmatprep.subr.mxu0 0.0
  %2673 = vmatpush2.msra.mxu0 0.0
  %2674 = vmatprep.subr.mxu0 0.0
  %2675 = vmatpush2.msra.mxu0 0.0
  %2676 = vmatprep.mubr.f32.mxu0 0.0
  %v2677 = vand.u32 %v2153, 4294901760
  %2678 = vmatmul.mubr.f32.gmra.mxu0 %v2677
  %v2679 = vpop.f32.mrf.mxu0
  %v2680 = vadd.f32 %v2569, %v2679
  %v2681 = vpop.f32.mrf.mxu0
  %v2682 = vadd.f32 %v2571, %v2681
  %2683 = vmatprep.mubr.f32.mxu0 0.0
  %v2684 = vand.u32 %v2156, 4294901760
  %2685 = vmatmul.mubr.f32.gmra.mxu0 %v2684
  %v2686 = vpop.f32.mrf.mxu0
  %v2687 = vadd.f32 %v2578, %v2686
  %v2688 = vpop.f32.mrf.mxu0
  %v2689 = vadd.f32 %v2580, %v2688
  %2690 = vmatprep.mubr.f32.mxu0 0.0
  %v2691 = vand.u32 %v2159, 4294901760
  %2692 = vmatmul.mubr.f32.gmra.mxu0 %v2691
  %v2693 = vpop.f32.mrf.mxu0
  %v2694 = vadd.f32 %v2587, %v2693
  %v2695 = vpop.f32.mrf.mxu0
  %v2696 = vadd.f32 %v2589, %v2695
  %2697 = vmatprep.mubr.f32.mxu0 0.0
  %v2698 = vand.u32 %v2162, 4294901760
  %2699 = vmatmul.mubr.f32.gmra.mxu0 %v2698
  %v2700 = vpop.f32.mrf.mxu0
  %v2701 = vadd.f32 %v2596, %v2700
  %v2702 = vpop.f32.mrf.mxu0
  %v2703 = vadd.f32 %v2598, %v2702
  %2704 = vdwg.mxu0
  %2705 = vmatprep.subr.mxu0 0.0
  %2706 = vmatpush1.msra.mxu0 0.0
  %2707 = vmatprep.subr.mxu0 0.0
  %2708 = vmatpush1.msra.mxu0 0.0
  %2709 = vmatprep.subr.mxu0 0.0
  %2710 = vmatpush1.msra.mxu0 0.0
  %2711 = vmatprep.subr.mxu0 0.0
  %2712 = vmatpush1.msra.mxu0 0.0
  %2713 = vmatprep.subr.mxu0 0.0
  %2714 = vmatpush1.msra.mxu0 0.0
  %2715 = vmatprep.subr.mxu0 0.0
  %2716 = vmatpush1.msra.mxu0 0.0
  %2717 = vmatprep.subr.mxu0 0.0
  %2718 = vmatpush1.msra.mxu0 0.0
  %2719 = vmatprep.subr.mxu0 0.0
  %2720 = vmatpush1.msra.mxu0 0.0
  %2721 = vmatprep.subr.mxu0 0.0
  %2722 = vmatpush1.msra.mxu0 0.0
  %2723 = vmatprep.subr.mxu0 0.0
  %2724 = vmatpush1.msra.mxu0 0.0
  %2725 = vmatprep.subr.mxu0 0.0
  %2726 = vmatpush1.msra.mxu0 0.0
  %2727 = vmatprep.subr.mxu0 0.0
  %2728 = vmatpush1.msra.mxu0 0.0
  %2729 = vmatprep.subr.mxu0 0.0
  %2730 = vmatpush1.msra.mxu0 0.0
  %2731 = vmatprep.subr.mxu0 0.0
  %2732 = vmatpush1.msra.mxu0 0.0
  %v2733 = vand.u32 %v2128, 4294901760
  %2734 = vmatprep.subr.mxu0 %v2733
  %v2735 = vand.u32 %v2127, 4294901760
  %2736 = vmatpush1.msra.mxu0 %v2735
  %v2737 = vand.u32 %v2124, 4294901760
  %2738 = vmatprep.subr.mxu0 %v2737
  %v2739 = vand.u32 %v2123, 4294901760
  %2740 = vmatpush1.msra.mxu0 %v2739
  %2741 = vmatprep.subr.mxu0 0.0
  %2742 = vmatpush2.msra.mxu0 0.0
  %2743 = vmatprep.subr.mxu0 0.0
  %2744 = vmatpush2.msra.mxu0 0.0
  %2745 = vmatprep.subr.mxu0 0.0
  %2746 = vmatpush2.msra.mxu0 0.0
  %2747 = vmatprep.subr.mxu0 0.0
  %2748 = vmatpush2.msra.mxu0 0.0
  %2749 = vmatprep.subr.mxu0 0.0
  %2750 = vmatpush2.msra.mxu0 0.0
  %2751 = vmatprep.subr.mxu0 0.0
  %2752 = vmatpush2.msra.mxu0 0.0
  %2753 = vmatprep.subr.mxu0 0.0
  %2754 = vmatpush2.msra.mxu0 0.0
  %2755 = vmatprep.subr.mxu0 0.0
  %2756 = vmatpush2.msra.mxu0 0.0
  %2757 = vmatprep.subr.mxu0 0.0
  %2758 = vmatpush2.msra.mxu0 0.0
  %2759 = vmatprep.subr.mxu0 0.0
  %2760 = vmatpush2.msra.mxu0 0.0
  %2761 = vmatprep.subr.mxu0 0.0
  %2762 = vmatpush2.msra.mxu0 0.0
  %2763 = vmatprep.subr.mxu0 0.0
  %2764 = vmatpush2.msra.mxu0 0.0
  %2765 = vmatprep.subr.mxu0 0.0
  %2766 = vmatpush2.msra.mxu0 0.0
  %2767 = vmatprep.subr.mxu0 0.0
  %2768 = vmatpush2.msra.mxu0 0.0
  %2769 = vmatprep.subr.mxu0 0.0
  %2770 = vmatpush2.msra.mxu0 0.0
  %2771 = vmatprep.subr.mxu0 0.0
  %2772 = vmatpush2.msra.mxu0 0.0
  %2773 = vmatprep.mubr.f32.mxu0 0.0
  %v2774 = vand.u32 %v2153, 4294901760
  %2775 = vmatmul.mubr.f32.gmra.mxu0 %v2774
  %v2776 = vpop.f32.mrf.mxu0
  %v2777 = vadd.f32 %v2680, %v2776
  %v2778 = vpop.f32.mrf.mxu0
  %v2779 = vadd.f32 %v2682, %v2778
  %2780 = vmatprep.mubr.f32.mxu0 0.0
  %v2781 = vand.u32 %v2156, 4294901760
  %2782 = vmatmul.mubr.f32.gmra.mxu0 %v2781
  %v2783 = vpop.f32.mrf.mxu0
  %v2784 = vadd.f32 %v2687, %v2783
  %v2785 = vpop.f32.mrf.mxu0
  %v2786 = vadd.f32 %v2689, %v2785
  %2787 = vmatprep.mubr.f32.mxu0 0.0
  %v2788 = vand.u32 %v2159, 4294901760
  %2789 = vmatmul.mubr.f32.gmra.mxu0 %v2788
  %v2790 = vpop.f32.mrf.mxu0
  %v2791 = vadd.f32 %v2694, %v2790
  %v2792 = vpop.f32.mrf.mxu0
  %v2793 = vadd.f32 %v2696, %v2792
  %2794 = vmatprep.mubr.f32.mxu0 0.0
  %v2795 = vand.u32 %v2162, 4294901760
  %2796 = vmatmul.mubr.f32.gmra.mxu0 %v2795
  %v2797 = vpop.f32.mrf.mxu0
  %v2798 = vadd.f32 %v2701, %v2797
  %v2799 = vpop.f32.mrf.mxu0
  %v2800 = vadd.f32 %v2703, %v2799
  %2801 = vdwg.mxu0
  %2802 = vmatprep.subr.mxu0 0.0
  %2803 = vmatpush1.msra.mxu0 0.0
  %2804 = vmatprep.subr.mxu0 0.0
  %2805 = vmatpush1.msra.mxu0 0.0
  %2806 = vmatprep.subr.mxu0 0.0
  %2807 = vmatpush1.msra.mxu0 0.0
  %2808 = vmatprep.subr.mxu0 0.0
  %2809 = vmatpush1.msra.mxu0 0.0
  %2810 = vmatprep.subr.mxu0 0.0
  %2811 = vmatpush1.msra.mxu0 0.0
  %2812 = vmatprep.subr.mxu0 0.0
  %2813 = vmatpush1.msra.mxu0 0.0
  %2814 = vmatprep.subr.mxu0 0.0
  %2815 = vmatpush1.msra.mxu0 0.0
  %2816 = vmatprep.subr.mxu0 0.0
  %2817 = vmatpush1.msra.mxu0 0.0
  %2818 = vmatprep.subr.mxu0 0.0
  %2819 = vmatpush1.msra.mxu0 0.0
  %2820 = vmatprep.subr.mxu0 0.0
  %2821 = vmatpush1.msra.mxu0 0.0
  %2822 = vmatprep.subr.mxu0 0.0
  %2823 = vmatpush1.msra.mxu0 0.0
  %2824 = vmatprep.subr.mxu0 0.0
  %2825 = vmatpush1.msra.mxu0 0.0
  %2826 = vmatprep.subr.mxu0 0.0
  %2827 = vmatpush1.msra.mxu0 0.0
  %2828 = vmatprep.subr.mxu0 0.0
  %2829 = vmatpush1.msra.mxu0 0.0
  %v2830 = vand.u32 %v2130, 4294901760
  %2831 = vmatprep.subr.mxu0 %v2830
  %v2832 = vand.u32 %v2129, 4294901760
  %2833 = vmatpush1.msra.mxu0 %v2832
  %v2834 = vand.u32 %v2126, 4294901760
  %2835 = vmatprep.subr.mxu0 %v2834
  %v2836 = vand.u32 %v2125, 4294901760
  %2837 = vmatpush1.msra.mxu0 %v2836
  %2838 = vmatprep.subr.mxu0 0.0
  %2839 = vmatpush2.msra.mxu0 0.0
  %2840 = vmatprep.subr.mxu0 0.0
  %2841 = vmatpush2.msra.mxu0 0.0
  %2842 = vmatprep.subr.mxu0 0.0
  %2843 = vmatpush2.msra.mxu0 0.0
  %2844 = vmatprep.subr.mxu0 0.0
  %2845 = vmatpush2.msra.mxu0 0.0
  %2846 = vmatprep.subr.mxu0 0.0
  %2847 = vmatpush2.msra.mxu0 0.0
  %2848 = vmatprep.subr.mxu0 0.0
  %2849 = vmatpush2.msra.mxu0 0.0
  %2850 = vmatprep.subr.mxu0 0.0
  %2851 = vmatpush2.msra.mxu0 0.0
  %2852 = vmatprep.subr.mxu0 0.0
  %2853 = vmatpush2.msra.mxu0 0.0
  %2854 = vmatprep.subr.mxu0 0.0
  %2855 = vmatpush2.msra.mxu0 0.0
  %2856 = vmatprep.subr.mxu0 0.0
  %2857 = vmatpush2.msra.mxu0 0.0
  %2858 = vmatprep.subr.mxu0 0.0
  %2859 = vmatpush2.msra.mxu0 0.0
  %2860 = vmatprep.subr.mxu0 0.0
  %2861 = vmatpush2.msra.mxu0 0.0
  %2862 = vmatprep.subr.mxu0 0.0
  %2863 = vmatpush2.msra.mxu0 0.0
  %2864 = vmatprep.subr.mxu0 0.0
  %2865 = vmatpush2.msra.mxu0 0.0
  %2866 = vmatprep.subr.mxu0 0.0
  %2867 = vmatpush2.msra.mxu0 0.0
  %2868 = vmatprep.subr.mxu0 0.0
  %2869 = vmatpush2.msra.mxu0 0.0
  %2870 = vmatprep.mubr.f32.mxu0 0.0
  %v2871 = vand.u32 %v2153, 4294901760
  %v2872 = vsub.f32 %v2153, %v2871
  %v2873 = vand.u32 %v2872, 4294901760
  %v2874 = vsub.f32 %v2872, %v2873
  %v2875 = vand.u32 %v2874, 4294901760
  %2876 = vmatmul.mubr.f32.gmra.mxu0 %v2875
  %v2877 = vpop.f32.mrf.mxu0
  %v2878 = vadd.f32 %v2134, %v2877
  %v2879 = vpop.f32.mrf.mxu0
  %v2880 = vadd.f32 %v2134, %v2879
  %2881 = vmatprep.mubr.f32.mxu0 0.0
  %v2882 = vand.u32 %v2156, 4294901760
  %v2883 = vsub.f32 %v2156, %v2882
  %v2884 = vand.u32 %v2883, 4294901760
  %v2885 = vsub.f32 %v2883, %v2884
  %v2886 = vand.u32 %v2885, 4294901760
  %2887 = vmatmul.mubr.f32.gmra.mxu0 %v2886
  %v2888 = vpop.f32.mrf.mxu0
  %v2889 = vadd.f32 %v2139, %v2888
  %v2890 = vpop.f32.mrf.mxu0
  %v2891 = vadd.f32 %v2139, %v2890
  %2892 = vmatprep.mubr.f32.mxu0 0.0
  %v2893 = vand.u32 %v2159, 4294901760
  %v2894 = vsub.f32 %v2159, %v2893
  %v2895 = vand.u32 %v2894, 4294901760
  %v2896 = vsub.f32 %v2894, %v2895
  %v2897 = vand.u32 %v2896, 4294901760
  %2898 = vmatmul.mubr.f32.gmra.mxu0 %v2897
  %v2899 = vpop.f32.mrf.mxu0
  %v2900 = vadd.f32 %v2144, %v2899
  %v2901 = vpop.f32.mrf.mxu0
  %v2902 = vadd.f32 %v2144, %v2901
  %2903 = vmatprep.mubr.f32.mxu0 0.0
  %v2904 = vand.u32 %v2162, 4294901760
  %v2905 = vsub.f32 %v2162, %v2904
  %v2906 = vand.u32 %v2905, 4294901760
  %v2907 = vsub.f32 %v2905, %v2906
  %v2908 = vand.u32 %v2907, 4294901760
  %2909 = vmatmul.mubr.f32.gmra.mxu0 %v2908
  %v2910 = vpop.f32.mrf.mxu0
  %v2911 = vadd.f32 %v2149, %v2910
  %v2912 = vpop.f32.mrf.mxu0
  %v2913 = vadd.f32 %v2149, %v2912
  %2914 = vdwg.mxu0
  %2915 = vmatprep.subr.mxu0 0.0
  %2916 = vmatpush1.msra.mxu0 0.0
  %2917 = vmatprep.subr.mxu0 0.0
  %2918 = vmatpush1.msra.mxu0 0.0
  %2919 = vmatprep.subr.mxu0 0.0
  %2920 = vmatpush1.msra.mxu0 0.0
  %2921 = vmatprep.subr.mxu0 0.0
  %2922 = vmatpush1.msra.mxu0 0.0
  %2923 = vmatprep.subr.mxu0 0.0
  %2924 = vmatpush1.msra.mxu0 0.0
  %2925 = vmatprep.subr.mxu0 0.0
  %2926 = vmatpush1.msra.mxu0 0.0
  %2927 = vmatprep.subr.mxu0 0.0
  %2928 = vmatpush1.msra.mxu0 0.0
  %2929 = vmatprep.subr.mxu0 0.0
  %2930 = vmatpush1.msra.mxu0 0.0
  %2931 = vmatprep.subr.mxu0 0.0
  %2932 = vmatpush1.msra.mxu0 0.0
  %2933 = vmatprep.subr.mxu0 0.0
  %2934 = vmatpush1.msra.mxu0 0.0
  %2935 = vmatprep.subr.mxu0 0.0
  %2936 = vmatpush1.msra.mxu0 0.0
  %2937 = vmatprep.subr.mxu0 0.0
  %2938 = vmatpush1.msra.mxu0 0.0
  %2939 = vmatprep.subr.mxu0 0.0
  %2940 = vmatpush1.msra.mxu0 0.0
  %2941 = vmatprep.subr.mxu0 0.0
  %2942 = vmatpush1.msra.mxu0 0.0
  %v2943 = vand.u32 %v2130, 4294901760
  %v2944 = vsub.f32 %v2130, %v2943
  %v2945 = vand.u32 %v2944, 4294901760
  %v2946 = vsub.f32 %v2944, %v2945
  %v2947 = vand.u32 %v2946, 4294901760
  %2948 = vmatprep.subr.mxu0 %v2947
  %v2949 = vand.u32 %v2129, 4294901760
  %v2950 = vsub.f32 %v2129, %v2949
  %v2951 = vand.u32 %v2950, 4294901760
  %v2952 = vsub.f32 %v2950, %v2951
  %v2953 = vand.u32 %v2952, 4294901760
  %2954 = vmatpush1.msra.mxu0 %v2953
  %v2955 = vand.u32 %v2126, 4294901760
  %v2956 = vsub.f32 %v2126, %v2955
  %v2957 = vand.u32 %v2956, 4294901760
  %v2958 = vsub.f32 %v2956, %v2957
  %v2959 = vand.u32 %v2958, 4294901760
  %2960 = vmatprep.subr.mxu0 %v2959
  %v2961 = vand.u32 %v2125, 4294901760
  %v2962 = vsub.f32 %v2125, %v2961
  %v2963 = vand.u32 %v2962, 4294901760
  %v2964 = vsub.f32 %v2962, %v2963
  %v2965 = vand.u32 %v2964, 4294901760
  %2966 = vmatpush1.msra.mxu0 %v2965
  %2967 = vmatprep.subr.mxu0 0.0
  %2968 = vmatpush2.msra.mxu0 0.0
  %2969 = vmatprep.subr.mxu0 0.0
  %2970 = vmatpush2.msra.mxu0 0.0
  %2971 = vmatprep.subr.mxu0 0.0
  %2972 = vmatpush2.msra.mxu0 0.0
  %2973 = vmatprep.subr.mxu0 0.0
  %2974 = vmatpush2.msra.mxu0 0.0
  %2975 = vmatprep.subr.mxu0 0.0
  %2976 = vmatpush2.msra.mxu0 0.0
  %2977 = vmatprep.subr.mxu0 0.0
  %2978 = vmatpush2.msra.mxu0 0.0
  %2979 = vmatprep.subr.mxu0 0.0
  %2980 = vmatpush2.msra.mxu0 0.0
  %2981 = vmatprep.subr.mxu0 0.0
  %2982 = vmatpush2.msra.mxu0 0.0
  %2983 = vmatprep.subr.mxu0 0.0
  %2984 = vmatpush2.msra.mxu0 0.0
  %2985 = vmatprep.subr.mxu0 0.0
  %2986 = vmatpush2.msra.mxu0 0.0
  %2987 = vmatprep.subr.mxu0 0.0
  %2988 = vmatpush2.msra.mxu0 0.0
  %2989 = vmatprep.subr.mxu0 0.0
  %2990 = vmatpush2.msra.mxu0 0.0
  %2991 = vmatprep.subr.mxu0 0.0
  %2992 = vmatpush2.msra.mxu0 0.0
  %2993 = vmatprep.subr.mxu0 0.0
  %2994 = vmatpush2.msra.mxu0 0.0
  %2995 = vmatprep.subr.mxu0 0.0
  %2996 = vmatpush2.msra.mxu0 0.0
  %2997 = vmatprep.subr.mxu0 0.0
  %2998 = vmatpush2.msra.mxu0 0.0
  %2999 = vmatprep.mubr.f32.mxu0 0.0
  %v3000 = vand.u32 %v2153, 4294901760
  %3001 = vmatmul.mubr.f32.gmra.mxu0 %v3000
  %v3002 = vpop.f32.mrf.mxu0
  %v3003 = vadd.f32 %v2878, %v3002
  %v3004 = vpop.f32.mrf.mxu0
  %v3005 = vadd.f32 %v2880, %v3004
  %3006 = vmatprep.mubr.f32.mxu0 0.0
  %v3007 = vand.u32 %v2156, 4294901760
  %3008 = vmatmul.mubr.f32.gmra.mxu0 %v3007
  %v3009 = vpop.f32.mrf.mxu0
  %v3010 = vadd.f32 %v2889, %v3009
  %v3011 = vpop.f32.mrf.mxu0
  %v3012 = vadd.f32 %v2891, %v3011
  %3013 = vmatprep.mubr.f32.mxu0 0.0
  %v3014 = vand.u32 %v2159, 4294901760
  %3015 = vmatmul.mubr.f32.gmra.mxu0 %v3014
  %v3016 = vpop.f32.mrf.mxu0
  %v3017 = vadd.f32 %v2900, %v3016
  %v3018 = vpop.f32.mrf.mxu0
  %v3019 = vadd.f32 %v2902, %v3018
  %3020 = vmatprep.mubr.f32.mxu0 0.0
  %v3021 = vand.u32 %v2162, 4294901760
  %3022 = vmatmul.mubr.f32.gmra.mxu0 %v3021
  %v3023 = vpop.f32.mrf.mxu0
  %v3024 = vadd.f32 %v2911, %v3023
  %v3025 = vpop.f32.mrf.mxu0
  %v3026 = vadd.f32 %v2913, %v3025
  %3027 = vdwg.mxu0
  %3028 = vmatprep.subr.mxu0 0.0
  %3029 = vmatpush1.msra.mxu0 0.0
  %3030 = vmatprep.subr.mxu0 0.0
  %3031 = vmatpush1.msra.mxu0 0.0
  %3032 = vmatprep.subr.mxu0 0.0
  %3033 = vmatpush1.msra.mxu0 0.0
  %3034 = vmatprep.subr.mxu0 0.0
  %3035 = vmatpush1.msra.mxu0 0.0
  %3036 = vmatprep.subr.mxu0 0.0
  %3037 = vmatpush1.msra.mxu0 0.0
  %3038 = vmatprep.subr.mxu0 0.0
  %3039 = vmatpush1.msra.mxu0 0.0
  %3040 = vmatprep.subr.mxu0 0.0
  %3041 = vmatpush1.msra.mxu0 0.0
  %3042 = vmatprep.subr.mxu0 0.0
  %3043 = vmatpush1.msra.mxu0 0.0
  %3044 = vmatprep.subr.mxu0 0.0
  %3045 = vmatpush1.msra.mxu0 0.0
  %3046 = vmatprep.subr.mxu0 0.0
  %3047 = vmatpush1.msra.mxu0 0.0
  %3048 = vmatprep.subr.mxu0 0.0
  %3049 = vmatpush1.msra.mxu0 0.0
  %3050 = vmatprep.subr.mxu0 0.0
  %3051 = vmatpush1.msra.mxu0 0.0
  %3052 = vmatprep.subr.mxu0 0.0
  %3053 = vmatpush1.msra.mxu0 0.0
  %3054 = vmatprep.subr.mxu0 0.0
  %3055 = vmatpush1.msra.mxu0 0.0
  %v3056 = vand.u32 %v2130, 4294901760
  %v3057 = vsub.f32 %v2130, %v3056
  %3058 = vmatprep.subr.mxu0 %v3057
  %v3059 = vand.u32 %v2129, 4294901760
  %v3060 = vsub.f32 %v2129, %v3059
  %3061 = vmatpush1.msra.mxu0 %v3060
  %v3062 = vand.u32 %v2126, 4294901760
  %v3063 = vsub.f32 %v2126, %v3062
  %3064 = vmatprep.subr.mxu0 %v3063
  %v3065 = vand.u32 %v2125, 4294901760
  %v3066 = vsub.f32 %v2125, %v3065
  %3067 = vmatpush1.msra.mxu0 %v3066
  %3068 = vmatprep.subr.mxu0 0.0
  %3069 = vmatpush2.msra.mxu0 0.0
  %3070 = vmatprep.subr.mxu0 0.0
  %3071 = vmatpush2.msra.mxu0 0.0
  %3072 = vmatprep.subr.mxu0 0.0
  %3073 = vmatpush2.msra.mxu0 0.0
  %3074 = vmatprep.subr.mxu0 0.0
  %3075 = vmatpush2.msra.mxu0 0.0
  %3076 = vmatprep.subr.mxu0 0.0
  %3077 = vmatpush2.msra.mxu0 0.0
  %3078 = vmatprep.subr.mxu0 0.0
  %3079 = vmatpush2.msra.mxu0 0.0
  %3080 = vmatprep.subr.mxu0 0.0
  %3081 = vmatpush2.msra.mxu0 0.0
  %3082 = vmatprep.subr.mxu0 0.0
  %3083 = vmatpush2.msra.mxu0 0.0
  %3084 = vmatprep.subr.mxu0 0.0
  %3085 = vmatpush2.msra.mxu0 0.0
  %3086 = vmatprep.subr.mxu0 0.0
  %3087 = vmatpush2.msra.mxu0 0.0
  %3088 = vmatprep.subr.mxu0 0.0
  %3089 = vmatpush2.msra.mxu0 0.0
  %3090 = vmatprep.subr.mxu0 0.0
  %3091 = vmatpush2.msra.mxu0 0.0
  %3092 = vmatprep.subr.mxu0 0.0
  %3093 = vmatpush2.msra.mxu0 0.0
  %3094 = vmatprep.subr.mxu0 0.0
  %3095 = vmatpush2.msra.mxu0 0.0
  %3096 = vmatprep.subr.mxu0 0.0
  %3097 = vmatpush2.msra.mxu0 0.0
  %3098 = vmatprep.subr.mxu0 0.0
  %3099 = vmatpush2.msra.mxu0 0.0
  %3100 = vmatprep.mubr.f32.mxu0 0.0
  %v3101 = vand.u32 %v2153, 4294901760
  %v3102 = vsub.f32 %v2153, %v3101
  %3103 = vmatmul.mubr.f32.gmra.mxu0 %v3102
  %v3104 = vpop.f32.mrf.mxu0
  %v3105 = vadd.f32 %v3003, %v3104
  %v3106 = vpop.f32.mrf.mxu0
  %v3107 = vadd.f32 %v3005, %v3106
  %3108 = vmatprep.mubr.f32.mxu0 0.0
  %v3109 = vand.u32 %v2156, 4294901760
  %v3110 = vsub.f32 %v2156, %v3109
  %3111 = vmatmul.mubr.f32.gmra.mxu0 %v3110
  %v3112 = vpop.f32.mrf.mxu0
  %v3113 = vadd.f32 %v3010, %v3112
  %v3114 = vpop.f32.mrf.mxu0
  %v3115 = vadd.f32 %v3012, %v3114
  %3116 = vmatprep.mubr.f32.mxu0 0.0
  %v3117 = vand.u32 %v2159, 4294901760
  %v3118 = vsub.f32 %v2159, %v3117
  %3119 = vmatmul.mubr.f32.gmra.mxu0 %v3118
  %v3120 = vpop.f32.mrf.mxu0
  %v3121 = vadd.f32 %v3017, %v3120
  %v3122 = vpop.f32.mrf.mxu0
  %v3123 = vadd.f32 %v3019, %v3122
  %3124 = vmatprep.mubr.f32.mxu0 0.0
  %v3125 = vand.u32 %v2162, 4294901760
  %v3126 = vsub.f32 %v2162, %v3125
  %3127 = vmatmul.mubr.f32.gmra.mxu0 %v3126
  %v3128 = vpop.f32.mrf.mxu0
  %v3129 = vadd.f32 %v3024, %v3128
  %v3130 = vpop.f32.mrf.mxu0
  %v3131 = vadd.f32 %v3026, %v3130
  %3132 = vdwg.mxu0
  %3133 = vmatprep.subr.mxu0 0.0
  %3134 = vmatpush1.msra.mxu0 0.0
  %3135 = vmatprep.subr.mxu0 0.0
  %3136 = vmatpush1.msra.mxu0 0.0
  %3137 = vmatprep.subr.mxu0 0.0
  %3138 = vmatpush1.msra.mxu0 0.0
  %3139 = vmatprep.subr.mxu0 0.0
  %3140 = vmatpush1.msra.mxu0 0.0
  %3141 = vmatprep.subr.mxu0 0.0
  %3142 = vmatpush1.msra.mxu0 0.0
  %3143 = vmatprep.subr.mxu0 0.0
  %3144 = vmatpush1.msra.mxu0 0.0
  %3145 = vmatprep.subr.mxu0 0.0
  %3146 = vmatpush1.msra.mxu0 0.0
  %3147 = vmatprep.subr.mxu0 0.0
  %3148 = vmatpush1.msra.mxu0 0.0
  %3149 = vmatprep.subr.mxu0 0.0
  %3150 = vmatpush1.msra.mxu0 0.0
  %3151 = vmatprep.subr.mxu0 0.0
  %3152 = vmatpush1.msra.mxu0 0.0
  %3153 = vmatprep.subr.mxu0 0.0
  %3154 = vmatpush1.msra.mxu0 0.0
  %3155 = vmatprep.subr.mxu0 0.0
  %3156 = vmatpush1.msra.mxu0 0.0
  %3157 = vmatprep.subr.mxu0 0.0
  %3158 = vmatpush1.msra.mxu0 0.0
  %3159 = vmatprep.subr.mxu0 0.0
  %3160 = vmatpush1.msra.mxu0 0.0
  %v3161 = vand.u32 %v2130, 4294901760
  %3162 = vmatprep.subr.mxu0 %v3161
  %v3163 = vand.u32 %v2129, 4294901760
  %3164 = vmatpush1.msra.mxu0 %v3163
  %v3165 = vand.u32 %v2126, 4294901760
  %3166 = vmatprep.subr.mxu0 %v3165
  %v3167 = vand.u32 %v2125, 4294901760
  %3168 = vmatpush1.msra.mxu0 %v3167
  %3169 = vmatprep.subr.mxu0 0.0
  %3170 = vmatpush2.msra.mxu0 0.0
  %3171 = vmatprep.subr.mxu0 0.0
  %3172 = vmatpush2.msra.mxu0 0.0
  %3173 = vmatprep.subr.mxu0 0.0
  %3174 = vmatpush2.msra.mxu0 0.0
  %3175 = vmatprep.subr.mxu0 0.0
  %3176 = vmatpush2.msra.mxu0 0.0
  %3177 = vmatprep.subr.mxu0 0.0
  %3178 = vmatpush2.msra.mxu0 0.0
  %3179 = vmatprep.subr.mxu0 0.0
  %3180 = vmatpush2.msra.mxu0 0.0
  %3181 = vmatprep.subr.mxu0 0.0
  %3182 = vmatpush2.msra.mxu0 0.0
  %3183 = vmatprep.subr.mxu0 0.0
  %3184 = vmatpush2.msra.mxu0 0.0
  %3185 = vmatprep.subr.mxu0 0.0
  %3186 = vmatpush2.msra.mxu0 0.0
  %3187 = vmatprep.subr.mxu0 0.0
  %3188 = vmatpush2.msra.mxu0 0.0
  %3189 = vmatprep.subr.mxu0 0.0
  %3190 = vmatpush2.msra.mxu0 0.0
  %3191 = vmatprep.subr.mxu0 0.0
  %3192 = vmatpush2.msra.mxu0 0.0
  %3193 = vmatprep.subr.mxu0 0.0
  %3194 = vmatpush2.msra.mxu0 0.0
  %3195 = vmatprep.subr.mxu0 0.0
  %3196 = vmatpush2.msra.mxu0 0.0
  %3197 = vmatprep.subr.mxu0 0.0
  %3198 = vmatpush2.msra.mxu0 0.0
  %3199 = vmatprep.subr.mxu0 0.0
  %3200 = vmatpush2.msra.mxu0 0.0
  %3201 = vmatprep.mubr.f32.mxu0 0.0
  %v3202 = vand.u32 %v2153, 4294901760
  %v3203 = vsub.f32 %v2153, %v3202
  %v3204 = vand.u32 %v3203, 4294901760
  %3205 = vmatmul.mubr.f32.gmra.mxu0 %v3204
  %v3206 = vpop.f32.mrf.mxu0
  %v3207 = vadd.f32 %v3105, %v3206
  %v3208 = vpop.f32.mrf.mxu0
  %v3209 = vadd.f32 %v3107, %v3208
  %3210 = vmatprep.mubr.f32.mxu0 0.0
  %v3211 = vand.u32 %v2156, 4294901760
  %v3212 = vsub.f32 %v2156, %v3211
  %v3213 = vand.u32 %v3212, 4294901760
  %3214 = vmatmul.mubr.f32.gmra.mxu0 %v3213
  %v3215 = vpop.f32.mrf.mxu0
  %v3216 = vadd.f32 %v3113, %v3215
  %v3217 = vpop.f32.mrf.mxu0
  %v3218 = vadd.f32 %v3115, %v3217
  %3219 = vmatprep.mubr.f32.mxu0 0.0
  %v3220 = vand.u32 %v2159, 4294901760
  %v3221 = vsub.f32 %v2159, %v3220
  %v3222 = vand.u32 %v3221, 4294901760
  %3223 = vmatmul.mubr.f32.gmra.mxu0 %v3222
  %v3224 = vpop.f32.mrf.mxu0
  %v3225 = vadd.f32 %v3121, %v3224
  %v3226 = vpop.f32.mrf.mxu0
  %v3227 = vadd.f32 %v3123, %v3226
  %3228 = vmatprep.mubr.f32.mxu0 0.0
  %v3229 = vand.u32 %v2162, 4294901760
  %v3230 = vsub.f32 %v2162, %v3229
  %v3231 = vand.u32 %v3230, 4294901760
  %3232 = vmatmul.mubr.f32.gmra.mxu0 %v3231
  %v3233 = vpop.f32.mrf.mxu0
  %v3234 = vadd.f32 %v3129, %v3233
  %v3235 = vpop.f32.mrf.mxu0
  %v3236 = vadd.f32 %v3131, %v3235
  %3237 = vdwg.mxu0
  %3238 = vmatprep.subr.mxu0 0.0
  %3239 = vmatpush1.msra.mxu0 0.0
  %3240 = vmatprep.subr.mxu0 0.0
  %3241 = vmatpush1.msra.mxu0 0.0
  %3242 = vmatprep.subr.mxu0 0.0
  %3243 = vmatpush1.msra.mxu0 0.0
  %3244 = vmatprep.subr.mxu0 0.0
  %3245 = vmatpush1.msra.mxu0 0.0
  %3246 = vmatprep.subr.mxu0 0.0
  %3247 = vmatpush1.msra.mxu0 0.0
  %3248 = vmatprep.subr.mxu0 0.0
  %3249 = vmatpush1.msra.mxu0 0.0
  %3250 = vmatprep.subr.mxu0 0.0
  %3251 = vmatpush1.msra.mxu0 0.0
  %3252 = vmatprep.subr.mxu0 0.0
  %3253 = vmatpush1.msra.mxu0 0.0
  %3254 = vmatprep.subr.mxu0 0.0
  %3255 = vmatpush1.msra.mxu0 0.0
  %3256 = vmatprep.subr.mxu0 0.0
  %3257 = vmatpush1.msra.mxu0 0.0
  %3258 = vmatprep.subr.mxu0 0.0
  %3259 = vmatpush1.msra.mxu0 0.0
  %3260 = vmatprep.subr.mxu0 0.0
  %3261 = vmatpush1.msra.mxu0 0.0
  %3262 = vmatprep.subr.mxu0 0.0
  %3263 = vmatpush1.msra.mxu0 0.0
  %3264 = vmatprep.subr.mxu0 0.0
  %3265 = vmatpush1.msra.mxu0 0.0
  %v3266 = vand.u32 %v2130, 4294901760
  %v3267 = vsub.f32 %v2130, %v3266
  %v3268 = vand.u32 %v3267, 4294901760
  %3269 = vmatprep.subr.mxu0 %v3268
  %v3270 = vand.u32 %v2129, 4294901760
  %v3271 = vsub.f32 %v2129, %v3270
  %v3272 = vand.u32 %v3271, 4294901760
  %3273 = vmatpush1.msra.mxu0 %v3272
  %v3274 = vand.u32 %v2126, 4294901760
  %v3275 = vsub.f32 %v2126, %v3274
  %v3276 = vand.u32 %v3275, 4294901760
  %3277 = vmatprep.subr.mxu0 %v3276
  %v3278 = vand.u32 %v2125, 4294901760
  %v3279 = vsub.f32 %v2125, %v3278
  %v3280 = vand.u32 %v3279, 4294901760
  %3281 = vmatpush1.msra.mxu0 %v3280
  %3282 = vmatprep.subr.mxu0 0.0
  %3283 = vmatpush2.msra.mxu0 0.0
  %3284 = vmatprep.subr.mxu0 0.0
  %3285 = vmatpush2.msra.mxu0 0.0
  %3286 = vmatprep.subr.mxu0 0.0
  %3287 = vmatpush2.msra.mxu0 0.0
  %3288 = vmatprep.subr.mxu0 0.0
  %3289 = vmatpush2.msra.mxu0 0.0
  %3290 = vmatprep.subr.mxu0 0.0
  %3291 = vmatpush2.msra.mxu0 0.0
  %3292 = vmatprep.subr.mxu0 0.0
  %3293 = vmatpush2.msra.mxu0 0.0
  %3294 = vmatprep.subr.mxu0 0.0
  %3295 = vmatpush2.msra.mxu0 0.0
  %3296 = vmatprep.subr.mxu0 0.0
  %3297 = vmatpush2.msra.mxu0 0.0
  %3298 = vmatprep.subr.mxu0 0.0
  %3299 = vmatpush2.msra.mxu0 0.0
  %3300 = vmatprep.subr.mxu0 0.0
  %3301 = vmatpush2.msra.mxu0 0.0
  %3302 = vmatprep.subr.mxu0 0.0
  %3303 = vmatpush2.msra.mxu0 0.0
  %3304 = vmatprep.subr.mxu0 0.0
  %3305 = vmatpush2.msra.mxu0 0.0
  %3306 = vmatprep.subr.mxu0 0.0
  %3307 = vmatpush2.msra.mxu0 0.0
  %3308 = vmatprep.subr.mxu0 0.0
  %3309 = vmatpush2.msra.mxu0 0.0
  %3310 = vmatprep.subr.mxu0 0.0
  %3311 = vmatpush2.msra.mxu0 0.0
  %3312 = vmatprep.subr.mxu0 0.0
  %3313 = vmatpush2.msra.mxu0 0.0
  %3314 = vmatprep.mubr.f32.mxu0 0.0
  %v3315 = vand.u32 %v2153, 4294901760
  %3316 = vmatmul.mubr.f32.gmra.mxu0 %v3315
  %v3317 = vpop.f32.mrf.mxu0
  %v3318 = vadd.f32 %v3207, %v3317
  %v3319 = vpop.f32.mrf.mxu0
  %v3320 = vadd.f32 %v3209, %v3319
  %3321 = vmatprep.mubr.f32.mxu0 0.0
  %v3322 = vand.u32 %v2156, 4294901760
  %3323 = vmatmul.mubr.f32.gmra.mxu0 %v3322
  %v3324 = vpop.f32.mrf.mxu0
  %v3325 = vadd.f32 %v3216, %v3324
  %v3326 = vpop.f32.mrf.mxu0
  %v3327 = vadd.f32 %v3218, %v3326
  %3328 = vmatprep.mubr.f32.mxu0 0.0
  %v3329 = vand.u32 %v2159, 4294901760
  %3330 = vmatmul.mubr.f32.gmra.mxu0 %v3329
  %v3331 = vpop.f32.mrf.mxu0
  %v3332 = vadd.f32 %v3225, %v3331
  %v3333 = vpop.f32.mrf.mxu0
  %v3334 = vadd.f32 %v3227, %v3333
  %3335 = vmatprep.mubr.f32.mxu0 0.0
  %v3336 = vand.u32 %v2162, 4294901760
  %3337 = vmatmul.mubr.f32.gmra.mxu0 %v3336
  %v3338 = vpop.f32.mrf.mxu0
  %v3339 = vadd.f32 %v3234, %v3338
  %v3340 = vpop.f32.mrf.mxu0
  %v3341 = vadd.f32 %v3236, %v3340
  %3342 = vdwg.mxu0
  %3343 = vmatprep.subr.mxu0 0.0
  %3344 = vmatpush1.msra.mxu0 0.0
  %3345 = vmatprep.subr.mxu0 0.0
  %3346 = vmatpush1.msra.mxu0 0.0
  %3347 = vmatprep.subr.mxu0 0.0
  %3348 = vmatpush1.msra.mxu0 0.0
  %3349 = vmatprep.subr.mxu0 0.0
  %3350 = vmatpush1.msra.mxu0 0.0
  %3351 = vmatprep.subr.mxu0 0.0
  %3352 = vmatpush1.msra.mxu0 0.0
  %3353 = vmatprep.subr.mxu0 0.0
  %3354 = vmatpush1.msra.mxu0 0.0
  %3355 = vmatprep.subr.mxu0 0.0
  %3356 = vmatpush1.msra.mxu0 0.0
  %3357 = vmatprep.subr.mxu0 0.0
  %3358 = vmatpush1.msra.mxu0 0.0
  %3359 = vmatprep.subr.mxu0 0.0
  %3360 = vmatpush1.msra.mxu0 0.0
  %3361 = vmatprep.subr.mxu0 0.0
  %3362 = vmatpush1.msra.mxu0 0.0
  %3363 = vmatprep.subr.mxu0 0.0
  %3364 = vmatpush1.msra.mxu0 0.0
  %3365 = vmatprep.subr.mxu0 0.0
  %3366 = vmatpush1.msra.mxu0 0.0
  %3367 = vmatprep.subr.mxu0 0.0
  %3368 = vmatpush1.msra.mxu0 0.0
  %3369 = vmatprep.subr.mxu0 0.0
  %3370 = vmatpush1.msra.mxu0 0.0
  %v3371 = vand.u32 %v2130, 4294901760
  %3372 = vmatprep.subr.mxu0 %v3371
  %v3373 = vand.u32 %v2129, 4294901760
  %3374 = vmatpush1.msra.mxu0 %v3373
  %v3375 = vand.u32 %v2126, 4294901760
  %3376 = vmatprep.subr.mxu0 %v3375
  %v3377 = vand.u32 %v2125, 4294901760
  %3378 = vmatpush1.msra.mxu0 %v3377
  %3379 = vmatprep.subr.mxu0 0.0
  %3380 = vmatpush2.msra.mxu0 0.0
  %3381 = vmatprep.subr.mxu0 0.0
  %3382 = vmatpush2.msra.mxu0 0.0
  %3383 = vmatprep.subr.mxu0 0.0
  %3384 = vmatpush2.msra.mxu0 0.0
  %3385 = vmatprep.subr.mxu0 0.0
  %3386 = vmatpush2.msra.mxu0 0.0
  %3387 = vmatprep.subr.mxu0 0.0
  %3388 = vmatpush2.msra.mxu0 0.0
  %3389 = vmatprep.subr.mxu0 0.0
  %3390 = vmatpush2.msra.mxu0 0.0
  %3391 = vmatprep.subr.mxu0 0.0
  %3392 = vmatpush2.msra.mxu0 0.0
  %3393 = vmatprep.subr.mxu0 0.0
  %3394 = vmatpush2.msra.mxu0 0.0
  %3395 = vmatprep.subr.mxu0 0.0
  %3396 = vmatpush2.msra.mxu0 0.0
  %3397 = vmatprep.subr.mxu0 0.0
  %3398 = vmatpush2.msra.mxu0 0.0
  %3399 = vmatprep.subr.mxu0 0.0
  %3400 = vmatpush2.msra.mxu0 0.0
  %3401 = vmatprep.subr.mxu0 0.0
  %3402 = vmatpush2.msra.mxu0 0.0
  %3403 = vmatprep.subr.mxu0 0.0
  %3404 = vmatpush2.msra.mxu0 0.0
  %3405 = vmatprep.subr.mxu0 0.0
  %3406 = vmatpush2.msra.mxu0 0.0
  %3407 = vmatprep.subr.mxu0 0.0
  %3408 = vmatpush2.msra.mxu0 0.0
  %3409 = vmatprep.subr.mxu0 0.0
  %3410 = vmatpush2.msra.mxu0 0.0
  %3411 = vmatprep.mubr.f32.mxu0 0.0
  %v3412 = vand.u32 %v2153, 4294901760
  %3413 = vmatmul.mubr.f32.gmra.mxu0 %v3412
  %v3414 = vpop.f32.mrf.mxu0
  %v3415 = vadd.f32 %v3318, %v3414
  %v3416 = vpop.f32.mrf.mxu0
  %v3417 = vadd.f32 %v3320, %v3416
  %3418 = vmatprep.mubr.f32.mxu0 0.0
  %v3419 = vand.u32 %v2156, 4294901760
  %3420 = vmatmul.mubr.f32.gmra.mxu0 %v3419
  %v3421 = vpop.f32.mrf.mxu0
  %v3422 = vadd.f32 %v3325, %v3421
  %v3423 = vpop.f32.mrf.mxu0
  %v3424 = vadd.f32 %v3327, %v3423
  %3425 = vmatprep.mubr.f32.mxu0 0.0
  %v3426 = vand.u32 %v2159, 4294901760
  %3427 = vmatmul.mubr.f32.gmra.mxu0 %v3426
  %v3428 = vpop.f32.mrf.mxu0
  %v3429 = vadd.f32 %v3332, %v3428
  %v3430 = vpop.f32.mrf.mxu0
  %v3431 = vadd.f32 %v3334, %v3430
  %3432 = vmatprep.mubr.f32.mxu0 0.0
  %v3433 = vand.u32 %v2162, 4294901760
  %3434 = vmatmul.mubr.f32.gmra.mxu0 %v3433
  %v3435 = vpop.f32.mrf.mxu0
  %v3436 = vadd.f32 %v3339, %v3435
  %v3437 = vpop.f32.mrf.mxu0
  %v3438 = vadd.f32 %v3341, %v3437
  %3439 = vdwg.mxu0
  %v3440 = vmax.f32 %v2777, 0.0
  %v3441 = vmax.f32 %v2779, 0.0
  %v3442 = vmax.f32 %v3415, 0.0
  %v3443 = vmax.f32 %v3417, 0.0
  %v3444 = vmax.f32 %v2784, 0.0
  %v3445 = vmax.f32 %v2786, 0.0
  %v3446 = vmax.f32 %v3422, 0.0
  %v3447 = vmax.f32 %v3424, 0.0
  %v3448 = vmax.f32 %v2791, 0.0
  %v3449 = vmax.f32 %v2793, 0.0
  %v3450 = vmax.f32 %v3429, 0.0
  %v3451 = vmax.f32 %v3431, 0.0
  %v3452 = vmax.f32 %v2798, 0.0
  %v3453 = vmax.f32 %v2800, 0.0
  %v3454 = vmax.f32 %v3436, 0.0
  %v3455 = vmax.f32 %v3438, 0.0
  %3457 = vset.pattern.permute.xlu0 0
  %3458 = vperm.xlu0 %3457, %v41
  %v3459 = vpop.permute.xlu0 %3458
  %v3461 = vlaneseq
  %v3462 = vshrl.u32 %v3461, 7
  %v3463 = vsub.s32 0, %v3462
  %v3464 = vrot.slane %v3459, %v3463
  %vm3465 = vcmask 261120
  %v3467 = vsel %vm3465, %v40, 0
  %3469 = vmatprep.subr.mxu0 0.0
  %3470 = vmatpush1.msra.mxu0 0.0
  %3471 = vmatprep.subr.mxu0 0.0
  %3472 = vmatpush1.msra.mxu0 0.0
  %3473 = vmatprep.subr.mxu0 0.0
  %3474 = vmatpush1.msra.mxu0 0.0
  %3475 = vmatprep.subr.mxu0 0.0
  %3476 = vmatpush1.msra.mxu0 0.0
  %3477 = vmatprep.subr.mxu0 0.0
  %3478 = vmatpush1.msra.mxu0 0.0
  %3479 = vmatprep.subr.mxu0 0.0
  %3480 = vmatpush1.msra.mxu0 0.0
  %3481 = vmatprep.subr.mxu0 0.0
  %3482 = vmatpush1.msra.mxu0 0.0
  %3483 = vmatprep.subr.mxu0 0.0
  %3484 = vmatpush1.msra.mxu0 0.0
  %3485 = vmatprep.subr.mxu0 0.0
  %3486 = vmatpush1.msra.mxu0 0.0
  %3487 = vmatprep.subr.mxu0 0.0
  %3488 = vmatpush1.msra.mxu0 0.0
  %3489 = vmatprep.subr.mxu0 0.0
  %3490 = vmatpush1.msra.mxu0 0.0
  %3491 = vmatprep.subr.mxu0 0.0
  %3492 = vmatpush1.msra.mxu0 0.0
  %v3493 = vand.u32 %v3453, 4294901760
  %3494 = vmatprep.subr.mxu0 %v3493
  %v3495 = vand.u32 %v3452, 4294901760
  %3496 = vmatpush1.msra.mxu0 %v3495
  %v3497 = vand.u32 %v3449, 4294901760
  %3498 = vmatprep.subr.mxu0 %v3497
  %v3499 = vand.u32 %v3448, 4294901760
  %3500 = vmatpush1.msra.mxu0 %v3499
  %v3501 = vand.u32 %v3445, 4294901760
  %3502 = vmatprep.subr.mxu0 %v3501
  %v3503 = vand.u32 %v3444, 4294901760
  %3504 = vmatpush1.msra.mxu0 %v3503
  %v3505 = vand.u32 %v3441, 4294901760
  %3506 = vmatprep.subr.mxu0 %v3505
  %v3507 = vand.u32 %v3440, 4294901760
  %3508 = vmatpush1.msra.mxu0 %v3507
  %3509 = vmatprep.subr.mxu0 0.0
  %3510 = vmatpush2.msra.mxu0 0.0
  %3511 = vmatprep.subr.mxu0 0.0
  %3512 = vmatpush2.msra.mxu0 0.0
  %3513 = vmatprep.subr.mxu0 0.0
  %3514 = vmatpush2.msra.mxu0 0.0
  %3515 = vmatprep.subr.mxu0 0.0
  %3516 = vmatpush2.msra.mxu0 0.0
  %3517 = vmatprep.subr.mxu0 0.0
  %3518 = vmatpush2.msra.mxu0 0.0
  %3519 = vmatprep.subr.mxu0 0.0
  %3520 = vmatpush2.msra.mxu0 0.0
  %3521 = vmatprep.subr.mxu0 0.0
  %3522 = vmatpush2.msra.mxu0 0.0
  %3523 = vmatprep.subr.mxu0 0.0
  %3524 = vmatpush2.msra.mxu0 0.0
  %3525 = vmatprep.subr.mxu0 0.0
  %3526 = vmatpush2.msra.mxu0 0.0
  %3527 = vmatprep.subr.mxu0 0.0
  %3528 = vmatpush2.msra.mxu0 0.0
  %3529 = vmatprep.subr.mxu0 0.0
  %3530 = vmatpush2.msra.mxu0 0.0
  %3531 = vmatprep.subr.mxu0 0.0
  %3532 = vmatpush2.msra.mxu0 0.0
  %3533 = vmatprep.subr.mxu0 0.0
  %3534 = vmatpush2.msra.mxu0 0.0
  %3535 = vmatprep.subr.mxu0 0.0
  %3536 = vmatpush2.msra.mxu0 0.0
  %3537 = vmatprep.subr.mxu0 0.0
  %3538 = vmatpush2.msra.mxu0 0.0
  %3539 = vmatprep.subr.mxu0 0.0
  %3540 = vmatpush2.msra.mxu0 0.0
  %3541 = vmatprep.mubr.f32.mxu0 0.0
  %v3542 = vand.u32 %v3467, 4294901760
  %v3543 = vsub.f32 %v3467, %v3542
  %v3544 = vand.u32 %v3543, 4294901760
  %v3545 = vsub.f32 %v3543, %v3544
  %v3546 = vand.u32 %v3545, 4294901760
  %3547 = vmatmul.mubr.f32.gmra.mxu0 %v3546
  %v3548 = vpop.f32.mrf.mxu0
  %v3549 = vadd.f32 %v3464, %v3548
  %v3550 = vpop.f32.mrf.mxu0
  %v3551 = vadd.f32 %v3464, %v3550
  %3552 = vdwg.mxu0
  %3553 = vmatprep.subr.mxu0 0.0
  %3554 = vmatpush1.msra.mxu0 0.0
  %3555 = vmatprep.subr.mxu0 0.0
  %3556 = vmatpush1.msra.mxu0 0.0
  %3557 = vmatprep.subr.mxu0 0.0
  %3558 = vmatpush1.msra.mxu0 0.0
  %3559 = vmatprep.subr.mxu0 0.0
  %3560 = vmatpush1.msra.mxu0 0.0
  %3561 = vmatprep.subr.mxu0 0.0
  %3562 = vmatpush1.msra.mxu0 0.0
  %3563 = vmatprep.subr.mxu0 0.0
  %3564 = vmatpush1.msra.mxu0 0.0
  %3565 = vmatprep.subr.mxu0 0.0
  %3566 = vmatpush1.msra.mxu0 0.0
  %3567 = vmatprep.subr.mxu0 0.0
  %3568 = vmatpush1.msra.mxu0 0.0
  %3569 = vmatprep.subr.mxu0 0.0
  %3570 = vmatpush1.msra.mxu0 0.0
  %3571 = vmatprep.subr.mxu0 0.0
  %3572 = vmatpush1.msra.mxu0 0.0
  %3573 = vmatprep.subr.mxu0 0.0
  %3574 = vmatpush1.msra.mxu0 0.0
  %3575 = vmatprep.subr.mxu0 0.0
  %3576 = vmatpush1.msra.mxu0 0.0
  %v3577 = vand.u32 %v3453, 4294901760
  %v3578 = vsub.f32 %v3453, %v3577
  %v3579 = vand.u32 %v3578, 4294901760
  %v3580 = vsub.f32 %v3578, %v3579
  %v3581 = vand.u32 %v3580, 4294901760
  %3582 = vmatprep.subr.mxu0 %v3581
  %v3583 = vand.u32 %v3452, 4294901760
  %v3584 = vsub.f32 %v3452, %v3583
  %v3585 = vand.u32 %v3584, 4294901760
  %v3586 = vsub.f32 %v3584, %v3585
  %v3587 = vand.u32 %v3586, 4294901760
  %3588 = vmatpush1.msra.mxu0 %v3587
  %v3589 = vand.u32 %v3449, 4294901760
  %v3590 = vsub.f32 %v3449, %v3589
  %v3591 = vand.u32 %v3590, 4294901760
  %v3592 = vsub.f32 %v3590, %v3591
  %v3593 = vand.u32 %v3592, 4294901760
  %3594 = vmatprep.subr.mxu0 %v3593
  %v3595 = vand.u32 %v3448, 4294901760
  %v3596 = vsub.f32 %v3448, %v3595
  %v3597 = vand.u32 %v3596, 4294901760
  %v3598 = vsub.f32 %v3596, %v3597
  %v3599 = vand.u32 %v3598, 4294901760
  %3600 = vmatpush1.msra.mxu0 %v3599
  %v3601 = vand.u32 %v3445, 4294901760
  %v3602 = vsub.f32 %v3445, %v3601
  %v3603 = vand.u32 %v3602, 4294901760
  %v3604 = vsub.f32 %v3602, %v3603
  %v3605 = vand.u32 %v3604, 4294901760
  %3606 = vmatprep.subr.mxu0 %v3605
  %v3607 = vand.u32 %v3444, 4294901760
  %v3608 = vsub.f32 %v3444, %v3607
  %v3609 = vand.u32 %v3608, 4294901760
  %v3610 = vsub.f32 %v3608, %v3609
  %v3611 = vand.u32 %v3610, 4294901760
  %3612 = vmatpush1.msra.mxu0 %v3611
  %v3613 = vand.u32 %v3441, 4294901760
  %v3614 = vsub.f32 %v3441, %v3613
  %v3615 = vand.u32 %v3614, 4294901760
  %v3616 = vsub.f32 %v3614, %v3615
  %v3617 = vand.u32 %v3616, 4294901760
  %3618 = vmatprep.subr.mxu0 %v3617
  %v3619 = vand.u32 %v3440, 4294901760
  %v3620 = vsub.f32 %v3440, %v3619
  %v3621 = vand.u32 %v3620, 4294901760
  %v3622 = vsub.f32 %v3620, %v3621
  %v3623 = vand.u32 %v3622, 4294901760
  %3624 = vmatpush1.msra.mxu0 %v3623
  %3625 = vmatprep.subr.mxu0 0.0
  %3626 = vmatpush2.msra.mxu0 0.0
  %3627 = vmatprep.subr.mxu0 0.0
  %3628 = vmatpush2.msra.mxu0 0.0
  %3629 = vmatprep.subr.mxu0 0.0
  %3630 = vmatpush2.msra.mxu0 0.0
  %3631 = vmatprep.subr.mxu0 0.0
  %3632 = vmatpush2.msra.mxu0 0.0
  %3633 = vmatprep.subr.mxu0 0.0
  %3634 = vmatpush2.msra.mxu0 0.0
  %3635 = vmatprep.subr.mxu0 0.0
  %3636 = vmatpush2.msra.mxu0 0.0
  %3637 = vmatprep.subr.mxu0 0.0
  %3638 = vmatpush2.msra.mxu0 0.0
  %3639 = vmatprep.subr.mxu0 0.0
  %3640 = vmatpush2.msra.mxu0 0.0
  %3641 = vmatprep.subr.mxu0 0.0
  %3642 = vmatpush2.msra.mxu0 0.0
  %3643 = vmatprep.subr.mxu0 0.0
  %3644 = vmatpush2.msra.mxu0 0.0
  %3645 = vmatprep.subr.mxu0 0.0
  %3646 = vmatpush2.msra.mxu0 0.0
  %3647 = vmatprep.subr.mxu0 0.0
  %3648 = vmatpush2.msra.mxu0 0.0
  %3649 = vmatprep.subr.mxu0 0.0
  %3650 = vmatpush2.msra.mxu0 0.0
  %3651 = vmatprep.subr.mxu0 0.0
  %3652 = vmatpush2.msra.mxu0 0.0
  %3653 = vmatprep.subr.mxu0 0.0
  %3654 = vmatpush2.msra.mxu0 0.0
  %3655 = vmatprep.subr.mxu0 0.0
  %3656 = vmatpush2.msra.mxu0 0.0
  %3657 = vmatprep.mubr.f32.mxu0 0.0
  %v3658 = vand.u32 %v3467, 4294901760
  %3659 = vmatmul.mubr.f32.gmra.mxu0 %v3658
  %v3660 = vpop.f32.mrf.mxu0
  %v3661 = vadd.f32 %v3549, %v3660
  %v3662 = vpop.f32.mrf.mxu0
  %v3663 = vadd.f32 %v3551, %v3662
  %3664 = vdwg.mxu0
  %3665 = vmatprep.subr.mxu0 0.0
  %3666 = vmatpush1.msra.mxu0 0.0
  %3667 = vmatprep.subr.mxu0 0.0
  %3668 = vmatpush1.msra.mxu0 0.0
  %3669 = vmatprep.subr.mxu0 0.0
  %3670 = vmatpush1.msra.mxu0 0.0
  %3671 = vmatprep.subr.mxu0 0.0
  %3672 = vmatpush1.msra.mxu0 0.0
  %3673 = vmatprep.subr.mxu0 0.0
  %3674 = vmatpush1.msra.mxu0 0.0
  %3675 = vmatprep.subr.mxu0 0.0
  %3676 = vmatpush1.msra.mxu0 0.0
  %3677 = vmatprep.subr.mxu0 0.0
  %3678 = vmatpush1.msra.mxu0 0.0
  %3679 = vmatprep.subr.mxu0 0.0
  %3680 = vmatpush1.msra.mxu0 0.0
  %3681 = vmatprep.subr.mxu0 0.0
  %3682 = vmatpush1.msra.mxu0 0.0
  %3683 = vmatprep.subr.mxu0 0.0
  %3684 = vmatpush1.msra.mxu0 0.0
  %3685 = vmatprep.subr.mxu0 0.0
  %3686 = vmatpush1.msra.mxu0 0.0
  %3687 = vmatprep.subr.mxu0 0.0
  %3688 = vmatpush1.msra.mxu0 0.0
  %v3689 = vand.u32 %v3453, 4294901760
  %v3690 = vsub.f32 %v3453, %v3689
  %3691 = vmatprep.subr.mxu0 %v3690
  %v3692 = vand.u32 %v3452, 4294901760
  %v3693 = vsub.f32 %v3452, %v3692
  %3694 = vmatpush1.msra.mxu0 %v3693
  %v3695 = vand.u32 %v3449, 4294901760
  %v3696 = vsub.f32 %v3449, %v3695
  %3697 = vmatprep.subr.mxu0 %v3696
  %v3698 = vand.u32 %v3448, 4294901760
  %v3699 = vsub.f32 %v3448, %v3698
  %3700 = vmatpush1.msra.mxu0 %v3699
  %v3701 = vand.u32 %v3445, 4294901760
  %v3702 = vsub.f32 %v3445, %v3701
  %3703 = vmatprep.subr.mxu0 %v3702
  %v3704 = vand.u32 %v3444, 4294901760
  %v3705 = vsub.f32 %v3444, %v3704
  %3706 = vmatpush1.msra.mxu0 %v3705
  %v3707 = vand.u32 %v3441, 4294901760
  %v3708 = vsub.f32 %v3441, %v3707
  %3709 = vmatprep.subr.mxu0 %v3708
  %v3710 = vand.u32 %v3440, 4294901760
  %v3711 = vsub.f32 %v3440, %v3710
  %3712 = vmatpush1.msra.mxu0 %v3711
  %3713 = vmatprep.subr.mxu0 0.0
  %3714 = vmatpush2.msra.mxu0 0.0
  %3715 = vmatprep.subr.mxu0 0.0
  %3716 = vmatpush2.msra.mxu0 0.0
  %3717 = vmatprep.subr.mxu0 0.0
  %3718 = vmatpush2.msra.mxu0 0.0
  %3719 = vmatprep.subr.mxu0 0.0
  %3720 = vmatpush2.msra.mxu0 0.0
  %3721 = vmatprep.subr.mxu0 0.0
  %3722 = vmatpush2.msra.mxu0 0.0
  %3723 = vmatprep.subr.mxu0 0.0
  %3724 = vmatpush2.msra.mxu0 0.0
  %3725 = vmatprep.subr.mxu0 0.0
  %3726 = vmatpush2.msra.mxu0 0.0
  %3727 = vmatprep.subr.mxu0 0.0
  %3728 = vmatpush2.msra.mxu0 0.0
  %3729 = vmatprep.subr.mxu0 0.0
  %3730 = vmatpush2.msra.mxu0 0.0
  %3731 = vmatprep.subr.mxu0 0.0
  %3732 = vmatpush2.msra.mxu0 0.0
  %3733 = vmatprep.subr.mxu0 0.0
  %3734 = vmatpush2.msra.mxu0 0.0
  %3735 = vmatprep.subr.mxu0 0.0
  %3736 = vmatpush2.msra.mxu0 0.0
  %3737 = vmatprep.subr.mxu0 0.0
  %3738 = vmatpush2.msra.mxu0 0.0
  %3739 = vmatprep.subr.mxu0 0.0
  %3740 = vmatpush2.msra.mxu0 0.0
  %3741 = vmatprep.subr.mxu0 0.0
  %3742 = vmatpush2.msra.mxu0 0.0
  %3743 = vmatprep.subr.mxu0 0.0
  %3744 = vmatpush2.msra.mxu0 0.0
  %3745 = vmatprep.mubr.f32.mxu0 0.0
  %v3746 = vand.u32 %v3467, 4294901760
  %v3747 = vsub.f32 %v3467, %v3746
  %3748 = vmatmul.mubr.f32.gmra.mxu0 %v3747
  %v3749 = vpop.f32.mrf.mxu0
  %v3750 = vadd.f32 %v3661, %v3749
  %v3751 = vpop.f32.mrf.mxu0
  %v3752 = vadd.f32 %v3663, %v3751
  %3753 = vdwg.mxu0
  %3754 = vmatprep.subr.mxu0 0.0
  %3755 = vmatpush1.msra.mxu0 0.0
  %3756 = vmatprep.subr.mxu0 0.0
  %3757 = vmatpush1.msra.mxu0 0.0
  %3758 = vmatprep.subr.mxu0 0.0
  %3759 = vmatpush1.msra.mxu0 0.0
  %3760 = vmatprep.subr.mxu0 0.0
  %3761 = vmatpush1.msra.mxu0 0.0
  %3762 = vmatprep.subr.mxu0 0.0
  %3763 = vmatpush1.msra.mxu0 0.0
  %3764 = vmatprep.subr.mxu0 0.0
  %3765 = vmatpush1.msra.mxu0 0.0
  %3766 = vmatprep.subr.mxu0 0.0
  %3767 = vmatpush1.msra.mxu0 0.0
  %3768 = vmatprep.subr.mxu0 0.0
  %3769 = vmatpush1.msra.mxu0 0.0
  %3770 = vmatprep.subr.mxu0 0.0
  %3771 = vmatpush1.msra.mxu0 0.0
  %3772 = vmatprep.subr.mxu0 0.0
  %3773 = vmatpush1.msra.mxu0 0.0
  %3774 = vmatprep.subr.mxu0 0.0
  %3775 = vmatpush1.msra.mxu0 0.0
  %3776 = vmatprep.subr.mxu0 0.0
  %3777 = vmatpush1.msra.mxu0 0.0
  %v3778 = vand.u32 %v3453, 4294901760
  %3779 = vmatprep.subr.mxu0 %v3778
  %v3780 = vand.u32 %v3452, 4294901760
  %3781 = vmatpush1.msra.mxu0 %v3780
  %v3782 = vand.u32 %v3449, 4294901760
  %3783 = vmatprep.subr.mxu0 %v3782
  %v3784 = vand.u32 %v3448, 4294901760
  %3785 = vmatpush1.msra.mxu0 %v3784
  %v3786 = vand.u32 %v3445, 4294901760
  %3787 = vmatprep.subr.mxu0 %v3786
  %v3788 = vand.u32 %v3444, 4294901760
  %3789 = vmatpush1.msra.mxu0 %v3788
  %v3790 = vand.u32 %v3441, 4294901760
  %3791 = vmatprep.subr.mxu0 %v3790
  %v3792 = vand.u32 %v3440, 4294901760
  %3793 = vmatpush1.msra.mxu0 %v3792
  %3794 = vmatprep.subr.mxu0 0.0
  %3795 = vmatpush2.msra.mxu0 0.0
  %3796 = vmatprep.subr.mxu0 0.0
  %3797 = vmatpush2.msra.mxu0 0.0
  %3798 = vmatprep.subr.mxu0 0.0
  %3799 = vmatpush2.msra.mxu0 0.0
  %3800 = vmatprep.subr.mxu0 0.0
  %3801 = vmatpush2.msra.mxu0 0.0
  %3802 = vmatprep.subr.mxu0 0.0
  %3803 = vmatpush2.msra.mxu0 0.0
  %3804 = vmatprep.subr.mxu0 0.0
  %3805 = vmatpush2.msra.mxu0 0.0
  %3806 = vmatprep.subr.mxu0 0.0
  %3807 = vmatpush2.msra.mxu0 0.0
  %3808 = vmatprep.subr.mxu0 0.0
  %3809 = vmatpush2.msra.mxu0 0.0
  %3810 = vmatprep.subr.mxu0 0.0
  %3811 = vmatpush2.msra.mxu0 0.0
  %3812 = vmatprep.subr.mxu0 0.0
  %3813 = vmatpush2.msra.mxu0 0.0
  %3814 = vmatprep.subr.mxu0 0.0
  %3815 = vmatpush2.msra.mxu0 0.0
  %3816 = vmatprep.subr.mxu0 0.0
  %3817 = vmatpush2.msra.mxu0 0.0
  %3818 = vmatprep.subr.mxu0 0.0
  %3819 = vmatpush2.msra.mxu0 0.0
  %3820 = vmatprep.subr.mxu0 0.0
  %3821 = vmatpush2.msra.mxu0 0.0
  %3822 = vmatprep.subr.mxu0 0.0
  %3823 = vmatpush2.msra.mxu0 0.0
  %3824 = vmatprep.subr.mxu0 0.0
  %3825 = vmatpush2.msra.mxu0 0.0
  %3826 = vmatprep.mubr.f32.mxu0 0.0
  %v3827 = vand.u32 %v3467, 4294901760
  %v3828 = vsub.f32 %v3467, %v3827
  %v3829 = vand.u32 %v3828, 4294901760
  %3830 = vmatmul.mubr.f32.gmra.mxu0 %v3829
  %v3831 = vpop.f32.mrf.mxu0
  %v3832 = vadd.f32 %v3750, %v3831
  %v3833 = vpop.f32.mrf.mxu0
  %v3834 = vadd.f32 %v3752, %v3833
  %3835 = vdwg.mxu0
  %3836 = vmatprep.subr.mxu0 0.0
  %3837 = vmatpush1.msra.mxu0 0.0
  %3838 = vmatprep.subr.mxu0 0.0
  %3839 = vmatpush1.msra.mxu0 0.0
  %3840 = vmatprep.subr.mxu0 0.0
  %3841 = vmatpush1.msra.mxu0 0.0
  %3842 = vmatprep.subr.mxu0 0.0
  %3843 = vmatpush1.msra.mxu0 0.0
  %3844 = vmatprep.subr.mxu0 0.0
  %3845 = vmatpush1.msra.mxu0 0.0
  %3846 = vmatprep.subr.mxu0 0.0
  %3847 = vmatpush1.msra.mxu0 0.0
  %3848 = vmatprep.subr.mxu0 0.0
  %3849 = vmatpush1.msra.mxu0 0.0
  %3850 = vmatprep.subr.mxu0 0.0
  %3851 = vmatpush1.msra.mxu0 0.0
  %3852 = vmatprep.subr.mxu0 0.0
  %3853 = vmatpush1.msra.mxu0 0.0
  %3854 = vmatprep.subr.mxu0 0.0
  %3855 = vmatpush1.msra.mxu0 0.0
  %3856 = vmatprep.subr.mxu0 0.0
  %3857 = vmatpush1.msra.mxu0 0.0
  %3858 = vmatprep.subr.mxu0 0.0
  %3859 = vmatpush1.msra.mxu0 0.0
  %v3860 = vand.u32 %v3453, 4294901760
  %v3861 = vsub.f32 %v3453, %v3860
  %v3862 = vand.u32 %v3861, 4294901760
  %3863 = vmatprep.subr.mxu0 %v3862
  %v3864 = vand.u32 %v3452, 4294901760
  %v3865 = vsub.f32 %v3452, %v3864
  %v3866 = vand.u32 %v3865, 4294901760
  %3867 = vmatpush1.msra.mxu0 %v3866
  %v3868 = vand.u32 %v3449, 4294901760
  %v3869 = vsub.f32 %v3449, %v3868
  %v3870 = vand.u32 %v3869, 4294901760
  %3871 = vmatprep.subr.mxu0 %v3870
  %v3872 = vand.u32 %v3448, 4294901760
  %v3873 = vsub.f32 %v3448, %v3872
  %v3874 = vand.u32 %v3873, 4294901760
  %3875 = vmatpush1.msra.mxu0 %v3874
  %v3876 = vand.u32 %v3445, 4294901760
  %v3877 = vsub.f32 %v3445, %v3876
  %v3878 = vand.u32 %v3877, 4294901760
  %3879 = vmatprep.subr.mxu0 %v3878
  %v3880 = vand.u32 %v3444, 4294901760
  %v3881 = vsub.f32 %v3444, %v3880
  %v3882 = vand.u32 %v3881, 4294901760
  %3883 = vmatpush1.msra.mxu0 %v3882
  %v3884 = vand.u32 %v3441, 4294901760
  %v3885 = vsub.f32 %v3441, %v3884
  %v3886 = vand.u32 %v3885, 4294901760
  %3887 = vmatprep.subr.mxu0 %v3886
  %v3888 = vand.u32 %v3440, 4294901760
  %v3889 = vsub.f32 %v3440, %v3888
  %v3890 = vand.u32 %v3889, 4294901760
  %3891 = vmatpush1.msra.mxu0 %v3890
  %3892 = vmatprep.subr.mxu0 0.0
  %3893 = vmatpush2.msra.mxu0 0.0
  %3894 = vmatprep.subr.mxu0 0.0
  %3895 = vmatpush2.msra.mxu0 0.0
  %3896 = vmatprep.subr.mxu0 0.0
  %3897 = vmatpush2.msra.mxu0 0.0
  %3898 = vmatprep.subr.mxu0 0.0
  %3899 = vmatpush2.msra.mxu0 0.0
  %3900 = vmatprep.subr.mxu0 0.0
  %3901 = vmatpush2.msra.mxu0 0.0
  %3902 = vmatprep.subr.mxu0 0.0
  %3903 = vmatpush2.msra.mxu0 0.0
  %3904 = vmatprep.subr.mxu0 0.0
  %3905 = vmatpush2.msra.mxu0 0.0
  %3906 = vmatprep.subr.mxu0 0.0
  %3907 = vmatpush2.msra.mxu0 0.0
  %3908 = vmatprep.subr.mxu0 0.0
  %3909 = vmatpush2.msra.mxu0 0.0
  %3910 = vmatprep.subr.mxu0 0.0
  %3911 = vmatpush2.msra.mxu0 0.0
  %3912 = vmatprep.subr.mxu0 0.0
  %3913 = vmatpush2.msra.mxu0 0.0
  %3914 = vmatprep.subr.mxu0 0.0
  %3915 = vmatpush2.msra.mxu0 0.0
  %3916 = vmatprep.subr.mxu0 0.0
  %3917 = vmatpush2.msra.mxu0 0.0
  %3918 = vmatprep.subr.mxu0 0.0
  %3919 = vmatpush2.msra.mxu0 0.0
  %3920 = vmatprep.subr.mxu0 0.0
  %3921 = vmatpush2.msra.mxu0 0.0
  %3922 = vmatprep.subr.mxu0 0.0
  %3923 = vmatpush2.msra.mxu0 0.0
  %3924 = vmatprep.mubr.f32.mxu0 0.0
  %v3925 = vand.u32 %v3467, 4294901760
  %3926 = vmatmul.mubr.f32.gmra.mxu0 %v3925
  %v3927 = vpop.f32.mrf.mxu0
  %v3928 = vadd.f32 %v3832, %v3927
  %v3929 = vpop.f32.mrf.mxu0
  %v3930 = vadd.f32 %v3834, %v3929
  %3931 = vdwg.mxu0
  %3932 = vmatprep.subr.mxu0 0.0
  %3933 = vmatpush1.msra.mxu0 0.0
  %3934 = vmatprep.subr.mxu0 0.0
  %3935 = vmatpush1.msra.mxu0 0.0
  %3936 = vmatprep.subr.mxu0 0.0
  %3937 = vmatpush1.msra.mxu0 0.0
  %3938 = vmatprep.subr.mxu0 0.0
  %3939 = vmatpush1.msra.mxu0 0.0
  %3940 = vmatprep.subr.mxu0 0.0
  %3941 = vmatpush1.msra.mxu0 0.0
  %3942 = vmatprep.subr.mxu0 0.0
  %3943 = vmatpush1.msra.mxu0 0.0
  %3944 = vmatprep.subr.mxu0 0.0
  %3945 = vmatpush1.msra.mxu0 0.0
  %3946 = vmatprep.subr.mxu0 0.0
  %3947 = vmatpush1.msra.mxu0 0.0
  %3948 = vmatprep.subr.mxu0 0.0
  %3949 = vmatpush1.msra.mxu0 0.0
  %3950 = vmatprep.subr.mxu0 0.0
  %3951 = vmatpush1.msra.mxu0 0.0
  %3952 = vmatprep.subr.mxu0 0.0
  %3953 = vmatpush1.msra.mxu0 0.0
  %3954 = vmatprep.subr.mxu0 0.0
  %3955 = vmatpush1.msra.mxu0 0.0
  %v3956 = vand.u32 %v3453, 4294901760
  %3957 = vmatprep.subr.mxu0 %v3956
  %v3958 = vand.u32 %v3452, 4294901760
  %3959 = vmatpush1.msra.mxu0 %v3958
  %v3960 = vand.u32 %v3449, 4294901760
  %3961 = vmatprep.subr.mxu0 %v3960
  %v3962 = vand.u32 %v3448, 4294901760
  %3963 = vmatpush1.msra.mxu0 %v3962
  %v3964 = vand.u32 %v3445, 4294901760
  %3965 = vmatprep.subr.mxu0 %v3964
  %v3966 = vand.u32 %v3444, 4294901760
  %3967 = vmatpush1.msra.mxu0 %v3966
  %v3968 = vand.u32 %v3441, 4294901760
  %3969 = vmatprep.subr.mxu0 %v3968
  %v3970 = vand.u32 %v3440, 4294901760
  %3971 = vmatpush1.msra.mxu0 %v3970
  %3972 = vmatprep.subr.mxu0 0.0
  %3973 = vmatpush2.msra.mxu0 0.0
  %3974 = vmatprep.subr.mxu0 0.0
  %3975 = vmatpush2.msra.mxu0 0.0
  %3976 = vmatprep.subr.mxu0 0.0
  %3977 = vmatpush2.msra.mxu0 0.0
  %3978 = vmatprep.subr.mxu0 0.0
  %3979 = vmatpush2.msra.mxu0 0.0
  %3980 = vmatprep.subr.mxu0 0.0
  %3981 = vmatpush2.msra.mxu0 0.0
  %3982 = vmatprep.subr.mxu0 0.0
  %3983 = vmatpush2.msra.mxu0 0.0
  %3984 = vmatprep.subr.mxu0 0.0
  %3985 = vmatpush2.msra.mxu0 0.0
  %3986 = vmatprep.subr.mxu0 0.0
  %3987 = vmatpush2.msra.mxu0 0.0
  %3988 = vmatprep.subr.mxu0 0.0
  %3989 = vmatpush2.msra.mxu0 0.0
  %3990 = vmatprep.subr.mxu0 0.0
  %3991 = vmatpush2.msra.mxu0 0.0
  %3992 = vmatprep.subr.mxu0 0.0
  %3993 = vmatpush2.msra.mxu0 0.0
  %3994 = vmatprep.subr.mxu0 0.0
  %3995 = vmatpush2.msra.mxu0 0.0
  %3996 = vmatprep.subr.mxu0 0.0
  %3997 = vmatpush2.msra.mxu0 0.0
  %3998 = vmatprep.subr.mxu0 0.0
  %3999 = vmatpush2.msra.mxu0 0.0
  %4000 = vmatprep.subr.mxu0 0.0
  %4001 = vmatpush2.msra.mxu0 0.0
  %4002 = vmatprep.subr.mxu0 0.0
  %4003 = vmatpush2.msra.mxu0 0.0
  %4004 = vmatprep.mubr.f32.mxu0 0.0
  %v4005 = vand.u32 %v3467, 4294901760
  %4006 = vmatmul.mubr.f32.gmra.mxu0 %v4005
  %v4007 = vpop.f32.mrf.mxu0
  %v4008 = vadd.f32 %v3928, %v4007
  %v4009 = vpop.f32.mrf.mxu0
  %v4010 = vadd.f32 %v3930, %v4009
  %4011 = vdwg.mxu0
  %4012 = vmatprep.subr.mxu0 0.0
  %4013 = vmatpush1.msra.mxu0 0.0
  %4014 = vmatprep.subr.mxu0 0.0
  %4015 = vmatpush1.msra.mxu0 0.0
  %4016 = vmatprep.subr.mxu0 0.0
  %4017 = vmatpush1.msra.mxu0 0.0
  %4018 = vmatprep.subr.mxu0 0.0
  %4019 = vmatpush1.msra.mxu0 0.0
  %4020 = vmatprep.subr.mxu0 0.0
  %4021 = vmatpush1.msra.mxu0 0.0
  %4022 = vmatprep.subr.mxu0 0.0
  %4023 = vmatpush1.msra.mxu0 0.0
  %4024 = vmatprep.subr.mxu0 0.0
  %4025 = vmatpush1.msra.mxu0 0.0
  %4026 = vmatprep.subr.mxu0 0.0
  %4027 = vmatpush1.msra.mxu0 0.0
  %4028 = vmatprep.subr.mxu0 0.0
  %4029 = vmatpush1.msra.mxu0 0.0
  %4030 = vmatprep.subr.mxu0 0.0
  %4031 = vmatpush1.msra.mxu0 0.0
  %4032 = vmatprep.subr.mxu0 0.0
  %4033 = vmatpush1.msra.mxu0 0.0
  %4034 = vmatprep.subr.mxu0 0.0
  %4035 = vmatpush1.msra.mxu0 0.0
  %v4036 = vand.u32 %v3455, 4294901760
  %4037 = vmatprep.subr.mxu0 %v4036
  %v4038 = vand.u32 %v3454, 4294901760
  %4039 = vmatpush1.msra.mxu0 %v4038
  %v4040 = vand.u32 %v3451, 4294901760
  %4041 = vmatprep.subr.mxu0 %v4040
  %v4042 = vand.u32 %v3450, 4294901760
  %4043 = vmatpush1.msra.mxu0 %v4042
  %v4044 = vand.u32 %v3447, 4294901760
  %4045 = vmatprep.subr.mxu0 %v4044
  %v4046 = vand.u32 %v3446, 4294901760
  %4047 = vmatpush1.msra.mxu0 %v4046
  %v4048 = vand.u32 %v3443, 4294901760
  %4049 = vmatprep.subr.mxu0 %v4048
  %v4050 = vand.u32 %v3442, 4294901760
  %4051 = vmatpush1.msra.mxu0 %v4050
  %4052 = vmatprep.subr.mxu0 0.0
  %4053 = vmatpush2.msra.mxu0 0.0
  %4054 = vmatprep.subr.mxu0 0.0
  %4055 = vmatpush2.msra.mxu0 0.0
  %4056 = vmatprep.subr.mxu0 0.0
  %4057 = vmatpush2.msra.mxu0 0.0
  %4058 = vmatprep.subr.mxu0 0.0
  %4059 = vmatpush2.msra.mxu0 0.0
  %4060 = vmatprep.subr.mxu0 0.0
  %4061 = vmatpush2.msra.mxu0 0.0
  %4062 = vmatprep.subr.mxu0 0.0
  %4063 = vmatpush2.msra.mxu0 0.0
  %4064 = vmatprep.subr.mxu0 0.0
  %4065 = vmatpush2.msra.mxu0 0.0
  %4066 = vmatprep.subr.mxu0 0.0
  %4067 = vmatpush2.msra.mxu0 0.0
  %4068 = vmatprep.subr.mxu0 0.0
  %4069 = vmatpush2.msra.mxu0 0.0
  %4070 = vmatprep.subr.mxu0 0.0
  %4071 = vmatpush2.msra.mxu0 0.0
  %4072 = vmatprep.subr.mxu0 0.0
  %4073 = vmatpush2.msra.mxu0 0.0
  %4074 = vmatprep.subr.mxu0 0.0
  %4075 = vmatpush2.msra.mxu0 0.0
  %4076 = vmatprep.subr.mxu0 0.0
  %4077 = vmatpush2.msra.mxu0 0.0
  %4078 = vmatprep.subr.mxu0 0.0
  %4079 = vmatpush2.msra.mxu0 0.0
  %4080 = vmatprep.subr.mxu0 0.0
  %4081 = vmatpush2.msra.mxu0 0.0
  %4082 = vmatprep.subr.mxu0 0.0
  %4083 = vmatpush2.msra.mxu0 0.0
  %4084 = vmatprep.mubr.f32.mxu0 0.0
  %v4085 = vand.u32 %v3467, 4294901760
  %v4086 = vsub.f32 %v3467, %v4085
  %v4087 = vand.u32 %v4086, 4294901760
  %v4088 = vsub.f32 %v4086, %v4087
  %v4089 = vand.u32 %v4088, 4294901760
  %4090 = vmatmul.mubr.f32.gmra.mxu0 %v4089
  %v4091 = vpop.f32.mrf.mxu0
  %v4092 = vadd.f32 %v3464, %v4091
  %v4093 = vpop.f32.mrf.mxu0
  %v4094 = vadd.f32 %v3464, %v4093
  %4095 = vdwg.mxu0
  %4096 = vmatprep.subr.mxu0 0.0
  %4097 = vmatpush1.msra.mxu0 0.0
  %4098 = vmatprep.subr.mxu0 0.0
  %4099 = vmatpush1.msra.mxu0 0.0
  %4100 = vmatprep.subr.mxu0 0.0
  %4101 = vmatpush1.msra.mxu0 0.0
  %4102 = vmatprep.subr.mxu0 0.0
  %4103 = vmatpush1.msra.mxu0 0.0
  %4104 = vmatprep.subr.mxu0 0.0
  %4105 = vmatpush1.msra.mxu0 0.0
  %4106 = vmatprep.subr.mxu0 0.0
  %4107 = vmatpush1.msra.mxu0 0.0
  %4108 = vmatprep.subr.mxu0 0.0
  %4109 = vmatpush1.msra.mxu0 0.0
  %4110 = vmatprep.subr.mxu0 0.0
  %4111 = vmatpush1.msra.mxu0 0.0
  %4112 = vmatprep.subr.mxu0 0.0
  %4113 = vmatpush1.msra.mxu0 0.0
  %4114 = vmatprep.subr.mxu0 0.0
  %4115 = vmatpush1.msra.mxu0 0.0
  %4116 = vmatprep.subr.mxu0 0.0
  %4117 = vmatpush1.msra.mxu0 0.0
  %4118 = vmatprep.subr.mxu0 0.0
  %4119 = vmatpush1.msra.mxu0 0.0
  %v4120 = vand.u32 %v3455, 4294901760
  %v4121 = vsub.f32 %v3455, %v4120
  %v4122 = vand.u32 %v4121, 4294901760
  %v4123 = vsub.f32 %v4121, %v4122
  %v4124 = vand.u32 %v4123, 4294901760
  %4125 = vmatprep.subr.mxu0 %v4124
  %v4126 = vand.u32 %v3454, 4294901760
  %v4127 = vsub.f32 %v3454, %v4126
  %v4128 = vand.u32 %v4127, 4294901760
  %v4129 = vsub.f32 %v4127, %v4128
  %v4130 = vand.u32 %v4129, 4294901760
  %4131 = vmatpush1.msra.mxu0 %v4130
  %v4132 = vand.u32 %v3451, 4294901760
  %v4133 = vsub.f32 %v3451, %v4132
  %v4134 = vand.u32 %v4133, 4294901760
  %v4135 = vsub.f32 %v4133, %v4134
  %v4136 = vand.u32 %v4135, 4294901760
  %4137 = vmatprep.subr.mxu0 %v4136
  %v4138 = vand.u32 %v3450, 4294901760
  %v4139 = vsub.f32 %v3450, %v4138
  %v4140 = vand.u32 %v4139, 4294901760
  %v4141 = vsub.f32 %v4139, %v4140
  %v4142 = vand.u32 %v4141, 4294901760
  %4143 = vmatpush1.msra.mxu0 %v4142
  %v4144 = vand.u32 %v3447, 4294901760
  %v4145 = vsub.f32 %v3447, %v4144
  %v4146 = vand.u32 %v4145, 4294901760
  %v4147 = vsub.f32 %v4145, %v4146
  %v4148 = vand.u32 %v4147, 4294901760
  %4149 = vmatprep.subr.mxu0 %v4148
  %v4150 = vand.u32 %v3446, 4294901760
  %v4151 = vsub.f32 %v3446, %v4150
  %v4152 = vand.u32 %v4151, 4294901760
  %v4153 = vsub.f32 %v4151, %v4152
  %v4154 = vand.u32 %v4153, 4294901760
  %4155 = vmatpush1.msra.mxu0 %v4154
  %v4156 = vand.u32 %v3443, 4294901760
  %v4157 = vsub.f32 %v3443, %v4156
  %v4158 = vand.u32 %v4157, 4294901760
  %v4159 = vsub.f32 %v4157, %v4158
  %v4160 = vand.u32 %v4159, 4294901760
  %4161 = vmatprep.subr.mxu0 %v4160
  %v4162 = vand.u32 %v3442, 4294901760
  %v4163 = vsub.f32 %v3442, %v4162
  %v4164 = vand.u32 %v4163, 4294901760
  %v4165 = vsub.f32 %v4163, %v4164
  %v4166 = vand.u32 %v4165, 4294901760
  %4167 = vmatpush1.msra.mxu0 %v4166
  %4168 = vmatprep.subr.mxu0 0.0
  %4169 = vmatpush2.msra.mxu0 0.0
  %4170 = vmatprep.subr.mxu0 0.0
  %4171 = vmatpush2.msra.mxu0 0.0
  %4172 = vmatprep.subr.mxu0 0.0
  %4173 = vmatpush2.msra.mxu0 0.0
  %4174 = vmatprep.subr.mxu0 0.0
  %4175 = vmatpush2.msra.mxu0 0.0
  %4176 = vmatprep.subr.mxu0 0.0
  %4177 = vmatpush2.msra.mxu0 0.0
  %4178 = vmatprep.subr.mxu0 0.0
  %4179 = vmatpush2.msra.mxu0 0.0
  %4180 = vmatprep.subr.mxu0 0.0
  %4181 = vmatpush2.msra.mxu0 0.0
  %4182 = vmatprep.subr.mxu0 0.0
  %4183 = vmatpush2.msra.mxu0 0.0
  %4184 = vmatprep.subr.mxu0 0.0
  %4185 = vmatpush2.msra.mxu0 0.0
  %4186 = vmatprep.subr.mxu0 0.0
  %4187 = vmatpush2.msra.mxu0 0.0
  %4188 = vmatprep.subr.mxu0 0.0
  %4189 = vmatpush2.msra.mxu0 0.0
  %4190 = vmatprep.subr.mxu0 0.0
  %4191 = vmatpush2.msra.mxu0 0.0
  %4192 = vmatprep.subr.mxu0 0.0
  %4193 = vmatpush2.msra.mxu0 0.0
  %4194 = vmatprep.subr.mxu0 0.0
  %4195 = vmatpush2.msra.mxu0 0.0
  %4196 = vmatprep.subr.mxu0 0.0
  %4197 = vmatpush2.msra.mxu0 0.0
  %4198 = vmatprep.subr.mxu0 0.0
  %4199 = vmatpush2.msra.mxu0 0.0
  %4200 = vmatprep.mubr.f32.mxu0 0.0
  %v4201 = vand.u32 %v3467, 4294901760
  %4202 = vmatmul.mubr.f32.gmra.mxu0 %v4201
  %v4203 = vpop.f32.mrf.mxu0
  %v4204 = vadd.f32 %v4092, %v4203
  %v4205 = vpop.f32.mrf.mxu0
  %v4206 = vadd.f32 %v4094, %v4205
  %4207 = vdwg.mxu0
  %4208 = vmatprep.subr.mxu0 0.0
  %4209 = vmatpush1.msra.mxu0 0.0
  %4210 = vmatprep.subr.mxu0 0.0
  %4211 = vmatpush1.msra.mxu0 0.0
  %4212 = vmatprep.subr.mxu0 0.0
  %4213 = vmatpush1.msra.mxu0 0.0
  %4214 = vmatprep.subr.mxu0 0.0
  %4215 = vmatpush1.msra.mxu0 0.0
  %4216 = vmatprep.subr.mxu0 0.0
  %4217 = vmatpush1.msra.mxu0 0.0
  %4218 = vmatprep.subr.mxu0 0.0
  %4219 = vmatpush1.msra.mxu0 0.0
  %4220 = vmatprep.subr.mxu0 0.0
  %4221 = vmatpush1.msra.mxu0 0.0
  %4222 = vmatprep.subr.mxu0 0.0
  %4223 = vmatpush1.msra.mxu0 0.0
  %4224 = vmatprep.subr.mxu0 0.0
  %4225 = vmatpush1.msra.mxu0 0.0
  %4226 = vmatprep.subr.mxu0 0.0
  %4227 = vmatpush1.msra.mxu0 0.0
  %4228 = vmatprep.subr.mxu0 0.0
  %4229 = vmatpush1.msra.mxu0 0.0
  %4230 = vmatprep.subr.mxu0 0.0
  %4231 = vmatpush1.msra.mxu0 0.0
  %v4232 = vand.u32 %v3455, 4294901760
  %v4233 = vsub.f32 %v3455, %v4232
  %4234 = vmatprep.subr.mxu0 %v4233
  %v4235 = vand.u32 %v3454, 4294901760
  %v4236 = vsub.f32 %v3454, %v4235
  %4237 = vmatpush1.msra.mxu0 %v4236
  %v4238 = vand.u32 %v3451, 4294901760
  %v4239 = vsub.f32 %v3451, %v4238
  %4240 = vmatprep.subr.mxu0 %v4239
  %v4241 = vand.u32 %v3450, 4294901760
  %v4242 = vsub.f32 %v3450, %v4241
  %4243 = vmatpush1.msra.mxu0 %v4242
  %v4244 = vand.u32 %v3447, 4294901760
  %v4245 = vsub.f32 %v3447, %v4244
  %4246 = vmatprep.subr.mxu0 %v4245
  %v4247 = vand.u32 %v3446, 4294901760
  %v4248 = vsub.f32 %v3446, %v4247
  %4249 = vmatpush1.msra.mxu0 %v4248
  %v4250 = vand.u32 %v3443, 4294901760
  %v4251 = vsub.f32 %v3443, %v4250
  %4252 = vmatprep.subr.mxu0 %v4251
  %v4253 = vand.u32 %v3442, 4294901760
  %v4254 = vsub.f32 %v3442, %v4253
  %4255 = vmatpush1.msra.mxu0 %v4254
  %4256 = vmatprep.subr.mxu0 0.0
  %4257 = vmatpush2.msra.mxu0 0.0
  %4258 = vmatprep.subr.mxu0 0.0
  %4259 = vmatpush2.msra.mxu0 0.0
  %4260 = vmatprep.subr.mxu0 0.0
  %4261 = vmatpush2.msra.mxu0 0.0
  %4262 = vmatprep.subr.mxu0 0.0
  %4263 = vmatpush2.msra.mxu0 0.0
  %4264 = vmatprep.subr.mxu0 0.0
  %4265 = vmatpush2.msra.mxu0 0.0
  %4266 = vmatprep.subr.mxu0 0.0
  %4267 = vmatpush2.msra.mxu0 0.0
  %4268 = vmatprep.subr.mxu0 0.0
  %4269 = vmatpush2.msra.mxu0 0.0
  %4270 = vmatprep.subr.mxu0 0.0
  %4271 = vmatpush2.msra.mxu0 0.0
  %4272 = vmatprep.subr.mxu0 0.0
  %4273 = vmatpush2.msra.mxu0 0.0
  %4274 = vmatprep.subr.mxu0 0.0
  %4275 = vmatpush2.msra.mxu0 0.0
  %4276 = vmatprep.subr.mxu0 0.0
  %4277 = vmatpush2.msra.mxu0 0.0
  %4278 = vmatprep.subr.mxu0 0.0
  %4279 = vmatpush2.msra.mxu0 0.0
  %4280 = vmatprep.subr.mxu0 0.0
  %4281 = vmatpush2.msra.mxu0 0.0
  %4282 = vmatprep.subr.mxu0 0.0
  %4283 = vmatpush2.msra.mxu0 0.0
  %4284 = vmatprep.subr.mxu0 0.0
  %4285 = vmatpush2.msra.mxu0 0.0
  %4286 = vmatprep.subr.mxu0 0.0
  %4287 = vmatpush2.msra.mxu0 0.0
  %4288 = vmatprep.mubr.f32.mxu0 0.0
  %v4289 = vand.u32 %v3467, 4294901760
  %v4290 = vsub.f32 %v3467, %v4289
  %4291 = vmatmul.mubr.f32.gmra.mxu0 %v4290
  %v4292 = vpop.f32.mrf.mxu0
  %v4293 = vadd.f32 %v4204, %v4292
  %v4294 = vpop.f32.mrf.mxu0
  %v4295 = vadd.f32 %v4206, %v4294
  %4296 = vdwg.mxu0
  %4297 = vmatprep.subr.mxu0 0.0
  %4298 = vmatpush1.msra.mxu0 0.0
  %4299 = vmatprep.subr.mxu0 0.0
  %4300 = vmatpush1.msra.mxu0 0.0
  %4301 = vmatprep.subr.mxu0 0.0
  %4302 = vmatpush1.msra.mxu0 0.0
  %4303 = vmatprep.subr.mxu0 0.0
  %4304 = vmatpush1.msra.mxu0 0.0
  %4305 = vmatprep.subr.mxu0 0.0
  %4306 = vmatpush1.msra.mxu0 0.0
  %4307 = vmatprep.subr.mxu0 0.0
  %4308 = vmatpush1.msra.mxu0 0.0
  %4309 = vmatprep.subr.mxu0 0.0
  %4310 = vmatpush1.msra.mxu0 0.0
  %4311 = vmatprep.subr.mxu0 0.0
  %4312 = vmatpush1.msra.mxu0 0.0
  %4313 = vmatprep.subr.mxu0 0.0
  %4314 = vmatpush1.msra.mxu0 0.0
  %4315 = vmatprep.subr.mxu0 0.0
  %4316 = vmatpush1.msra.mxu0 0.0
  %4317 = vmatprep.subr.mxu0 0.0
  %4318 = vmatpush1.msra.mxu0 0.0
  %4319 = vmatprep.subr.mxu0 0.0
  %4320 = vmatpush1.msra.mxu0 0.0
  %v4321 = vand.u32 %v3455, 4294901760
  %4322 = vmatprep.subr.mxu0 %v4321
  %v4323 = vand.u32 %v3454, 4294901760
  %4324 = vmatpush1.msra.mxu0 %v4323
  %v4325 = vand.u32 %v3451, 4294901760
  %4326 = vmatprep.subr.mxu0 %v4325
  %v4327 = vand.u32 %v3450, 4294901760
  %4328 = vmatpush1.msra.mxu0 %v4327
  %v4329 = vand.u32 %v3447, 4294901760
  %4330 = vmatprep.subr.mxu0 %v4329
  %v4331 = vand.u32 %v3446, 4294901760
  %4332 = vmatpush1.msra.mxu0 %v4331
  %v4333 = vand.u32 %v3443, 4294901760
  %4334 = vmatprep.subr.mxu0 %v4333
  %v4335 = vand.u32 %v3442, 4294901760
  %4336 = vmatpush1.msra.mxu0 %v4335
  %4337 = vmatprep.subr.mxu0 0.0
  %4338 = vmatpush2.msra.mxu0 0.0
  %4339 = vmatprep.subr.mxu0 0.0
  %4340 = vmatpush2.msra.mxu0 0.0
  %4341 = vmatprep.subr.mxu0 0.0
  %4342 = vmatpush2.msra.mxu0 0.0
  %4343 = vmatprep.subr.mxu0 0.0
  %4344 = vmatpush2.msra.mxu0 0.0
  %4345 = vmatprep.subr.mxu0 0.0
  %4346 = vmatpush2.msra.mxu0 0.0
  %4347 = vmatprep.subr.mxu0 0.0
  %4348 = vmatpush2.msra.mxu0 0.0
  %4349 = vmatprep.subr.mxu0 0.0
  %4350 = vmatpush2.msra.mxu0 0.0
  %4351 = vmatprep.subr.mxu0 0.0
  %4352 = vmatpush2.msra.mxu0 0.0
  %4353 = vmatprep.subr.mxu0 0.0
  %4354 = vmatpush2.msra.mxu0 0.0
  %4355 = vmatprep.subr.mxu0 0.0
  %4356 = vmatpush2.msra.mxu0 0.0
  %4357 = vmatprep.subr.mxu0 0.0
  %4358 = vmatpush2.msra.mxu0 0.0
  %4359 = vmatprep.subr.mxu0 0.0
  %4360 = vmatpush2.msra.mxu0 0.0
  %4361 = vmatprep.subr.mxu0 0.0
  %4362 = vmatpush2.msra.mxu0 0.0
  %4363 = vmatprep.subr.mxu0 0.0
  %4364 = vmatpush2.msra.mxu0 0.0
  %4365 = vmatprep.subr.mxu0 0.0
  %4366 = vmatpush2.msra.mxu0 0.0
  %4367 = vmatprep.subr.mxu0 0.0
  %4368 = vmatpush2.msra.mxu0 0.0
  %4369 = vmatprep.mubr.f32.mxu0 0.0
  %v4370 = vand.u32 %v3467, 4294901760
  %v4371 = vsub.f32 %v3467, %v4370
  %v4372 = vand.u32 %v4371, 4294901760
  %4373 = vmatmul.mubr.f32.gmra.mxu0 %v4372
  %v4374 = vpop.f32.mrf.mxu0
  %v4375 = vadd.f32 %v4293, %v4374
  %v4376 = vpop.f32.mrf.mxu0
  %v4377 = vadd.f32 %v4295, %v4376
  %4378 = vdwg.mxu0
  %4379 = vmatprep.subr.mxu0 0.0
  %4380 = vmatpush1.msra.mxu0 0.0
  %4381 = vmatprep.subr.mxu0 0.0
  %4382 = vmatpush1.msra.mxu0 0.0
  %4383 = vmatprep.subr.mxu0 0.0
  %4384 = vmatpush1.msra.mxu0 0.0
  %4385 = vmatprep.subr.mxu0 0.0
  %4386 = vmatpush1.msra.mxu0 0.0
  %4387 = vmatprep.subr.mxu0 0.0
  %4388 = vmatpush1.msra.mxu0 0.0
  %4389 = vmatprep.subr.mxu0 0.0
  %4390 = vmatpush1.msra.mxu0 0.0
  %4391 = vmatprep.subr.mxu0 0.0
  %4392 = vmatpush1.msra.mxu0 0.0
  %4393 = vmatprep.subr.mxu0 0.0
  %4394 = vmatpush1.msra.mxu0 0.0
  %4395 = vmatprep.subr.mxu0 0.0
  %4396 = vmatpush1.msra.mxu0 0.0
  %4397 = vmatprep.subr.mxu0 0.0
  %4398 = vmatpush1.msra.mxu0 0.0
  %4399 = vmatprep.subr.mxu0 0.0
  %4400 = vmatpush1.msra.mxu0 0.0
  %4401 = vmatprep.subr.mxu0 0.0
  %4402 = vmatpush1.msra.mxu0 0.0
  %v4403 = vand.u32 %v3455, 4294901760
  %v4404 = vsub.f32 %v3455, %v4403
  %v4405 = vand.u32 %v4404, 4294901760
  %4406 = vmatprep.subr.mxu0 %v4405
  %v4407 = vand.u32 %v3454, 4294901760
  %v4408 = vsub.f32 %v3454, %v4407
  %v4409 = vand.u32 %v4408, 4294901760
  %4410 = vmatpush1.msra.mxu0 %v4409
  %v4411 = vand.u32 %v3451, 4294901760
  %v4412 = vsub.f32 %v3451, %v4411
  %v4413 = vand.u32 %v4412, 4294901760
  %4414 = vmatprep.subr.mxu0 %v4413
  %v4415 = vand.u32 %v3450, 4294901760
  %v4416 = vsub.f32 %v3450, %v4415
  %v4417 = vand.u32 %v4416, 4294901760
  %4418 = vmatpush1.msra.mxu0 %v4417
  %v4419 = vand.u32 %v3447, 4294901760
  %v4420 = vsub.f32 %v3447, %v4419
  %v4421 = vand.u32 %v4420, 4294901760
  %4422 = vmatprep.subr.mxu0 %v4421
  %v4423 = vand.u32 %v3446, 4294901760
  %v4424 = vsub.f32 %v3446, %v4423
  %v4425 = vand.u32 %v4424, 4294901760
  %4426 = vmatpush1.msra.mxu0 %v4425
  %v4427 = vand.u32 %v3443, 4294901760
  %v4428 = vsub.f32 %v3443, %v4427
  %v4429 = vand.u32 %v4428, 4294901760
  %4430 = vmatprep.subr.mxu0 %v4429
  %v4431 = vand.u32 %v3442, 4294901760
  %v4432 = vsub.f32 %v3442, %v4431
  %v4433 = vand.u32 %v4432, 4294901760
  %4434 = vmatpush1.msra.mxu0 %v4433
  %4435 = vmatprep.subr.mxu0 0.0
  %4436 = vmatpush2.msra.mxu0 0.0
  %4437 = vmatprep.subr.mxu0 0.0
  %4438 = vmatpush2.msra.mxu0 0.0
  %4439 = vmatprep.subr.mxu0 0.0
  %4440 = vmatpush2.msra.mxu0 0.0
  %4441 = vmatprep.subr.mxu0 0.0
  %4442 = vmatpush2.msra.mxu0 0.0
  %4443 = vmatprep.subr.mxu0 0.0
  %4444 = vmatpush2.msra.mxu0 0.0
  %4445 = vmatprep.subr.mxu0 0.0
  %4446 = vmatpush2.msra.mxu0 0.0
  %4447 = vmatprep.subr.mxu0 0.0
  %4448 = vmatpush2.msra.mxu0 0.0
  %4449 = vmatprep.subr.mxu0 0.0
  %4450 = vmatpush2.msra.mxu0 0.0
  %4451 = vmatprep.subr.mxu0 0.0
  %4452 = vmatpush2.msra.mxu0 0.0
  %4453 = vmatprep.subr.mxu0 0.0
  %4454 = vmatpush2.msra.mxu0 0.0
  %4455 = vmatprep.subr.mxu0 0.0
  %4456 = vmatpush2.msra.mxu0 0.0
  %4457 = vmatprep.subr.mxu0 0.0
  %4458 = vmatpush2.msra.mxu0 0.0
  %4459 = vmatprep.subr.mxu0 0.0
  %4460 = vmatpush2.msra.mxu0 0.0
  %4461 = vmatprep.subr.mxu0 0.0
  %4462 = vmatpush2.msra.mxu0 0.0
  %4463 = vmatprep.subr.mxu0 0.0
  %4464 = vmatpush2.msra.mxu0 0.0
  %4465 = vmatprep.subr.mxu0 0.0
  %4466 = vmatpush2.msra.mxu0 0.0
  %4467 = vmatprep.mubr.f32.mxu0 0.0
  %v4468 = vand.u32 %v3467, 4294901760
  %4469 = vmatmul.mubr.f32.gmra.mxu0 %v4468
  %v4470 = vpop.f32.mrf.mxu0
  %v4471 = vadd.f32 %v4375, %v4470
  %v4472 = vpop.f32.mrf.mxu0
  %v4473 = vadd.f32 %v4377, %v4472
  %4474 = vdwg.mxu0
  %4475 = vmatprep.subr.mxu0 0.0
  %4476 = vmatpush1.msra.mxu0 0.0
  %4477 = vmatprep.subr.mxu0 0.0
  %4478 = vmatpush1.msra.mxu0 0.0
  %4479 = vmatprep.subr.mxu0 0.0
  %4480 = vmatpush1.msra.mxu0 0.0
  %4481 = vmatprep.subr.mxu0 0.0
  %4482 = vmatpush1.msra.mxu0 0.0
  %4483 = vmatprep.subr.mxu0 0.0
  %4484 = vmatpush1.msra.mxu0 0.0
  %4485 = vmatprep.subr.mxu0 0.0
  %4486 = vmatpush1.msra.mxu0 0.0
  %4487 = vmatprep.subr.mxu0 0.0
  %4488 = vmatpush1.msra.mxu0 0.0
  %4489 = vmatprep.subr.mxu0 0.0
  %4490 = vmatpush1.msra.mxu0 0.0
  %4491 = vmatprep.subr.mxu0 0.0
  %4492 = vmatpush1.msra.mxu0 0.0
  %4493 = vmatprep.subr.mxu0 0.0
  %4494 = vmatpush1.msra.mxu0 0.0
  %4495 = vmatprep.subr.mxu0 0.0
  %4496 = vmatpush1.msra.mxu0 0.0
  %4497 = vmatprep.subr.mxu0 0.0
  %4498 = vmatpush1.msra.mxu0 0.0
  %v4499 = vand.u32 %v3455, 4294901760
  %4500 = vmatprep.subr.mxu0 %v4499
  %v4501 = vand.u32 %v3454, 4294901760
  %4502 = vmatpush1.msra.mxu0 %v4501
  %v4503 = vand.u32 %v3451, 4294901760
  %4504 = vmatprep.subr.mxu0 %v4503
  %v4505 = vand.u32 %v3450, 4294901760
  %4506 = vmatpush1.msra.mxu0 %v4505
  %v4507 = vand.u32 %v3447, 4294901760
  %4508 = vmatprep.subr.mxu0 %v4507
  %v4509 = vand.u32 %v3446, 4294901760
  %4510 = vmatpush1.msra.mxu0 %v4509
  %v4511 = vand.u32 %v3443, 4294901760
  %4512 = vmatprep.subr.mxu0 %v4511
  %v4513 = vand.u32 %v3442, 4294901760
  %4514 = vmatpush1.msra.mxu0 %v4513
  %4515 = vmatprep.subr.mxu0 0.0
  %4516 = vmatpush2.msra.mxu0 0.0
  %4517 = vmatprep.subr.mxu0 0.0
  %4518 = vmatpush2.msra.mxu0 0.0
  %4519 = vmatprep.subr.mxu0 0.0
  %4520 = vmatpush2.msra.mxu0 0.0
  %4521 = vmatprep.subr.mxu0 0.0
  %4522 = vmatpush2.msra.mxu0 0.0
  %4523 = vmatprep.subr.mxu0 0.0
  %4524 = vmatpush2.msra.mxu0 0.0
  %4525 = vmatprep.subr.mxu0 0.0
  %4526 = vmatpush2.msra.mxu0 0.0
  %4527 = vmatprep.subr.mxu0 0.0
  %4528 = vmatpush2.msra.mxu0 0.0
  %4529 = vmatprep.subr.mxu0 0.0
  %4530 = vmatpush2.msra.mxu0 0.0
  %4531 = vmatprep.subr.mxu0 0.0
  %4532 = vmatpush2.msra.mxu0 0.0
  %4533 = vmatprep.subr.mxu0 0.0
  %4534 = vmatpush2.msra.mxu0 0.0
  %4535 = vmatprep.subr.mxu0 0.0
  %4536 = vmatpush2.msra.mxu0 0.0
  %4537 = vmatprep.subr.mxu0 0.0
  %4538 = vmatpush2.msra.mxu0 0.0
  %4539 = vmatprep.subr.mxu0 0.0
  %4540 = vmatpush2.msra.mxu0 0.0
  %4541 = vmatprep.subr.mxu0 0.0
  %4542 = vmatpush2.msra.mxu0 0.0
  %4543 = vmatprep.subr.mxu0 0.0
  %4544 = vmatpush2.msra.mxu0 0.0
  %4545 = vmatprep.subr.mxu0 0.0
  %4546 = vmatpush2.msra.mxu0 0.0
  %4547 = vmatprep.mubr.f32.mxu0 0.0
  %v4548 = vand.u32 %v3467, 4294901760
  %4549 = vmatmul.mubr.f32.gmra.mxu0 %v4548
  %v4550 = vpop.f32.mrf.mxu0
  %v4551 = vadd.f32 %v4471, %v4550
  %v4552 = vpop.f32.mrf.mxu0
  %v4553 = vadd.f32 %v4473, %v4552
  %4554 = vdwg.mxu0
  %v4559 = vcombine.low %v4008, %v4010
  %v4560 = vcombine.low %v4551, %v4553
  %v4562 = vunpack.c.l.s4 1966171168
  %v4563 = vunpack.c.0.s8 %v4562
  %v4564 = vlaneseq
  %v4565 = vshrl.u32 %v4564, 7
  %v4566 = vsub.s32 %v4563, %v4565
  %v4567 = vrot.slane %v4559, %v4566
  %v4569 = vunpack.c.l.s4 1966171168
  %v4570 = vunpack.c.0.s8 %v4569
  %v4571 = vlaneseq
  %v4572 = vshrl.u32 %v4571, 7
  %v4573 = vsub.s32 %v4570, %v4572
  %v4574 = vrot.slane %v4560, %v4573
  %v4575 = vcombine.low %v4567, %v4574
  %v4577 = vunpack.c.l.s4 1966171168
  %v4578 = vunpack.c.0.s8 %v4577
  %v4579 = vlaneseq
  %v4580 = vshrl.u32 %v4579, 7
  %v4581 = vsub.s32 %v4578, %v4580
  %v4582 = vrot.slane %v4575, %v4581
  %v4584 = vlaneseq
  %vm4585 = vcmp.ge.s32.totalorder %v4584, 0
  %vm4586 = vcmp.lt.s32.totalorder %v4584, 512
  %vm4587 = vmand %vm4585, %vm4586
  %4588 = vst.msk [vmem:[%s7] sm:$0xf] %vm4587, %v4582
  // Predicated region
  $region30: #{fcnn_forward.1} parent=0 // pred_check
    _
  $region31: #{fcnn_forward.1} parent=0 // pred_check_branch
    %4590 = sbr.rel (0) target = $region33
  $region32: #{fcnn_forward.1} parent=0 // pred_region
    _
  $region33: #{fcnn_forward.1} parent=0 // pred_fallthru
    _
  // Predicated region
  $region34: #{fcnn_forward.1} parent=0 // pred_check
    _
  $region35: #{fcnn_forward.1} parent=0 // pred_check_branch
    %4592 = sbr.rel (0) target = $region37
  $region36: #{fcnn_forward.1} parent=0 // pred_region
    _
  $region37: #{fcnn_forward.1} parent=0 // pred_fallthru
    _

</llo_original>
